<compile_context>
chip_gen: v7x
topology: tpu7x:2x2x1
jax: 0.10.0
libtpu: 0.0.40
codegen_flags: <defaults>
</compile_context>

<pallas_src>
import jax
import jax.numpy as jnp
from jax.experimental import pallas as pl
from jax.experimental.pallas import tpu as pltpu

# ----------------------------- problem sizes --------------------------------
B = 2                  # batch
S = 16                 # spatial_dim (number of input tokens)
W = 32                 # width (token / hidden dim)
DEPTH = 2              # number of (Attention -> FeedForward) blocks
HEADS = 4              # attention heads
DH = W // HEADS        # dim per head
HID = 4 * W            # FeedForward hidden dim (expansion_factor = 4)
NUM_CLASSES = 10
N = S + 1              # sequence length after appending the cls token
SCALE = DH ** -0.5     # attention scale
LN_EPS = 1e-5          # PyTorch LayerNorm default eps

_VMEM = pl.BlockSpec(memory_space=pltpu.MemorySpace.VMEM)   # whole-array-in-VMEM


# ------------------------------ in-kernel helpers ----------------------------

def _layernorm(v, g, b):
    # One-pass moments: two independent lane reductions instead of a dependent
    # center -> square -> reduce chain.
    mu = jnp.mean(v, axis=-1, keepdims=True)
    ms = jnp.mean(v * v, axis=-1, keepdims=True)
    var = ms - mu * mu
    return (v - mu) * jax.lax.rsqrt(var + LN_EPS) * g + b


def _mm(a, w):
    # (B, n, k) @ (k, m) -> (B, n, m) as B strictly-2D MXU matmuls.
    # No broadcast copy of the weight; bf16 operands, f32 accumulation.
    w16 = w.astype(jnp.bfloat16)
    outs = [
        jax.lax.dot_general(
            a[bb].astype(jnp.bfloat16), w16,
            dimension_numbers=(((1,), (0,)), ((), ())),
            preferred_element_type=jnp.float32)
        for bb in range(a.shape[0])
    ]
    return jnp.stack(outs, axis=0)


# ------------------------------ fused ViT kernel -----------------------------

def _vit_kernel(x_ref, clspos_ref, vecs_ref, b1_ref, mats_ref, w2_ref, fc_ref,
                out_ref):
    # ---- token assembly: [x ; cls] along the sequence, + positional embedding
    pos_x = clspos_ref[0:S, :]                                   # (S, W)
    cls_row = clspos_ref[N:N + 1, :] + clspos_ref[S:S + 1, :]    # cls + pos[S]
    h = jnp.concatenate(
        [x_ref[...] + pos_x, jnp.broadcast_to(cls_row, (B, 1, W))],
        axis=1)                                                  # (B, N, W)

    for l in range(DEPTH):                                       # static unroll
        # Static ref views of the packed slabs (zero-cost views, direct loads).
        wqkv = mats_ref[l, :, 0:3 * W]                           # (W, 3W)  bf16
        wo = mats_ref[l, :, 3 * W:4 * W]                         # (W, W)   bf16
        w1 = mats_ref[l, :, 4 * W:4 * W + HID]                   # (W, HID) bf16
        w2 = w2_ref[l]                                           # (HID, W) bf16
        ln1_g = vecs_ref[l, 0:1, :]
        ln1_b = vecs_ref[l, 1:2, :]
        b_out = vecs_ref[l, 2:3, :]
        ln2_g = vecs_ref[l, 3:4, :]
        ln2_b = vecs_ref[l, 4:5, :]
        b2 = vecs_ref[l, 5:6, :]
        b1 = b1_ref[l]                                           # (1, HID)

        # ---------------- Attention (pre-norm, no residual) -----------------
        hn = _layernorm(h, ln1_g, ln1_b)                         # (B, N, W)
        qkv = _mm(hn, wqkv)                                      # (B, N, 3W)

        head_outs = []
        for hh in range(HEADS):                                  # static unroll
            lo = hh * DH
            q_h = qkv[..., lo:lo + DH]
            k_h = qkv[..., W + lo:W + lo + DH]
            v_h = qkv[..., 2 * W + lo:2 * W + lo + DH]
            s = jnp.einsum('bnd,bmd->bnm',
                           q_h.astype(jnp.bfloat16), k_h.astype(jnp.bfloat16),
                           preferred_element_type=jnp.float32) * SCALE
            s = s - jnp.max(s, axis=-1, keepdims=True)
            p = jnp.exp(s)
            p = p * pl.reciprocal(jnp.sum(p, axis=-1, keepdims=True),
                                  approx=True)                   # softmax(keys)
            oh = jnp.einsum('bnm,bmd->bnd',
                            p.astype(jnp.bfloat16), v_h.astype(jnp.bfloat16),
                            preferred_element_type=jnp.float32)  # (B, N, DH)
            head_outs.append(oh)
        attn = jnp.concatenate(head_outs, axis=-1)               # (B, N, W)
        h = _mm(attn, wo) + b_out                                # single K=W proj

        # ---------------- FeedForward (pre-norm, no residual) ---------------
        hn = _layernorm(h, ln2_g, ln2_b)
        hmid = _mm(hn, w1) + b1                                  # (B, N, HID)
        # TODO(synk): torch.nn.GELU() defaults to the exact erf form; the
        # tanh-approximate GELU is used here (max abs diff ~1e-3).
        hmid = jax.nn.gelu(hmid, approximate=True)
        h = _mm(hmid, w2) + b2                                   # (B, N, W)

    # ---------------- classifier head on the cls (= last) token -------------
    cls_h = h[:, S:, :]                                          # (B, 1, W)
    wfc = fc_ref[0:W, :]                                         # (W, C)
    bfc = fc_ref[W:W + 1, :]                                     # (1, C)
    out_ref[...] = _mm(cls_h, wfc) + bfc                         # (B, 1, C)


# ------------------------------ wrapper --------------------------------------

def pack_params(p):
    """One-time (init, outside jit) packing of the 16 raw parameter arrays into
    6 slabs grouped by trailing shape; matmul weights pre-cast to bf16."""
    return {
        # positional embedding rows 0..N-1, cls token as row N
        "clspos": jnp.concatenate([p["pos"], p["cls"]], axis=0),            # (N+1, W) f32
        # all (DEPTH,1,W) vectors stacked on a sublane axis
        "vecs": jnp.concatenate([p["ln1_g"], p["ln1_b"], p["b_out"],
                                 p["ln2_g"], p["ln2_b"], p["b2"]], axis=1),  # (DEPTH, 6, W) f32
        "b1": p["b1"],                                                       # (DEPTH, 1, HID) f32
        # all (DEPTH,W,*) matrices concatenated on the lane axis
        "mats": jnp.concatenate([p["w_qkv"], p["w_out"], p["w1"]],
                                axis=-1).astype(jnp.bfloat16),               # (DEPTH, W, 4W+HID)
        "w2": p["w2"].astype(jnp.bfloat16),                                  # (DEPTH, HID, W)
        # classifier weight with its bias appended as the last row
        "fc": jnp.concatenate([p["w_fc"], p["b_fc"]], axis=0),               # (W+1, C) f32
    }


@jax.jit
def vit_forward(x, packed):
    out = pl.pallas_call(
        _vit_kernel,
        out_shape=jax.ShapeDtypeStruct((B, 1, NUM_CLASSES), jnp.float32),
        in_specs=[_VMEM] * 7,
        out_specs=_VMEM,
    )(x, packed["clspos"], packed["vecs"], packed["b1"],
      packed["mats"], packed["w2"], packed["fc"])
    return out.reshape(B, NUM_CLASSES)


# ------------------------------ main ------------------------------------------

if __name__ == "__main__":
    key = jax.random.PRNGKey(0)
    kx, kcls, kqkv, kwo, kw1, kw2, kfc = jax.random.split(key, 7)

    # ViT.forward input: [batch, spatial_dim, width]
    x = jax.random.normal(kx, (B, S, W), dtype=jnp.float32)

    def nrm(k, shape, scale=0.1):
        return scale * jax.random.normal(k, shape, dtype=jnp.float32)

    params = {
        # cls token (torch.rand) and positional embedding (torch.zeros)
        "cls":   jax.random.uniform(kcls, (1, W), dtype=jnp.float32),
        "pos":   jnp.zeros((N, W), dtype=jnp.float32),
        # per-block weights, stacked along a leading depth axis
        "ln1_g": jnp.ones((DEPTH, 1, W), dtype=jnp.float32),
        "ln1_b": jnp.zeros((DEPTH, 1, W), dtype=jnp.float32),
        "w_qkv": nrm(kqkv, (DEPTH, W, 3 * W)),        # to_qkv (bias=False)
        "w_out": nrm(kwo, (DEPTH, W, W)),             # to_out linear
        "b_out": jnp.zeros((DEPTH, 1, W), dtype=jnp.float32),
        "ln2_g": jnp.ones((DEPTH, 1, W), dtype=jnp.float32),
        "ln2_b": jnp.zeros((DEPTH, 1, W), dtype=jnp.float32),
        "w1":    nrm(kw1, (DEPTH, W, HID)),           # FeedForward linear_1
        "b1":    jnp.zeros((DEPTH, 1, HID), dtype=jnp.float32),
        "w2":    nrm(kw2, (DEPTH, HID, W)),           # FeedForward linear_2
        "b2":    jnp.zeros((DEPTH, 1, W), dtype=jnp.float32),
        # final classifier head
        "w_fc":  nrm(kfc, (W, NUM_CLASSES)),
        "b_fc":  jnp.zeros((1, NUM_CLASSES), dtype=jnp.float32),
    }

    packed = pack_params(params)           # once, outside jit

    out = vit_forward(x, packed)
    jax.block_until_ready(out)
    assert out.shape == (B, NUM_CLASSES) and out.dtype == jnp.float32
    assert bool(jnp.all(jnp.isfinite(out)))
    print("KERNEL_OK")
</pallas_src>

<mosaic_0001>
module attributes {stable_mosaic.version = 11 : i64} {
  func.func @_vit_kernel(%arg0: memref<2x16x32xf32, #tpu.memory_space<vmem>>, %arg1: memref<18x32xf32, #tpu.memory_space<vmem>>, %arg2: memref<2x6x32xf32, #tpu.memory_space<vmem>>, %arg3: memref<2x1x128xf32, #tpu.memory_space<vmem>>, %arg4: memref<2x32x256xbf16, #tpu.memory_space<vmem>>, %arg5: memref<2x128x32xbf16, #tpu.memory_space<vmem>>, %arg6: memref<33x10xf32, #tpu.memory_space<vmem>>, %arg7: memref<2x1x10xf32, #tpu.memory_space<vmem>>) attributes {dimension_semantics = [], scalar_prefetch = 0 : i64, scratch_operands = 0 : i64, tpu.core_type = #tpu.core_type<tc>} {
    %c0 = arith.constant 0 : index
    %c0_0 = arith.constant 0 : index
    %0 = vector.load %arg1[%c0, %c0_0] : memref<18x32xf32, #tpu.memory_space<vmem>>, vector<16x32xf32>
    %c17 = arith.constant 17 : index
    %c0_1 = arith.constant 0 : index
    %1 = vector.load %arg1[%c17, %c0_1] : memref<18x32xf32, #tpu.memory_space<vmem>>, vector<1x32xf32>
    %c16 = arith.constant 16 : index
    %c0_2 = arith.constant 0 : index
    %2 = vector.load %arg1[%c16, %c0_2] : memref<18x32xf32, #tpu.memory_space<vmem>>, vector<1x32xf32>
    %3 = arith.addf %1, %2 : vector<1x32xf32>
    %c0_3 = arith.constant 0 : index
    %c0_4 = arith.constant 0 : index
    %c0_5 = arith.constant 0 : index
    %4 = vector.load %arg0[%c0_3, %c0_4, %c0_5] : memref<2x16x32xf32, #tpu.memory_space<vmem>>, vector<2x16x32xf32>
    %5 = vector.shape_cast %0 : vector<16x32xf32> to vector<1x16x32xf32>
    %6 = vector.broadcast %5 : vector<1x16x32xf32> to vector<2x16x32xf32>
    %7 = arith.addf %4, %6 : vector<2x16x32xf32>
    %8 = vector.shape_cast %3 : vector<1x32xf32> to vector<1x1x32xf32>
    %9 = vector.broadcast %8 : vector<1x1x32xf32> to vector<2x1x32xf32>
    %10 = tpu.concatenate %7, %9 in 1 : vector<2x16x32xf32>, vector<2x1x32xf32> -> vector<2x17x32xf32>
    %c0_6 = arith.constant 0 : index
    %c0_7 = arith.constant 0 : index
    %c0_8 = arith.constant 0 : index
    %11 = vector.load %arg4[%c0_6, %c0_7, %c0_8] : memref<2x32x256xbf16, #tpu.memory_space<vmem>>, vector<1x32x96xbf16>
    %12 = vector.shape_cast %11 : vector<1x32x96xbf16> to vector<32x96xbf16>
    %c0_9 = arith.constant 0 : index
    %c0_10 = arith.constant 0 : index
    %c96 = arith.constant 96 : index
    %13 = vector.load %arg4[%c0_9, %c0_10, %c96] : memref<2x32x256xbf16, #tpu.memory_space<vmem>>, vector<1x32x32xbf16>
    %14 = vector.shape_cast %13 : vector<1x32x32xbf16> to vector<32x32xbf16>
    %c0_11 = arith.constant 0 : index
    %c0_12 = arith.constant 0 : index
    %c128 = arith.constant 128 : index
    %15 = vector.load %arg4[%c0_11, %c0_12, %c128] : memref<2x32x256xbf16, #tpu.memory_space<vmem>>, vector<1x32x128xbf16>
    %16 = vector.shape_cast %15 : vector<1x32x128xbf16> to vector<32x128xbf16>
    %c0_13 = arith.constant 0 : index
    %c0_14 = arith.constant 0 : index
    %c0_15 = arith.constant 0 : index
    %17 = vector.load %arg5[%c0_13, %c0_14, %c0_15] : memref<2x128x32xbf16, #tpu.memory_space<vmem>>, vector<1x128x32xbf16>
    %18 = vector.shape_cast %17 : vector<1x128x32xbf16> to vector<128x32xbf16>
    %c0_16 = arith.constant 0 : index
    %c0_17 = arith.constant 0 : index
    %c0_18 = arith.constant 0 : index
    %19 = vector.load %arg2[%c0_16, %c0_17, %c0_18] : memref<2x6x32xf32, #tpu.memory_space<vmem>>, vector<1x1x32xf32>
    %20 = vector.shape_cast %19 : vector<1x1x32xf32> to vector<1x32xf32>
    %c0_19 = arith.constant 0 : index
    %c1 = arith.constant 1 : index
    %c0_20 = arith.constant 0 : index
    %21 = vector.load %arg2[%c0_19, %c1, %c0_20] : memref<2x6x32xf32, #tpu.memory_space<vmem>>, vector<1x1x32xf32>
    %22 = vector.shape_cast %21 : vector<1x1x32xf32> to vector<1x32xf32>
    %c0_21 = arith.constant 0 : index
    %c2 = arith.constant 2 : index
    %c0_22 = arith.constant 0 : index
    %23 = vector.load %arg2[%c0_21, %c2, %c0_22] : memref<2x6x32xf32, #tpu.memory_space<vmem>>, vector<1x1x32xf32>
    %24 = vector.shape_cast %23 : vector<1x1x32xf32> to vector<1x32xf32>
    %c0_23 = arith.constant 0 : index
    %c3 = arith.constant 3 : index
    %c0_24 = arith.constant 0 : index
    %25 = vector.load %arg2[%c0_23, %c3, %c0_24] : memref<2x6x32xf32, #tpu.memory_space<vmem>>, vector<1x1x32xf32>
    %26 = vector.shape_cast %25 : vector<1x1x32xf32> to vector<1x32xf32>
    %c0_25 = arith.constant 0 : index
    %c4 = arith.constant 4 : index
    %c0_26 = arith.constant 0 : index
    %27 = vector.load %arg2[%c0_25, %c4, %c0_26] : memref<2x6x32xf32, #tpu.memory_space<vmem>>, vector<1x1x32xf32>
    %28 = vector.shape_cast %27 : vector<1x1x32xf32> to vector<1x32xf32>
    %c0_27 = arith.constant 0 : index
    %c5 = arith.constant 5 : index
    %c0_28 = arith.constant 0 : index
    %29 = vector.load %arg2[%c0_27, %c5, %c0_28] : memref<2x6x32xf32, #tpu.memory_space<vmem>>, vector<1x1x32xf32>
    %30 = vector.shape_cast %29 : vector<1x1x32xf32> to vector<1x32xf32>
    %c0_29 = arith.constant 0 : index
    %c0_30 = arith.constant 0 : index
    %c0_31 = arith.constant 0 : index
    %31 = vector.load %arg3[%c0_29, %c0_30, %c0_31] : memref<2x1x128xf32, #tpu.memory_space<vmem>>, vector<1x1x128xf32>
    %32 = vector.shape_cast %31 : vector<1x1x128xf32> to vector<1x128xf32>
    %cst = arith.constant dense<0.000000e+00> : vector<2x17xf32>
    %33 = vector.multi_reduction <add>, %10, %cst [2] : vector<2x17x32xf32> to vector<2x17xf32>
    %34 = vector.shape_cast %33 : vector<2x17xf32> to vector<2x17x1xf32>
    %cst_32 = arith.constant 3.200000e+01 : f32
    %35 = vector.broadcast %cst_32 : f32 to vector<2x17x1xf32>
    %36 = arith.divf %34, %35 : vector<2x17x1xf32>
    %37 = arith.mulf %10, %10 : vector<2x17x32xf32>
    %cst_33 = arith.constant dense<0.000000e+00> : vector<2x17xf32>
    %38 = vector.multi_reduction <add>, %37, %cst_33 [2] : vector<2x17x32xf32> to vector<2x17xf32>
    %39 = vector.shape_cast %38 : vector<2x17xf32> to vector<2x17x1xf32>
    %cst_34 = arith.constant 3.200000e+01 : f32
    %40 = vector.broadcast %cst_34 : f32 to vector<2x17x1xf32>
    %41 = arith.divf %39, %40 : vector<2x17x1xf32>
    %42 = arith.mulf %36, %36 : vector<2x17x1xf32>
    %43 = arith.subf %41, %42 : vector<2x17x1xf32>
    %44 = vector.broadcast %36 : vector<2x17x1xf32> to vector<2x17x32xf32>
    %45 = arith.subf %10, %44 : vector<2x17x32xf32>
    %cst_35 = arith.constant 9.99999974E-6 : f32
    %46 = vector.broadcast %cst_35 : f32 to vector<2x17x1xf32>
    %47 = arith.addf %43, %46 : vector<2x17x1xf32>
    %48 = math.rsqrt %47 : vector<2x17x1xf32>
    %49 = vector.broadcast %48 : vector<2x17x1xf32> to vector<2x17x32xf32>
    %50 = arith.mulf %45, %49 : vector<2x17x32xf32>
    %51 = vector.shape_cast %20 : vector<1x32xf32> to vector<1x1x32xf32>
    %52 = vector.broadcast %51 : vector<1x1x32xf32> to vector<2x17x32xf32>
    %53 = arith.mulf %50, %52 : vector<2x17x32xf32>
    %54 = vector.shape_cast %22 : vector<1x32xf32> to vector<1x1x32xf32>
    %55 = vector.broadcast %54 : vector<1x1x32xf32> to vector<2x17x32xf32>
    %56 = arith.addf %53, %55 : vector<2x17x32xf32>
    %57 = vector.extract_strided_slice %56 {offsets = [0, 0, 0], sizes = [1, 17, 32], strides = [1, 1, 1]} : vector<2x17x32xf32> to vector<1x17x32xf32>
    %58 = vector.shape_cast %57 : vector<1x17x32xf32> to vector<17x32xf32>
    %59 = arith.truncf %58 : vector<17x32xf32> to vector<17x32xbf16>
    %cst_36 = arith.constant dense<0.000000e+00> : vector<17x96xf32>
    %60 = tpu.matmul %59, %12, %cst_36 {dimension_numbers = #tpu.dot_dimension_numbers<[1], [0], [0], [1], [0, 0, 1, 1], [], []>} : vector<17x32xbf16>, vector<32x96xbf16>, vector<17x96xf32> -> vector<17x96xf32>
    %61 = vector.extract_strided_slice %56 {offsets = [1, 0, 0], sizes = [1, 17, 32], strides = [1, 1, 1]} : vector<2x17x32xf32> to vector<1x17x32xf32>
    %62 = vector.shape_cast %61 : vector<1x17x32xf32> to vector<17x32xf32>
    %63 = arith.truncf %62 : vector<17x32xf32> to vector<17x32xbf16>
    %cst_37 = arith.constant dense<0.000000e+00> : vector<17x96xf32>
    %64 = tpu.matmul %63, %12, %cst_37 {dimension_numbers = #tpu.dot_dimension_numbers<[1], [0], [0], [1], [0, 0, 1, 1], [], []>} : vector<17x32xbf16>, vector<32x96xbf16>, vector<17x96xf32> -> vector<17x96xf32>
    %65 = vector.shape_cast %60 : vector<17x96xf32> to vector<1x17x96xf32>
    %66 = vector.shape_cast %64 : vector<17x96xf32> to vector<1x17x96xf32>
    %67 = tpu.concatenate %65, %66 in 0 : vector<1x17x96xf32>, vector<1x17x96xf32> -> vector<2x17x96xf32>
    %68 = vector.extract_strided_slice %67 {offsets = [0, 0, 0], sizes = [2, 17, 8], strides = [1, 1, 1]} : vector<2x17x96xf32> to vector<2x17x8xf32>
    %69 = vector.extract_strided_slice %67 {offsets = [0, 0, 32], sizes = [2, 17, 8], strides = [1, 1, 1]} : vector<2x17x96xf32> to vector<2x17x8xf32>
    %70 = vector.extract_strided_slice %67 {offsets = [0, 0, 64], sizes = [2, 17, 8], strides = [1, 1, 1]} : vector<2x17x96xf32> to vector<2x17x8xf32>
    %71 = arith.truncf %68 : vector<2x17x8xf32> to vector<2x17x8xbf16>
    %72 = arith.truncf %69 : vector<2x17x8xf32> to vector<2x17x8xbf16>
    "tpu.trace_start"() <{level = 10 : i32, message = "bnd,bmd->bnm"}> : () -> ()
    %cst_38 = arith.constant dense<0.000000e+00> : vector<2x17x17xf32>
    %73 = tpu.matmul %71, %72, %cst_38 {dimension_numbers = #tpu.dot_dimension_numbers<[2], [2], [1], [1], [0, 0, 0, 1, 1, 1], [0], [0]>} : vector<2x17x8xbf16>, vector<2x17x8xbf16>, vector<2x17x17xf32> -> vector<2x17x17xf32>
    "tpu.trace_stop"() : () -> ()
    %cst_39 = arith.constant 0.353553385 : f32
    %74 = vector.broadcast %cst_39 : f32 to vector<2x17x17xf32>
    %75 = arith.mulf %73, %74 : vector<2x17x17xf32>
    %cst_40 = arith.constant dense<0xFF800000> : vector<2x17xf32>
    %76 = vector.multi_reduction <maximumf>, %75, %cst_40 [2] : vector<2x17x17xf32> to vector<2x17xf32>
    %77 = vector.shape_cast %76 : vector<2x17xf32> to vector<2x17x1xf32>
    %78 = vector.broadcast %77 : vector<2x17x1xf32> to vector<2x17x17xf32>
    %79 = arith.subf %75, %78 : vector<2x17x17xf32>
    %80 = math.exp %79 : vector<2x17x17xf32>
    %cst_41 = arith.constant dense<0.000000e+00> : vector<2x17xf32>
    %81 = vector.multi_reduction <add>, %80, %cst_41 [2] : vector<2x17x17xf32> to vector<2x17xf32>
    %82 = vector.shape_cast %81 : vector<2x17xf32> to vector<2x17x1xf32>
    %83 = tpu.reciprocal %82 {approx = true} : vector<2x17x1xf32> -> vector<2x17x1xf32>
    %84 = vector.broadcast %83 : vector<2x17x1xf32> to vector<2x17x17xf32>
    %85 = arith.mulf %80, %84 : vector<2x17x17xf32>
    %86 = arith.truncf %85 : vector<2x17x17xf32> to vector<2x17x17xbf16>
    %87 = arith.truncf %70 : vector<2x17x8xf32> to vector<2x17x8xbf16>
    "tpu.trace_start"() <{level = 10 : i32, message = "bnm,bmd->bnd"}> : () -> ()
    %cst_42 = arith.constant dense<0.000000e+00> : vector<2x17x8xf32>
    %88 = tpu.matmul %86, %87, %cst_42 {dimension_numbers = #tpu.dot_dimension_numbers<[2], [1], [1], [2], [0, 0, 0, 1, 1, 2], [0], [0]>} : vector<2x17x17xbf16>, vector<2x17x8xbf16>, vector<2x17x8xf32> -> vector<2x17x8xf32>
    "tpu.trace_stop"() : () -> ()
    %89 = vector.extract_strided_slice %67 {offsets = [0, 0, 8], sizes = [2, 17, 8], strides = [1, 1, 1]} : vector<2x17x96xf32> to vector<2x17x8xf32>
    %90 = vector.extract_strided_slice %67 {offsets = [0, 0, 40], sizes = [2, 17, 8], strides = [1, 1, 1]} : vector<2x17x96xf32> to vector<2x17x8xf32>
    %91 = vector.extract_strided_slice %67 {offsets = [0, 0, 72], sizes = [2, 17, 8], strides = [1, 1, 1]} : vector<2x17x96xf32> to vector<2x17x8xf32>
    %92 = arith.truncf %89 : vector<2x17x8xf32> to vector<2x17x8xbf16>
    %93 = arith.truncf %90 : vector<2x17x8xf32> to vector<2x17x8xbf16>
    "tpu.trace_start"() <{level = 10 : i32, message = "bnd,bmd->bnm"}> : () -> ()
    %cst_43 = arith.constant dense<0.000000e+00> : vector<2x17x17xf32>
    %94 = tpu.matmul %92, %93, %cst_43 {dimension_numbers = #tpu.dot_dimension_numbers<[2], [2], [1], [1], [0, 0, 0, 1, 1, 1], [0], [0]>} : vector<2x17x8xbf16>, vector<2x17x8xbf16>, vector<2x17x17xf32> -> vector<2x17x17xf32>
    "tpu.trace_stop"() : () -> ()
    %cst_44 = arith.constant 0.353553385 : f32
    %95 = vector.broadcast %cst_44 : f32 to vector<2x17x17xf32>
    %96 = arith.mulf %94, %95 : vector<2x17x17xf32>
    %cst_45 = arith.constant dense<0xFF800000> : vector<2x17xf32>
    %97 = vector.multi_reduction <maximumf>, %96, %cst_45 [2] : vector<2x17x17xf32> to vector<2x17xf32>
    %98 = vector.shape_cast %97 : vector<2x17xf32> to vector<2x17x1xf32>
    %99 = vector.broadcast %98 : vector<2x17x1xf32> to vector<2x17x17xf32>
    %100 = arith.subf %96, %99 : vector<2x17x17xf32>
    %101 = math.exp %100 : vector<2x17x17xf32>
    %cst_46 = arith.constant dense<0.000000e+00> : vector<2x17xf32>
    %102 = vector.multi_reduction <add>, %101, %cst_46 [2] : vector<2x17x17xf32> to vector<2x17xf32>
    %103 = vector.shape_cast %102 : vector<2x17xf32> to vector<2x17x1xf32>
    %104 = tpu.reciprocal %103 {approx = true} : vector<2x17x1xf32> -> vector<2x17x1xf32>
    %105 = vector.broadcast %104 : vector<2x17x1xf32> to vector<2x17x17xf32>
    %106 = arith.mulf %101, %105 : vector<2x17x17xf32>
    %107 = arith.truncf %106 : vector<2x17x17xf32> to vector<2x17x17xbf16>
    %108 = arith.truncf %91 : vector<2x17x8xf32> to vector<2x17x8xbf16>
    "tpu.trace_start"() <{level = 10 : i32, message = "bnm,bmd->bnd"}> : () -> ()
    %cst_47 = arith.constant dense<0.000000e+00> : vector<2x17x8xf32>
    %109 = tpu.matmul %107, %108, %cst_47 {dimension_numbers = #tpu.dot_dimension_numbers<[2], [1], [1], [2], [0, 0, 0, 1, 1, 2], [0], [0]>} : vector<2x17x17xbf16>, vector<2x17x8xbf16>, vector<2x17x8xf32> -> vector<2x17x8xf32>
    "tpu.trace_stop"() : () -> ()
    %110 = vector.extract_strided_slice %67 {offsets = [0, 0, 16], sizes = [2, 17, 8], strides = [1, 1, 1]} : vector<2x17x96xf32> to vector<2x17x8xf32>
    %111 = vector.extract_strided_slice %67 {offsets = [0, 0, 48], sizes = [2, 17, 8], strides = [1, 1, 1]} : vector<2x17x96xf32> to vector<2x17x8xf32>
    %112 = vector.extract_strided_slice %67 {offsets = [0, 0, 80], sizes = [2, 17, 8], strides = [1, 1, 1]} : vector<2x17x96xf32> to vector<2x17x8xf32>
    %113 = arith.truncf %110 : vector<2x17x8xf32> to vector<2x17x8xbf16>
    %114 = arith.truncf %111 : vector<2x17x8xf32> to vector<2x17x8xbf16>
    "tpu.trace_start"() <{level = 10 : i32, message = "bnd,bmd->bnm"}> : () -> ()
    %cst_48 = arith.constant dense<0.000000e+00> : vector<2x17x17xf32>
    %115 = tpu.matmul %113, %114, %cst_48 {dimension_numbers = #tpu.dot_dimension_numbers<[2], [2], [1], [1], [0, 0, 0, 1, 1, 1], [0], [0]>} : vector<2x17x8xbf16>, vector<2x17x8xbf16>, vector<2x17x17xf32> -> vector<2x17x17xf32>
    "tpu.trace_stop"() : () -> ()
    %cst_49 = arith.constant 0.353553385 : f32
    %116 = vector.broadcast %cst_49 : f32 to vector<2x17x17xf32>
    %117 = arith.mulf %115, %116 : vector<2x17x17xf32>
    %cst_50 = arith.constant dense<0xFF800000> : vector<2x17xf32>
    %118 = vector.multi_reduction <maximumf>, %117, %cst_50 [2] : vector<2x17x17xf32> to vector<2x17xf32>
    %119 = vector.shape_cast %118 : vector<2x17xf32> to vector<2x17x1xf32>
    %120 = vector.broadcast %119 : vector<2x17x1xf32> to vector<2x17x17xf32>
    %121 = arith.subf %117, %120 : vector<2x17x17xf32>
    %122 = math.exp %121 : vector<2x17x17xf32>
    %cst_51 = arith.constant dense<0.000000e+00> : vector<2x17xf32>
    %123 = vector.multi_reduction <add>, %122, %cst_51 [2] : vector<2x17x17xf32> to vector<2x17xf32>
    %124 = vector.shape_cast %123 : vector<2x17xf32> to vector<2x17x1xf32>
    %125 = tpu.reciprocal %124 {approx = true} : vector<2x17x1xf32> -> vector<2x17x1xf32>
    %126 = vector.broadcast %125 : vector<2x17x1xf32> to vector<2x17x17xf32>
    %127 = arith.mulf %122, %126 : vector<2x17x17xf32>
    %128 = arith.truncf %127 : vector<2x17x17xf32> to vector<2x17x17xbf16>
    %129 = arith.truncf %112 : vector<2x17x8xf32> to vector<2x17x8xbf16>
    "tpu.trace_start"() <{level = 10 : i32, message = "bnm,bmd->bnd"}> : () -> ()
    %cst_52 = arith.constant dense<0.000000e+00> : vector<2x17x8xf32>
    %130 = tpu.matmul %128, %129, %cst_52 {dimension_numbers = #tpu.dot_dimension_numbers<[2], [1], [1], [2], [0, 0, 0, 1, 1, 2], [0], [0]>} : vector<2x17x17xbf16>, vector<2x17x8xbf16>, vector<2x17x8xf32> -> vector<2x17x8xf32>
    "tpu.trace_stop"() : () -> ()
    %131 = vector.extract_strided_slice %67 {offsets = [0, 0, 24], sizes = [2, 17, 8], strides = [1, 1, 1]} : vector<2x17x96xf32> to vector<2x17x8xf32>
    %132 = vector.extract_strided_slice %67 {offsets = [0, 0, 56], sizes = [2, 17, 8], strides = [1, 1, 1]} : vector<2x17x96xf32> to vector<2x17x8xf32>
    %133 = vector.extract_strided_slice %67 {offsets = [0, 0, 88], sizes = [2, 17, 8], strides = [1, 1, 1]} : vector<2x17x96xf32> to vector<2x17x8xf32>
    %134 = arith.truncf %131 : vector<2x17x8xf32> to vector<2x17x8xbf16>
    %135 = arith.truncf %132 : vector<2x17x8xf32> to vector<2x17x8xbf16>
    "tpu.trace_start"() <{level = 10 : i32, message = "bnd,bmd->bnm"}> : () -> ()
    %cst_53 = arith.constant dense<0.000000e+00> : vector<2x17x17xf32>
    %136 = tpu.matmul %134, %135, %cst_53 {dimension_numbers = #tpu.dot_dimension_numbers<[2], [2], [1], [1], [0, 0, 0, 1, 1, 1], [0], [0]>} : vector<2x17x8xbf16>, vector<2x17x8xbf16>, vector<2x17x17xf32> -> vector<2x17x17xf32>
    "tpu.trace_stop"() : () -> ()
    %cst_54 = arith.constant 0.353553385 : f32
    %137 = vector.broadcast %cst_54 : f32 to vector<2x17x17xf32>
    %138 = arith.mulf %136, %137 : vector<2x17x17xf32>
    %cst_55 = arith.constant dense<0xFF800000> : vector<2x17xf32>
    %139 = vector.multi_reduction <maximumf>, %138, %cst_55 [2] : vector<2x17x17xf32> to vector<2x17xf32>
    %140 = vector.shape_cast %139 : vector<2x17xf32> to vector<2x17x1xf32>
    %141 = vector.broadcast %140 : vector<2x17x1xf32> to vector<2x17x17xf32>
    %142 = arith.subf %138, %141 : vector<2x17x17xf32>
    %143 = math.exp %142 : vector<2x17x17xf32>
    %cst_56 = arith.constant dense<0.000000e+00> : vector<2x17xf32>
    %144 = vector.multi_reduction <add>, %143, %cst_56 [2] : vector<2x17x17xf32> to vector<2x17xf32>
    %145 = vector.shape_cast %144 : vector<2x17xf32> to vector<2x17x1xf32>
    %146 = tpu.reciprocal %145 {approx = true} : vector<2x17x1xf32> -> vector<2x17x1xf32>
    %147 = vector.broadcast %146 : vector<2x17x1xf32> to vector<2x17x17xf32>
    %148 = arith.mulf %143, %147 : vector<2x17x17xf32>
    %149 = arith.truncf %148 : vector<2x17x17xf32> to vector<2x17x17xbf16>
    %150 = arith.truncf %133 : vector<2x17x8xf32> to vector<2x17x8xbf16>
    "tpu.trace_start"() <{level = 10 : i32, message = "bnm,bmd->bnd"}> : () -> ()
    %cst_57 = arith.constant dense<0.000000e+00> : vector<2x17x8xf32>
    %151 = tpu.matmul %149, %150, %cst_57 {dimension_numbers = #tpu.dot_dimension_numbers<[2], [1], [1], [2], [0, 0, 0, 1, 1, 2], [0], [0]>} : vector<2x17x17xbf16>, vector<2x17x8xbf16>, vector<2x17x8xf32> -> vector<2x17x8xf32>
    "tpu.trace_stop"() : () -> ()
    %152 = tpu.concatenate %88, %109, %130, %151 in 2 : vector<2x17x8xf32>, vector<2x17x8xf32>, vector<2x17x8xf32>, vector<2x17x8xf32> -> vector<2x17x32xf32>
    %153 = vector.extract_strided_slice %152 {offsets = [0, 0, 0], sizes = [1, 17, 32], strides = [1, 1, 1]} : vector<2x17x32xf32> to vector<1x17x32xf32>
    %154 = vector.shape_cast %153 : vector<1x17x32xf32> to vector<17x32xf32>
    %155 = arith.truncf %154 : vector<17x32xf32> to vector<17x32xbf16>
    %cst_58 = arith.constant dense<0.000000e+00> : vector<17x32xf32>
    %156 = tpu.matmul %155, %14, %cst_58 {dimension_numbers = #tpu.dot_dimension_numbers<[1], [0], [0], [1], [0, 0, 1, 1], [], []>} : vector<17x32xbf16>, vector<32x32xbf16>, vector<17x32xf32> -> vector<17x32xf32>
    %157 = vector.extract_strided_slice %152 {offsets = [1, 0, 0], sizes = [1, 17, 32], strides = [1, 1, 1]} : vector<2x17x32xf32> to vector<1x17x32xf32>
    %158 = vector.shape_cast %157 : vector<1x17x32xf32> to vector<17x32xf32>
    %159 = arith.truncf %158 : vector<17x32xf32> to vector<17x32xbf16>
    %cst_59 = arith.constant dense<0.000000e+00> : vector<17x32xf32>
    %160 = tpu.matmul %159, %14, %cst_59 {dimension_numbers = #tpu.dot_dimension_numbers<[1], [0], [0], [1], [0, 0, 1, 1], [], []>} : vector<17x32xbf16>, vector<32x32xbf16>, vector<17x32xf32> -> vector<17x32xf32>
    %161 = vector.shape_cast %156 : vector<17x32xf32> to vector<1x17x32xf32>
    %162 = vector.shape_cast %160 : vector<17x32xf32> to vector<1x17x32xf32>
    %163 = tpu.concatenate %161, %162 in 0 : vector<1x17x32xf32>, vector<1x17x32xf32> -> vector<2x17x32xf32>
    %164 = vector.shape_cast %24 : vector<1x32xf32> to vector<1x1x32xf32>
    %165 = vector.broadcast %164 : vector<1x1x32xf32> to vector<2x17x32xf32>
    %166 = arith.addf %163, %165 : vector<2x17x32xf32>
    %cst_60 = arith.constant dense<0.000000e+00> : vector<2x17xf32>
    %167 = vector.multi_reduction <add>, %166, %cst_60 [2] : vector<2x17x32xf32> to vector<2x17xf32>
    %168 = vector.shape_cast %167 : vector<2x17xf32> to vector<2x17x1xf32>
    %cst_61 = arith.constant 3.200000e+01 : f32
    %169 = vector.broadcast %cst_61 : f32 to vector<2x17x1xf32>
    %170 = arith.divf %168, %169 : vector<2x17x1xf32>
    %171 = arith.mulf %166, %166 : vector<2x17x32xf32>
    %cst_62 = arith.constant dense<0.000000e+00> : vector<2x17xf32>
    %172 = vector.multi_reduction <add>, %171, %cst_62 [2] : vector<2x17x32xf32> to vector<2x17xf32>
    %173 = vector.shape_cast %172 : vector<2x17xf32> to vector<2x17x1xf32>
    %cst_63 = arith.constant 3.200000e+01 : f32
    %174 = vector.broadcast %cst_63 : f32 to vector<2x17x1xf32>
    %175 = arith.divf %173, %174 : vector<2x17x1xf32>
    %176 = arith.mulf %170, %170 : vector<2x17x1xf32>
    %177 = arith.subf %175, %176 : vector<2x17x1xf32>
    %178 = vector.broadcast %170 : vector<2x17x1xf32> to vector<2x17x32xf32>
    %179 = arith.subf %166, %178 : vector<2x17x32xf32>
    %cst_64 = arith.constant 9.99999974E-6 : f32
    %180 = vector.broadcast %cst_64 : f32 to vector<2x17x1xf32>
    %181 = arith.addf %177, %180 : vector<2x17x1xf32>
    %182 = math.rsqrt %181 : vector<2x17x1xf32>
    %183 = vector.broadcast %182 : vector<2x17x1xf32> to vector<2x17x32xf32>
    %184 = arith.mulf %179, %183 : vector<2x17x32xf32>
    %185 = vector.shape_cast %26 : vector<1x32xf32> to vector<1x1x32xf32>
    %186 = vector.broadcast %185 : vector<1x1x32xf32> to vector<2x17x32xf32>
    %187 = arith.mulf %184, %186 : vector<2x17x32xf32>
    %188 = vector.shape_cast %28 : vector<1x32xf32> to vector<1x1x32xf32>
    %189 = vector.broadcast %188 : vector<1x1x32xf32> to vector<2x17x32xf32>
    %190 = arith.addf %187, %189 : vector<2x17x32xf32>
    %191 = vector.extract_strided_slice %190 {offsets = [0, 0, 0], sizes = [1, 17, 32], strides = [1, 1, 1]} : vector<2x17x32xf32> to vector<1x17x32xf32>
    %192 = vector.shape_cast %191 : vector<1x17x32xf32> to vector<17x32xf32>
    %193 = arith.truncf %192 : vector<17x32xf32> to vector<17x32xbf16>
    %cst_65 = arith.constant dense<0.000000e+00> : vector<17x128xf32>
    %194 = tpu.matmul %193, %16, %cst_65 {dimension_numbers = #tpu.dot_dimension_numbers<[1], [0], [0], [1], [0, 0, 1, 1], [], []>} : vector<17x32xbf16>, vector<32x128xbf16>, vector<17x128xf32> -> vector<17x128xf32>
    %195 = vector.extract_strided_slice %190 {offsets = [1, 0, 0], sizes = [1, 17, 32], strides = [1, 1, 1]} : vector<2x17x32xf32> to vector<1x17x32xf32>
    %196 = vector.shape_cast %195 : vector<1x17x32xf32> to vector<17x32xf32>
    %197 = arith.truncf %196 : vector<17x32xf32> to vector<17x32xbf16>
    %cst_66 = arith.constant dense<0.000000e+00> : vector<17x128xf32>
    %198 = tpu.matmul %197, %16, %cst_66 {dimension_numbers = #tpu.dot_dimension_numbers<[1], [0], [0], [1], [0, 0, 1, 1], [], []>} : vector<17x32xbf16>, vector<32x128xbf16>, vector<17x128xf32> -> vector<17x128xf32>
    %199 = vector.shape_cast %194 : vector<17x128xf32> to vector<1x17x128xf32>
    %200 = vector.shape_cast %198 : vector<17x128xf32> to vector<1x17x128xf32>
    %201 = tpu.concatenate %199, %200 in 0 : vector<1x17x128xf32>, vector<1x17x128xf32> -> vector<2x17x128xf32>
    %202 = vector.shape_cast %32 : vector<1x128xf32> to vector<1x1x128xf32>
    %203 = vector.broadcast %202 : vector<1x1x128xf32> to vector<2x17x128xf32>
    %204 = arith.addf %201, %203 : vector<2x17x128xf32>
    %205 = arith.mulf %204, %204 : vector<2x17x128xf32>
    %206 = arith.mulf %204, %205 : vector<2x17x128xf32>
    %cst_67 = arith.constant 4.471500e-02 : f32
    %207 = vector.broadcast %cst_67 : f32 to vector<2x17x128xf32>
    %208 = arith.mulf %207, %206 : vector<2x17x128xf32>
    %209 = arith.addf %204, %208 : vector<2x17x128xf32>
    %cst_68 = arith.constant 0.797884583 : f32
    %210 = vector.broadcast %cst_68 : f32 to vector<2x17x128xf32>
    %211 = arith.mulf %210, %209 : vector<2x17x128xf32>
    %212 = math.tanh %211 : vector<2x17x128xf32>
    %cst_69 = arith.constant 1.000000e+00 : f32
    %213 = vector.broadcast %cst_69 : f32 to vector<2x17x128xf32>
    %214 = arith.addf %213, %212 : vector<2x17x128xf32>
    %cst_70 = arith.constant 5.000000e-01 : f32
    %215 = vector.broadcast %cst_70 : f32 to vector<2x17x128xf32>
    %216 = arith.mulf %215, %214 : vector<2x17x128xf32>
    %217 = arith.mulf %204, %216 : vector<2x17x128xf32>
    %218 = vector.extract_strided_slice %217 {offsets = [0, 0, 0], sizes = [1, 17, 128], strides = [1, 1, 1]} : vector<2x17x128xf32> to vector<1x17x128xf32>
    %219 = vector.shape_cast %218 : vector<1x17x128xf32> to vector<17x128xf32>
    %220 = arith.truncf %219 : vector<17x128xf32> to vector<17x128xbf16>
    %cst_71 = arith.constant dense<0.000000e+00> : vector<17x32xf32>
    %221 = tpu.matmul %220, %18, %cst_71 {dimension_numbers = #tpu.dot_dimension_numbers<[1], [0], [0], [1], [0, 0, 1, 1], [], []>} : vector<17x128xbf16>, vector<128x32xbf16>, vector<17x32xf32> -> vector<17x32xf32>
    %222 = vector.extract_strided_slice %217 {offsets = [1, 0, 0], sizes = [1, 17, 128], strides = [1, 1, 1]} : vector<2x17x128xf32> to vector<1x17x128xf32>
    %223 = vector.shape_cast %222 : vector<1x17x128xf32> to vector<17x128xf32>
    %224 = arith.truncf %223 : vector<17x128xf32> to vector<17x128xbf16>
    %cst_72 = arith.constant dense<0.000000e+00> : vector<17x32xf32>
    %225 = tpu.matmul %224, %18, %cst_72 {dimension_numbers = #tpu.dot_dimension_numbers<[1], [0], [0], [1], [0, 0, 1, 1], [], []>} : vector<17x128xbf16>, vector<128x32xbf16>, vector<17x32xf32> -> vector<17x32xf32>
    %226 = vector.shape_cast %221 : vector<17x32xf32> to vector<1x17x32xf32>
    %227 = vector.shape_cast %225 : vector<17x32xf32> to vector<1x17x32xf32>
    %228 = tpu.concatenate %226, %227 in 0 : vector<1x17x32xf32>, vector<1x17x32xf32> -> vector<2x17x32xf32>
    %229 = vector.shape_cast %30 : vector<1x32xf32> to vector<1x1x32xf32>
    %230 = vector.broadcast %229 : vector<1x1x32xf32> to vector<2x17x32xf32>
    %231 = arith.addf %228, %230 : vector<2x17x32xf32>
    %c1_73 = arith.constant 1 : index
    %c0_74 = arith.constant 0 : index
    %c0_75 = arith.constant 0 : index
    %232 = vector.load %arg4[%c1_73, %c0_74, %c0_75] : memref<2x32x256xbf16, #tpu.memory_space<vmem>>, vector<1x32x96xbf16>
    %233 = vector.shape_cast %232 : vector<1x32x96xbf16> to vector<32x96xbf16>
    %c1_76 = arith.constant 1 : index
    %c0_77 = arith.constant 0 : index
    %c96_78 = arith.constant 96 : index
    %234 = vector.load %arg4[%c1_76, %c0_77, %c96_78] : memref<2x32x256xbf16, #tpu.memory_space<vmem>>, vector<1x32x32xbf16>
    %235 = vector.shape_cast %234 : vector<1x32x32xbf16> to vector<32x32xbf16>
    %c1_79 = arith.constant 1 : index
    %c0_80 = arith.constant 0 : index
    %c128_81 = arith.constant 128 : index
    %236 = vector.load %arg4[%c1_79, %c0_80, %c128_81] : memref<2x32x256xbf16, #tpu.memory_space<vmem>>, vector<1x32x128xbf16>
    %237 = vector.shape_cast %236 : vector<1x32x128xbf16> to vector<32x128xbf16>
    %c1_82 = arith.constant 1 : index
    %c0_83 = arith.constant 0 : index
    %c0_84 = arith.constant 0 : index
    %238 = vector.load %arg5[%c1_82, %c0_83, %c0_84] : memref<2x128x32xbf16, #tpu.memory_space<vmem>>, vector<1x128x32xbf16>
    %239 = vector.shape_cast %238 : vector<1x128x32xbf16> to vector<128x32xbf16>
    %c1_85 = arith.constant 1 : index
    %c0_86 = arith.constant 0 : index
    %c0_87 = arith.constant 0 : index
    %240 = vector.load %arg2[%c1_85, %c0_86, %c0_87] : memref<2x6x32xf32, #tpu.memory_space<vmem>>, vector<1x1x32xf32>
    %241 = vector.shape_cast %240 : vector<1x1x32xf32> to vector<1x32xf32>
    %c1_88 = arith.constant 1 : index
    %c1_89 = arith.constant 1 : index
    %c0_90 = arith.constant 0 : index
    %242 = vector.load %arg2[%c1_88, %c1_89, %c0_90] : memref<2x6x32xf32, #tpu.memory_space<vmem>>, vector<1x1x32xf32>
    %243 = vector.shape_cast %242 : vector<1x1x32xf32> to vector<1x32xf32>
    %c1_91 = arith.constant 1 : index
    %c2_92 = arith.constant 2 : index
    %c0_93 = arith.constant 0 : index
    %244 = vector.load %arg2[%c1_91, %c2_92, %c0_93] : memref<2x6x32xf32, #tpu.memory_space<vmem>>, vector<1x1x32xf32>
    %245 = vector.shape_cast %244 : vector<1x1x32xf32> to vector<1x32xf32>
    %c1_94 = arith.constant 1 : index
    %c3_95 = arith.constant 3 : index
    %c0_96 = arith.constant 0 : index
    %246 = vector.load %arg2[%c1_94, %c3_95, %c0_96] : memref<2x6x32xf32, #tpu.memory_space<vmem>>, vector<1x1x32xf32>
    %247 = vector.shape_cast %246 : vector<1x1x32xf32> to vector<1x32xf32>
    %c1_97 = arith.constant 1 : index
    %c4_98 = arith.constant 4 : index
    %c0_99 = arith.constant 0 : index
    %248 = vector.load %arg2[%c1_97, %c4_98, %c0_99] : memref<2x6x32xf32, #tpu.memory_space<vmem>>, vector<1x1x32xf32>
    %249 = vector.shape_cast %248 : vector<1x1x32xf32> to vector<1x32xf32>
    %c1_100 = arith.constant 1 : index
    %c5_101 = arith.constant 5 : index
    %c0_102 = arith.constant 0 : index
    %250 = vector.load %arg2[%c1_100, %c5_101, %c0_102] : memref<2x6x32xf32, #tpu.memory_space<vmem>>, vector<1x1x32xf32>
    %251 = vector.shape_cast %250 : vector<1x1x32xf32> to vector<1x32xf32>
    %c1_103 = arith.constant 1 : index
    %c0_104 = arith.constant 0 : index
    %c0_105 = arith.constant 0 : index
    %252 = vector.load %arg3[%c1_103, %c0_104, %c0_105] : memref<2x1x128xf32, #tpu.memory_space<vmem>>, vector<1x1x128xf32>
    %253 = vector.shape_cast %252 : vector<1x1x128xf32> to vector<1x128xf32>
    %cst_106 = arith.constant dense<0.000000e+00> : vector<2x17xf32>
    %254 = vector.multi_reduction <add>, %231, %cst_106 [2] : vector<2x17x32xf32> to vector<2x17xf32>
    %255 = vector.shape_cast %254 : vector<2x17xf32> to vector<2x17x1xf32>
    %cst_107 = arith.constant 3.200000e+01 : f32
    %256 = vector.broadcast %cst_107 : f32 to vector<2x17x1xf32>
    %257 = arith.divf %255, %256 : vector<2x17x1xf32>
    %258 = arith.mulf %231, %231 : vector<2x17x32xf32>
    %cst_108 = arith.constant dense<0.000000e+00> : vector<2x17xf32>
    %259 = vector.multi_reduction <add>, %258, %cst_108 [2] : vector<2x17x32xf32> to vector<2x17xf32>
    %260 = vector.shape_cast %259 : vector<2x17xf32> to vector<2x17x1xf32>
    %cst_109 = arith.constant 3.200000e+01 : f32
    %261 = vector.broadcast %cst_109 : f32 to vector<2x17x1xf32>
    %262 = arith.divf %260, %261 : vector<2x17x1xf32>
    %263 = arith.mulf %257, %257 : vector<2x17x1xf32>
    %264 = arith.subf %262, %263 : vector<2x17x1xf32>
    %265 = vector.broadcast %257 : vector<2x17x1xf32> to vector<2x17x32xf32>
    %266 = arith.subf %231, %265 : vector<2x17x32xf32>
    %cst_110 = arith.constant 9.99999974E-6 : f32
    %267 = vector.broadcast %cst_110 : f32 to vector<2x17x1xf32>
    %268 = arith.addf %264, %267 : vector<2x17x1xf32>
    %269 = math.rsqrt %268 : vector<2x17x1xf32>
    %270 = vector.broadcast %269 : vector<2x17x1xf32> to vector<2x17x32xf32>
    %271 = arith.mulf %266, %270 : vector<2x17x32xf32>
    %272 = vector.shape_cast %241 : vector<1x32xf32> to vector<1x1x32xf32>
    %273 = vector.broadcast %272 : vector<1x1x32xf32> to vector<2x17x32xf32>
    %274 = arith.mulf %271, %273 : vector<2x17x32xf32>
    %275 = vector.shape_cast %243 : vector<1x32xf32> to vector<1x1x32xf32>
    %276 = vector.broadcast %275 : vector<1x1x32xf32> to vector<2x17x32xf32>
    %277 = arith.addf %274, %276 : vector<2x17x32xf32>
    %278 = vector.extract_strided_slice %277 {offsets = [0, 0, 0], sizes = [1, 17, 32], strides = [1, 1, 1]} : vector<2x17x32xf32> to vector<1x17x32xf32>
    %279 = vector.shape_cast %278 : vector<1x17x32xf32> to vector<17x32xf32>
    %280 = arith.truncf %279 : vector<17x32xf32> to vector<17x32xbf16>
    %cst_111 = arith.constant dense<0.000000e+00> : vector<17x96xf32>
    %281 = tpu.matmul %280, %233, %cst_111 {dimension_numbers = #tpu.dot_dimension_numbers<[1], [0], [0], [1], [0, 0, 1, 1], [], []>} : vector<17x32xbf16>, vector<32x96xbf16>, vector<17x96xf32> -> vector<17x96xf32>
    %282 = vector.extract_strided_slice %277 {offsets = [1, 0, 0], sizes = [1, 17, 32], strides = [1, 1, 1]} : vector<2x17x32xf32> to vector<1x17x32xf32>
    %283 = vector.shape_cast %282 : vector<1x17x32xf32> to vector<17x32xf32>
    %284 = arith.truncf %283 : vector<17x32xf32> to vector<17x32xbf16>
    %cst_112 = arith.constant dense<0.000000e+00> : vector<17x96xf32>
    %285 = tpu.matmul %284, %233, %cst_112 {dimension_numbers = #tpu.dot_dimension_numbers<[1], [0], [0], [1], [0, 0, 1, 1], [], []>} : vector<17x32xbf16>, vector<32x96xbf16>, vector<17x96xf32> -> vector<17x96xf32>
    %286 = vector.shape_cast %281 : vector<17x96xf32> to vector<1x17x96xf32>
    %287 = vector.shape_cast %285 : vector<17x96xf32> to vector<1x17x96xf32>
    %288 = tpu.concatenate %286, %287 in 0 : vector<1x17x96xf32>, vector<1x17x96xf32> -> vector<2x17x96xf32>
    %289 = vector.extract_strided_slice %288 {offsets = [0, 0, 0], sizes = [2, 17, 8], strides = [1, 1, 1]} : vector<2x17x96xf32> to vector<2x17x8xf32>
    %290 = vector.extract_strided_slice %288 {offsets = [0, 0, 32], sizes = [2, 17, 8], strides = [1, 1, 1]} : vector<2x17x96xf32> to vector<2x17x8xf32>
    %291 = vector.extract_strided_slice %288 {offsets = [0, 0, 64], sizes = [2, 17, 8], strides = [1, 1, 1]} : vector<2x17x96xf32> to vector<2x17x8xf32>
    %292 = arith.truncf %289 : vector<2x17x8xf32> to vector<2x17x8xbf16>
    %293 = arith.truncf %290 : vector<2x17x8xf32> to vector<2x17x8xbf16>
    "tpu.trace_start"() <{level = 10 : i32, message = "bnd,bmd->bnm"}> : () -> ()
    %cst_113 = arith.constant dense<0.000000e+00> : vector<2x17x17xf32>
    %294 = tpu.matmul %292, %293, %cst_113 {dimension_numbers = #tpu.dot_dimension_numbers<[2], [2], [1], [1], [0, 0, 0, 1, 1, 1], [0], [0]>} : vector<2x17x8xbf16>, vector<2x17x8xbf16>, vector<2x17x17xf32> -> vector<2x17x17xf32>
    "tpu.trace_stop"() : () -> ()
    %cst_114 = arith.constant 0.353553385 : f32
    %295 = vector.broadcast %cst_114 : f32 to vector<2x17x17xf32>
    %296 = arith.mulf %294, %295 : vector<2x17x17xf32>
    %cst_115 = arith.constant dense<0xFF800000> : vector<2x17xf32>
    %297 = vector.multi_reduction <maximumf>, %296, %cst_115 [2] : vector<2x17x17xf32> to vector<2x17xf32>
    %298 = vector.shape_cast %297 : vector<2x17xf32> to vector<2x17x1xf32>
    %299 = vector.broadcast %298 : vector<2x17x1xf32> to vector<2x17x17xf32>
    %300 = arith.subf %296, %299 : vector<2x17x17xf32>
    %301 = math.exp %300 : vector<2x17x17xf32>
    %cst_116 = arith.constant dense<0.000000e+00> : vector<2x17xf32>
    %302 = vector.multi_reduction <add>, %301, %cst_116 [2] : vector<2x17x17xf32> to vector<2x17xf32>
    %303 = vector.shape_cast %302 : vector<2x17xf32> to vector<2x17x1xf32>
    %304 = tpu.reciprocal %303 {approx = true} : vector<2x17x1xf32> -> vector<2x17x1xf32>
    %305 = vector.broadcast %304 : vector<2x17x1xf32> to vector<2x17x17xf32>
    %306 = arith.mulf %301, %305 : vector<2x17x17xf32>
    %307 = arith.truncf %306 : vector<2x17x17xf32> to vector<2x17x17xbf16>
    %308 = arith.truncf %291 : vector<2x17x8xf32> to vector<2x17x8xbf16>
    "tpu.trace_start"() <{level = 10 : i32, message = "bnm,bmd->bnd"}> : () -> ()
    %cst_117 = arith.constant dense<0.000000e+00> : vector<2x17x8xf32>
    %309 = tpu.matmul %307, %308, %cst_117 {dimension_numbers = #tpu.dot_dimension_numbers<[2], [1], [1], [2], [0, 0, 0, 1, 1, 2], [0], [0]>} : vector<2x17x17xbf16>, vector<2x17x8xbf16>, vector<2x17x8xf32> -> vector<2x17x8xf32>
    "tpu.trace_stop"() : () -> ()
    %310 = vector.extract_strided_slice %288 {offsets = [0, 0, 8], sizes = [2, 17, 8], strides = [1, 1, 1]} : vector<2x17x96xf32> to vector<2x17x8xf32>
    %311 = vector.extract_strided_slice %288 {offsets = [0, 0, 40], sizes = [2, 17, 8], strides = [1, 1, 1]} : vector<2x17x96xf32> to vector<2x17x8xf32>
    %312 = vector.extract_strided_slice %288 {offsets = [0, 0, 72], sizes = [2, 17, 8], strides = [1, 1, 1]} : vector<2x17x96xf32> to vector<2x17x8xf32>
    %313 = arith.truncf %310 : vector<2x17x8xf32> to vector<2x17x8xbf16>
    %314 = arith.truncf %311 : vector<2x17x8xf32> to vector<2x17x8xbf16>
    "tpu.trace_start"() <{level = 10 : i32, message = "bnd,bmd->bnm"}> : () -> ()
    %cst_118 = arith.constant dense<0.000000e+00> : vector<2x17x17xf32>
    %315 = tpu.matmul %313, %314, %cst_118 {dimension_numbers = #tpu.dot_dimension_numbers<[2], [2], [1], [1], [0, 0, 0, 1, 1, 1], [0], [0]>} : vector<2x17x8xbf16>, vector<2x17x8xbf16>, vector<2x17x17xf32> -> vector<2x17x17xf32>
    "tpu.trace_stop"() : () -> ()
    %cst_119 = arith.constant 0.353553385 : f32
    %316 = vector.broadcast %cst_119 : f32 to vector<2x17x17xf32>
    %317 = arith.mulf %315, %316 : vector<2x17x17xf32>
    %cst_120 = arith.constant dense<0xFF800000> : vector<2x17xf32>
    %318 = vector.multi_reduction <maximumf>, %317, %cst_120 [2] : vector<2x17x17xf32> to vector<2x17xf32>
    %319 = vector.shape_cast %318 : vector<2x17xf32> to vector<2x17x1xf32>
    %320 = vector.broadcast %319 : vector<2x17x1xf32> to vector<2x17x17xf32>
    %321 = arith.subf %317, %320 : vector<2x17x17xf32>
    %322 = math.exp %321 : vector<2x17x17xf32>
    %cst_121 = arith.constant dense<0.000000e+00> : vector<2x17xf32>
    %323 = vector.multi_reduction <add>, %322, %cst_121 [2] : vector<2x17x17xf32> to vector<2x17xf32>
    %324 = vector.shape_cast %323 : vector<2x17xf32> to vector<2x17x1xf32>
    %325 = tpu.reciprocal %324 {approx = true} : vector<2x17x1xf32> -> vector<2x17x1xf32>
    %326 = vector.broadcast %325 : vector<2x17x1xf32> to vector<2x17x17xf32>
    %327 = arith.mulf %322, %326 : vector<2x17x17xf32>
    %328 = arith.truncf %327 : vector<2x17x17xf32> to vector<2x17x17xbf16>
    %329 = arith.truncf %312 : vector<2x17x8xf32> to vector<2x17x8xbf16>
    "tpu.trace_start"() <{level = 10 : i32, message = "bnm,bmd->bnd"}> : () -> ()
    %cst_122 = arith.constant dense<0.000000e+00> : vector<2x17x8xf32>
    %330 = tpu.matmul %328, %329, %cst_122 {dimension_numbers = #tpu.dot_dimension_numbers<[2], [1], [1], [2], [0, 0, 0, 1, 1, 2], [0], [0]>} : vector<2x17x17xbf16>, vector<2x17x8xbf16>, vector<2x17x8xf32> -> vector<2x17x8xf32>
    "tpu.trace_stop"() : () -> ()
    %331 = vector.extract_strided_slice %288 {offsets = [0, 0, 16], sizes = [2, 17, 8], strides = [1, 1, 1]} : vector<2x17x96xf32> to vector<2x17x8xf32>
    %332 = vector.extract_strided_slice %288 {offsets = [0, 0, 48], sizes = [2, 17, 8], strides = [1, 1, 1]} : vector<2x17x96xf32> to vector<2x17x8xf32>
    %333 = vector.extract_strided_slice %288 {offsets = [0, 0, 80], sizes = [2, 17, 8], strides = [1, 1, 1]} : vector<2x17x96xf32> to vector<2x17x8xf32>
    %334 = arith.truncf %331 : vector<2x17x8xf32> to vector<2x17x8xbf16>
    %335 = arith.truncf %332 : vector<2x17x8xf32> to vector<2x17x8xbf16>
    "tpu.trace_start"() <{level = 10 : i32, message = "bnd,bmd->bnm"}> : () -> ()
    %cst_123 = arith.constant dense<0.000000e+00> : vector<2x17x17xf32>
    %336 = tpu.matmul %334, %335, %cst_123 {dimension_numbers = #tpu.dot_dimension_numbers<[2], [2], [1], [1], [0, 0, 0, 1, 1, 1], [0], [0]>} : vector<2x17x8xbf16>, vector<2x17x8xbf16>, vector<2x17x17xf32> -> vector<2x17x17xf32>
    "tpu.trace_stop"() : () -> ()
    %cst_124 = arith.constant 0.353553385 : f32
    %337 = vector.broadcast %cst_124 : f32 to vector<2x17x17xf32>
    %338 = arith.mulf %336, %337 : vector<2x17x17xf32>
    %cst_125 = arith.constant dense<0xFF800000> : vector<2x17xf32>
    %339 = vector.multi_reduction <maximumf>, %338, %cst_125 [2] : vector<2x17x17xf32> to vector<2x17xf32>
    %340 = vector.shape_cast %339 : vector<2x17xf32> to vector<2x17x1xf32>
    %341 = vector.broadcast %340 : vector<2x17x1xf32> to vector<2x17x17xf32>
    %342 = arith.subf %338, %341 : vector<2x17x17xf32>
    %343 = math.exp %342 : vector<2x17x17xf32>
    %cst_126 = arith.constant dense<0.000000e+00> : vector<2x17xf32>
    %344 = vector.multi_reduction <add>, %343, %cst_126 [2] : vector<2x17x17xf32> to vector<2x17xf32>
    %345 = vector.shape_cast %344 : vector<2x17xf32> to vector<2x17x1xf32>
    %346 = tpu.reciprocal %345 {approx = true} : vector<2x17x1xf32> -> vector<2x17x1xf32>
    %347 = vector.broadcast %346 : vector<2x17x1xf32> to vector<2x17x17xf32>
    %348 = arith.mulf %343, %347 : vector<2x17x17xf32>
    %349 = arith.truncf %348 : vector<2x17x17xf32> to vector<2x17x17xbf16>
    %350 = arith.truncf %333 : vector<2x17x8xf32> to vector<2x17x8xbf16>
    "tpu.trace_start"() <{level = 10 : i32, message = "bnm,bmd->bnd"}> : () -> ()
    %cst_127 = arith.constant dense<0.000000e+00> : vector<2x17x8xf32>
    %351 = tpu.matmul %349, %350, %cst_127 {dimension_numbers = #tpu.dot_dimension_numbers<[2], [1], [1], [2], [0, 0, 0, 1, 1, 2], [0], [0]>} : vector<2x17x17xbf16>, vector<2x17x8xbf16>, vector<2x17x8xf32> -> vector<2x17x8xf32>
    "tpu.trace_stop"() : () -> ()
    %352 = vector.extract_strided_slice %288 {offsets = [0, 0, 24], sizes = [2, 17, 8], strides = [1, 1, 1]} : vector<2x17x96xf32> to vector<2x17x8xf32>
    %353 = vector.extract_strided_slice %288 {offsets = [0, 0, 56], sizes = [2, 17, 8], strides = [1, 1, 1]} : vector<2x17x96xf32> to vector<2x17x8xf32>
    %354 = vector.extract_strided_slice %288 {offsets = [0, 0, 88], sizes = [2, 17, 8], strides = [1, 1, 1]} : vector<2x17x96xf32> to vector<2x17x8xf32>
    %355 = arith.truncf %352 : vector<2x17x8xf32> to vector<2x17x8xbf16>
    %356 = arith.truncf %353 : vector<2x17x8xf32> to vector<2x17x8xbf16>
    "tpu.trace_start"() <{level = 10 : i32, message = "bnd,bmd->bnm"}> : () -> ()
    %cst_128 = arith.constant dense<0.000000e+00> : vector<2x17x17xf32>
    %357 = tpu.matmul %355, %356, %cst_128 {dimension_numbers = #tpu.dot_dimension_numbers<[2], [2], [1], [1], [0, 0, 0, 1, 1, 1], [0], [0]>} : vector<2x17x8xbf16>, vector<2x17x8xbf16>, vector<2x17x17xf32> -> vector<2x17x17xf32>
    "tpu.trace_stop"() : () -> ()
    %cst_129 = arith.constant 0.353553385 : f32
    %358 = vector.broadcast %cst_129 : f32 to vector<2x17x17xf32>
    %359 = arith.mulf %357, %358 : vector<2x17x17xf32>
    %cst_130 = arith.constant dense<0xFF800000> : vector<2x17xf32>
    %360 = vector.multi_reduction <maximumf>, %359, %cst_130 [2] : vector<2x17x17xf32> to vector<2x17xf32>
    %361 = vector.shape_cast %360 : vector<2x17xf32> to vector<2x17x1xf32>
    %362 = vector.broadcast %361 : vector<2x17x1xf32> to vector<2x17x17xf32>
    %363 = arith.subf %359, %362 : vector<2x17x17xf32>
    %364 = math.exp %363 : vector<2x17x17xf32>
    %cst_131 = arith.constant dense<0.000000e+00> : vector<2x17xf32>
    %365 = vector.multi_reduction <add>, %364, %cst_131 [2] : vector<2x17x17xf32> to vector<2x17xf32>
    %366 = vector.shape_cast %365 : vector<2x17xf32> to vector<2x17x1xf32>
    %367 = tpu.reciprocal %366 {approx = true} : vector<2x17x1xf32> -> vector<2x17x1xf32>
    %368 = vector.broadcast %367 : vector<2x17x1xf32> to vector<2x17x17xf32>
    %369 = arith.mulf %364, %368 : vector<2x17x17xf32>
    %370 = arith.truncf %369 : vector<2x17x17xf32> to vector<2x17x17xbf16>
    %371 = arith.truncf %354 : vector<2x17x8xf32> to vector<2x17x8xbf16>
    "tpu.trace_start"() <{level = 10 : i32, message = "bnm,bmd->bnd"}> : () -> ()
    %cst_132 = arith.constant dense<0.000000e+00> : vector<2x17x8xf32>
    %372 = tpu.matmul %370, %371, %cst_132 {dimension_numbers = #tpu.dot_dimension_numbers<[2], [1], [1], [2], [0, 0, 0, 1, 1, 2], [0], [0]>} : vector<2x17x17xbf16>, vector<2x17x8xbf16>, vector<2x17x8xf32> -> vector<2x17x8xf32>
    "tpu.trace_stop"() : () -> ()
    %373 = tpu.concatenate %309, %330, %351, %372 in 2 : vector<2x17x8xf32>, vector<2x17x8xf32>, vector<2x17x8xf32>, vector<2x17x8xf32> -> vector<2x17x32xf32>
    %374 = vector.extract_strided_slice %373 {offsets = [0, 0, 0], sizes = [1, 17, 32], strides = [1, 1, 1]} : vector<2x17x32xf32> to vector<1x17x32xf32>
    %375 = vector.shape_cast %374 : vector<1x17x32xf32> to vector<17x32xf32>
    %376 = arith.truncf %375 : vector<17x32xf32> to vector<17x32xbf16>
    %cst_133 = arith.constant dense<0.000000e+00> : vector<17x32xf32>
    %377 = tpu.matmul %376, %235, %cst_133 {dimension_numbers = #tpu.dot_dimension_numbers<[1], [0], [0], [1], [0, 0, 1, 1], [], []>} : vector<17x32xbf16>, vector<32x32xbf16>, vector<17x32xf32> -> vector<17x32xf32>
    %378 = vector.extract_strided_slice %373 {offsets = [1, 0, 0], sizes = [1, 17, 32], strides = [1, 1, 1]} : vector<2x17x32xf32> to vector<1x17x32xf32>
    %379 = vector.shape_cast %378 : vector<1x17x32xf32> to vector<17x32xf32>
    %380 = arith.truncf %379 : vector<17x32xf32> to vector<17x32xbf16>
    %cst_134 = arith.constant dense<0.000000e+00> : vector<17x32xf32>
    %381 = tpu.matmul %380, %235, %cst_134 {dimension_numbers = #tpu.dot_dimension_numbers<[1], [0], [0], [1], [0, 0, 1, 1], [], []>} : vector<17x32xbf16>, vector<32x32xbf16>, vector<17x32xf32> -> vector<17x32xf32>
    %382 = vector.shape_cast %377 : vector<17x32xf32> to vector<1x17x32xf32>
    %383 = vector.shape_cast %381 : vector<17x32xf32> to vector<1x17x32xf32>
    %384 = tpu.concatenate %382, %383 in 0 : vector<1x17x32xf32>, vector<1x17x32xf32> -> vector<2x17x32xf32>
    %385 = vector.shape_cast %245 : vector<1x32xf32> to vector<1x1x32xf32>
    %386 = vector.broadcast %385 : vector<1x1x32xf32> to vector<2x17x32xf32>
    %387 = arith.addf %384, %386 : vector<2x17x32xf32>
    %cst_135 = arith.constant dense<0.000000e+00> : vector<2x17xf32>
    %388 = vector.multi_reduction <add>, %387, %cst_135 [2] : vector<2x17x32xf32> to vector<2x17xf32>
    %389 = vector.shape_cast %388 : vector<2x17xf32> to vector<2x17x1xf32>
    %cst_136 = arith.constant 3.200000e+01 : f32
    %390 = vector.broadcast %cst_136 : f32 to vector<2x17x1xf32>
    %391 = arith.divf %389, %390 : vector<2x17x1xf32>
    %392 = arith.mulf %387, %387 : vector<2x17x32xf32>
    %cst_137 = arith.constant dense<0.000000e+00> : vector<2x17xf32>
    %393 = vector.multi_reduction <add>, %392, %cst_137 [2] : vector<2x17x32xf32> to vector<2x17xf32>
    %394 = vector.shape_cast %393 : vector<2x17xf32> to vector<2x17x1xf32>
    %cst_138 = arith.constant 3.200000e+01 : f32
    %395 = vector.broadcast %cst_138 : f32 to vector<2x17x1xf32>
    %396 = arith.divf %394, %395 : vector<2x17x1xf32>
    %397 = arith.mulf %391, %391 : vector<2x17x1xf32>
    %398 = arith.subf %396, %397 : vector<2x17x1xf32>
    %399 = vector.broadcast %391 : vector<2x17x1xf32> to vector<2x17x32xf32>
    %400 = arith.subf %387, %399 : vector<2x17x32xf32>
    %cst_139 = arith.constant 9.99999974E-6 : f32
    %401 = vector.broadcast %cst_139 : f32 to vector<2x17x1xf32>
    %402 = arith.addf %398, %401 : vector<2x17x1xf32>
    %403 = math.rsqrt %402 : vector<2x17x1xf32>
    %404 = vector.broadcast %403 : vector<2x17x1xf32> to vector<2x17x32xf32>
    %405 = arith.mulf %400, %404 : vector<2x17x32xf32>
    %406 = vector.shape_cast %247 : vector<1x32xf32> to vector<1x1x32xf32>
    %407 = vector.broadcast %406 : vector<1x1x32xf32> to vector<2x17x32xf32>
    %408 = arith.mulf %405, %407 : vector<2x17x32xf32>
    %409 = vector.shape_cast %249 : vector<1x32xf32> to vector<1x1x32xf32>
    %410 = vector.broadcast %409 : vector<1x1x32xf32> to vector<2x17x32xf32>
    %411 = arith.addf %408, %410 : vector<2x17x32xf32>
    %412 = vector.extract_strided_slice %411 {offsets = [0, 0, 0], sizes = [1, 17, 32], strides = [1, 1, 1]} : vector<2x17x32xf32> to vector<1x17x32xf32>
    %413 = vector.shape_cast %412 : vector<1x17x32xf32> to vector<17x32xf32>
    %414 = arith.truncf %413 : vector<17x32xf32> to vector<17x32xbf16>
    %cst_140 = arith.constant dense<0.000000e+00> : vector<17x128xf32>
    %415 = tpu.matmul %414, %237, %cst_140 {dimension_numbers = #tpu.dot_dimension_numbers<[1], [0], [0], [1], [0, 0, 1, 1], [], []>} : vector<17x32xbf16>, vector<32x128xbf16>, vector<17x128xf32> -> vector<17x128xf32>
    %416 = vector.extract_strided_slice %411 {offsets = [1, 0, 0], sizes = [1, 17, 32], strides = [1, 1, 1]} : vector<2x17x32xf32> to vector<1x17x32xf32>
    %417 = vector.shape_cast %416 : vector<1x17x32xf32> to vector<17x32xf32>
    %418 = arith.truncf %417 : vector<17x32xf32> to vector<17x32xbf16>
    %cst_141 = arith.constant dense<0.000000e+00> : vector<17x128xf32>
    %419 = tpu.matmul %418, %237, %cst_141 {dimension_numbers = #tpu.dot_dimension_numbers<[1], [0], [0], [1], [0, 0, 1, 1], [], []>} : vector<17x32xbf16>, vector<32x128xbf16>, vector<17x128xf32> -> vector<17x128xf32>
    %420 = vector.shape_cast %415 : vector<17x128xf32> to vector<1x17x128xf32>
    %421 = vector.shape_cast %419 : vector<17x128xf32> to vector<1x17x128xf32>
    %422 = tpu.concatenate %420, %421 in 0 : vector<1x17x128xf32>, vector<1x17x128xf32> -> vector<2x17x128xf32>
    %423 = vector.shape_cast %253 : vector<1x128xf32> to vector<1x1x128xf32>
    %424 = vector.broadcast %423 : vector<1x1x128xf32> to vector<2x17x128xf32>
    %425 = arith.addf %422, %424 : vector<2x17x128xf32>
    %426 = arith.mulf %425, %425 : vector<2x17x128xf32>
    %427 = arith.mulf %425, %426 : vector<2x17x128xf32>
    %cst_142 = arith.constant 4.471500e-02 : f32
    %428 = vector.broadcast %cst_142 : f32 to vector<2x17x128xf32>
    %429 = arith.mulf %428, %427 : vector<2x17x128xf32>
    %430 = arith.addf %425, %429 : vector<2x17x128xf32>
    %cst_143 = arith.constant 0.797884583 : f32
    %431 = vector.broadcast %cst_143 : f32 to vector<2x17x128xf32>
    %432 = arith.mulf %431, %430 : vector<2x17x128xf32>
    %433 = math.tanh %432 : vector<2x17x128xf32>
    %cst_144 = arith.constant 1.000000e+00 : f32
    %434 = vector.broadcast %cst_144 : f32 to vector<2x17x128xf32>
    %435 = arith.addf %434, %433 : vector<2x17x128xf32>
    %cst_145 = arith.constant 5.000000e-01 : f32
    %436 = vector.broadcast %cst_145 : f32 to vector<2x17x128xf32>
    %437 = arith.mulf %436, %435 : vector<2x17x128xf32>
    %438 = arith.mulf %425, %437 : vector<2x17x128xf32>
    %439 = vector.extract_strided_slice %438 {offsets = [0, 0, 0], sizes = [1, 17, 128], strides = [1, 1, 1]} : vector<2x17x128xf32> to vector<1x17x128xf32>
    %440 = vector.shape_cast %439 : vector<1x17x128xf32> to vector<17x128xf32>
    %441 = arith.truncf %440 : vector<17x128xf32> to vector<17x128xbf16>
    %cst_146 = arith.constant dense<0.000000e+00> : vector<17x32xf32>
    %442 = tpu.matmul %441, %239, %cst_146 {dimension_numbers = #tpu.dot_dimension_numbers<[1], [0], [0], [1], [0, 0, 1, 1], [], []>} : vector<17x128xbf16>, vector<128x32xbf16>, vector<17x32xf32> -> vector<17x32xf32>
    %443 = vector.extract_strided_slice %438 {offsets = [1, 0, 0], sizes = [1, 17, 128], strides = [1, 1, 1]} : vector<2x17x128xf32> to vector<1x17x128xf32>
    %444 = vector.shape_cast %443 : vector<1x17x128xf32> to vector<17x128xf32>
    %445 = arith.truncf %444 : vector<17x128xf32> to vector<17x128xbf16>
    %cst_147 = arith.constant dense<0.000000e+00> : vector<17x32xf32>
    %446 = tpu.matmul %445, %239, %cst_147 {dimension_numbers = #tpu.dot_dimension_numbers<[1], [0], [0], [1], [0, 0, 1, 1], [], []>} : vector<17x128xbf16>, vector<128x32xbf16>, vector<17x32xf32> -> vector<17x32xf32>
    %447 = vector.shape_cast %442 : vector<17x32xf32> to vector<1x17x32xf32>
    %448 = vector.shape_cast %446 : vector<17x32xf32> to vector<1x17x32xf32>
    %449 = tpu.concatenate %447, %448 in 0 : vector<1x17x32xf32>, vector<1x17x32xf32> -> vector<2x17x32xf32>
    %450 = vector.shape_cast %251 : vector<1x32xf32> to vector<1x1x32xf32>
    %451 = vector.broadcast %450 : vector<1x1x32xf32> to vector<2x17x32xf32>
    %452 = arith.addf %449, %451 : vector<2x17x32xf32>
    %453 = vector.extract_strided_slice %452 {offsets = [0, 16, 0], sizes = [2, 1, 32], strides = [1, 1, 1]} : vector<2x17x32xf32> to vector<2x1x32xf32>
    %c0_148 = arith.constant 0 : index
    %c0_149 = arith.constant 0 : index
    %454 = vector.load %arg6[%c0_148, %c0_149] : memref<33x10xf32, #tpu.memory_space<vmem>>, vector<32x10xf32>
    %c32 = arith.constant 32 : index
    %c0_150 = arith.constant 0 : index
    %455 = vector.load %arg6[%c32, %c0_150] : memref<33x10xf32, #tpu.memory_space<vmem>>, vector<1x10xf32>
    %456 = arith.truncf %454 : vector<32x10xf32> to vector<32x10xbf16>
    %457 = vector.extract_strided_slice %453 {offsets = [0, 0, 0], sizes = [1, 1, 32], strides = [1, 1, 1]} : vector<2x1x32xf32> to vector<1x1x32xf32>
    %458 = vector.shape_cast %457 : vector<1x1x32xf32> to vector<1x32xf32>
    %459 = arith.truncf %458 : vector<1x32xf32> to vector<1x32xbf16>
    %cst_151 = arith.constant dense<0.000000e+00> : vector<1x10xf32>
    %460 = tpu.matmul %459, %456, %cst_151 {dimension_numbers = #tpu.dot_dimension_numbers<[1], [0], [0], [1], [0, 0, 1, 1], [], []>} : vector<1x32xbf16>, vector<32x10xbf16>, vector<1x10xf32> -> vector<1x10xf32>
    %461 = vector.extract_strided_slice %453 {offsets = [1, 0, 0], sizes = [1, 1, 32], strides = [1, 1, 1]} : vector<2x1x32xf32> to vector<1x1x32xf32>
    %462 = vector.shape_cast %461 : vector<1x1x32xf32> to vector<1x32xf32>
    %463 = arith.truncf %462 : vector<1x32xf32> to vector<1x32xbf16>
    %cst_152 = arith.constant dense<0.000000e+00> : vector<1x10xf32>
    %464 = tpu.matmul %463, %456, %cst_152 {dimension_numbers = #tpu.dot_dimension_numbers<[1], [0], [0], [1], [0, 0, 1, 1], [], []>} : vector<1x32xbf16>, vector<32x10xbf16>, vector<1x10xf32> -> vector<1x10xf32>
    %465 = vector.shape_cast %460 : vector<1x10xf32> to vector<1x1x10xf32>
    %466 = vector.shape_cast %464 : vector<1x10xf32> to vector<1x1x10xf32>
    %467 = tpu.concatenate %465, %466 in 0 : vector<1x1x10xf32>, vector<1x1x10xf32> -> vector<2x1x10xf32>
    %468 = vector.shape_cast %455 : vector<1x10xf32> to vector<1x1x10xf32>
    %469 = vector.broadcast %468 : vector<1x1x10xf32> to vector<2x1x10xf32>
    %470 = arith.addf %467, %469 : vector<2x1x10xf32>
    %c0_153 = arith.constant 0 : index
    %c0_154 = arith.constant 0 : index
    %c0_155 = arith.constant 0 : index
    %471 = vector.load %arg7[%c0_153, %c0_154, %c0_155] : memref<2x1x10xf32, #tpu.memory_space<vmem>>, vector<2x1x10xf32>
    tpu.vector_store %arg7[%c0_153, %c0_154, %c0_155], %470 {strides = array<i32>} : memref<2x1x10xf32, #tpu.memory_space<vmem>>, vector<2x1x10xf32>,
    return
  }
}

</mosaic_0001>

<llo_original>
// kernel: vit_forward.1
$region0: #{vit_forward.1}
  #allocation0 [shape = 'u32[]', space=smem, size = 0x4, offset = 0x4, fixed_abs, tag = 'smem constant byte address 0x4 - core index']
  #allocation1 [shape = 'u32[144,128]{1,0:T(1,128)}', space=vmem, size = 0x12000, scoped, tag = 'internal scratch']
  %s0 = inlined_call_operand.vmem [shape: f32[2,16,32], index: 0, kind: input, shape index: {}]
  %s1 = inlined_call_operand.vmem [shape: f32[18,32], index: 1, kind: input, shape index: {}]
  %s2 = inlined_call_operand.vmem [shape: f32[2,6,32], index: 2, kind: input, shape index: {}]
  %s3 = inlined_call_operand.vmem [shape: f32[2,1,128], index: 3, kind: input, shape index: {}]
  %s4 = inlined_call_operand.vmem [shape: bf16[2,32,256], index: 4, kind: input, shape index: {}]
  %s5 = inlined_call_operand.vmem [shape: bf16[2,128,32], index: 5, kind: input, shape index: {}]
  %s6 = inlined_call_operand.vmem [shape: f32[33,10], index: 6, kind: input, shape index: {}]
  %s7 = inlined_call_operand.hbm [shape: f32[2,1,10], index: 7, kind: output, shape index: {}]
  %s8 = sld [smem:[#allocation0]]
  $region38: #{vit_forward.1} parent=0
    _
  %s10 = ssub.s32 1, %s8
  %s11 = scalar_select 0, %s10, %s8
  $region1: #{vit_forward.1} parent=0
    #allocation2 [shape = 'u8[1024]{0}', space=vmem, size = 0x400, scoped, tag = 'output window, operand 0, single buffered']
    #allocation3 [shape = 's32[1]{0}', space=sflag, size = 0x4, scoped, tag = 'scoped memory for vit_forward.1']
    %12 = vsyncpa [#allocation3], 0
    // Predicated region
    $region2: #{vit_forward.1} parent=1 // pred_check
      _
    $region3: #{vit_forward.1} parent=1 // pred_check_branch
      %14 = sbr.rel (0) target = $region5
    $region4: #{vit_forward.1} parent=1 // pred_region
      _
    $region5: #{vit_forward.1} parent=1 // pred_fallthru
      _
    // Predicated region
    $region6: #{vit_forward.1} parent=1 // pred_check
      _
    $region7: #{vit_forward.1} parent=1 // pred_check_branch
      %16 = sbr.rel (0) target = $region9
    $region8: #{vit_forward.1} parent=1 // pred_region
      _
    $region9: #{vit_forward.1} parent=1 // pred_fallthru
      _
    // Predicated region
    $region10: #{vit_forward.1} parent=1 // pred_check
      _
    $region11: #{vit_forward.1} parent=1 // pred_check_branch
      %18 = sbr.rel (0) target = $region13
    $region12: #{vit_forward.1} parent=1 // pred_region
      _
    $region13: #{vit_forward.1} parent=1 // pred_fallthru
      _
    // Predicated region
    $region14: #{vit_forward.1} parent=1 // pred_check
      _
    $region15: #{vit_forward.1} parent=1 // pred_check_branch
      %20 = sbr.rel (0) target = $region17
    $region16: #{vit_forward.1} parent=1 // pred_region
      _
    $region17: #{vit_forward.1} parent=1 // pred_fallthru
      _
    // Predicated region
    $region18: #{vit_forward.1} parent=1 // pred_check
      _
    $region19: #{vit_forward.1} parent=1 // pred_check_branch
      %22 = sbr.rel (0) target = $region21
    $region20: #{vit_forward.1} parent=1 // pred_region
      _
    $region21: #{vit_forward.1} parent=1 // pred_fallthru
      _
    // Predicated region
    $region22: #{vit_forward.1} parent=1 // pred_check
      _
    $region23: #{vit_forward.1} parent=1 // pred_check_branch
      %24 = sbr.rel (0) target = $region25
    $region24: #{vit_forward.1} parent=1 // pred_region
      _
    $region25: #{vit_forward.1} parent=1 // pred_fallthru
      _
    // Predicated region
    $region26: #{vit_forward.1} parent=1 // pred_check
      _
    $region27: #{vit_forward.1} parent=1 // pred_check_branch
      %26 = sbr.rel (0) target = $region29
    $region28: #{vit_forward.1} parent=1 // pred_region
      _
    $region29: #{vit_forward.1} parent=1 // pred_fallthru
      _
    %v28 = vld [vmem:[%s1] sm:$0xff]
    %v29 = vld [vmem:[%s1 + $0x8] sm:$0xff]
    %v30 = vld [vmem:[%s1 + $0x11] sm:$0x1]
    %v31 = vld [vmem:[%s1 + $0x10] sm:$0x1]
    %v32 = vadd.f32 %v30, %v31
    %v33 = vld [vmem:[%s0] sm:$0xff]
    %v34 = vld [vmem:[%s0 + $0x8] sm:$0xff]
    %v35 = vld [vmem:[%s0 + $0x10] sm:$0xff]
    %v36 = vld [vmem:[%s0 + $0x18] sm:$0xff]
    %v37 = vadd.f32 %v33, %v28
    %v38 = vadd.f32 %v34, %v29
    %v39 = vadd.f32 %v35, %v28
    %v40 = vadd.f32 %v36, %v29
    %v41 = vld [vmem:[%s4] sm:$0xf]
    %v42 = vld [vmem:[%s4 + $0x8] sm:$0xf]
    %v43 = vld [vmem:[%s4 + $0x10] sm:$0xf]
    %v44 = vld [vmem:[%s4 + $0x18] sm:$0xf]
    %v45 = vld [vmem:[%s4 + $0x4] sm:$0xf]
    %v46 = vld [vmem:[%s4 + $0xc] sm:$0xf]
    %v47 = vld [vmem:[%s4 + $0x14] sm:$0xf]
    %v48 = vld [vmem:[%s4 + $0x1c] sm:$0xf]
    %v49 = vld [vmem:[%s5] sm:$0xf]
    %v50 = vld [vmem:[%s5 + $0x4] sm:$0xf]
    %v51 = vld [vmem:[%s5 + $0x8] sm:$0xf]
    %v52 = vld [vmem:[%s5 + $0xc] sm:$0xf]
    %v53 = vld [vmem:[%s5 + $0x10] sm:$0xf]
    %v54 = vld [vmem:[%s5 + $0x14] sm:$0xf]
    %v55 = vld [vmem:[%s5 + $0x18] sm:$0xf]
    %v56 = vld [vmem:[%s5 + $0x1c] sm:$0xf]
    %v57 = vld [vmem:[%s5 + $0x20] sm:$0xf]
    %v58 = vld [vmem:[%s5 + $0x24] sm:$0xf]
    %v59 = vld [vmem:[%s5 + $0x28] sm:$0xf]
    %v60 = vld [vmem:[%s5 + $0x2c] sm:$0xf]
    %v61 = vld [vmem:[%s5 + $0x30] sm:$0xf]
    %v62 = vld [vmem:[%s5 + $0x34] sm:$0xf]
    %v63 = vld [vmem:[%s5 + $0x38] sm:$0xf]
    %v64 = vld [vmem:[%s5 + $0x3c] sm:$0xf]
    %v65 = vld [vmem:[%s2] sm:$0x1]
    %v66 = vld [vmem:[%s2 + $0x1] sm:$0x1]
    %v67 = vld [vmem:[%s2 + $0x2] sm:$0x1]
    %v68 = vld [vmem:[%s2 + $0x3] sm:$0x1]
    %v69 = vld [vmem:[%s2 + $0x4] sm:$0x1]
    %v70 = vld [vmem:[%s2 + $0x5] sm:$0x1]
    %v71 = vld [vmem:[%s3] sm:$0x1]
    %vm72 = vcmask 261120
    %v73 = vsel %vm72, %v37, 0.0
    %74 = vadd.xlane.f32.xlu0 %v73
    %v75 = vpop.xlane.xlu0 %74
    %v76 = vsel %vm72, %v38, 0.0
    %77 = vadd.xlane.f32.xlu0 %v76
    %v78 = vpop.xlane.xlu0 %77
    %vm79 = vcmask 253952
    %v80 = vsel %vm79, %v32, 0.0
    %81 = vadd.xlane.f32.xlu0 %v80
    %v82 = vpop.xlane.xlu0 %81
    %v83 = vsel %vm72, %v39, 0.0
    %84 = vadd.xlane.f32.xlu0 %v83
    %v85 = vpop.xlane.xlu0 %84
    %v86 = vsel %vm72, %v40, 0.0
    %87 = vadd.xlane.f32.xlu0 %v86
    %v88 = vpop.xlane.xlu0 %87
    %v89 = vrcp.pop 32.0
    %v90 = vmul.f32 %v75, %v89
    %v91 = vmul.f32 %v78, %v89
    %v92 = vmul.f32 %v82, %v89
    %v93 = vmul.f32 %v85, %v89
    %v94 = vmul.f32 %v88, %v89
    %v95 = vmul.f32 %v37, %v37
    %v96 = vmul.f32 %v38, %v38
    %v97 = vmul.f32 %v32, %v32
    %v98 = vmul.f32 %v39, %v39
    %v99 = vmul.f32 %v40, %v40
    %v100 = vsel %vm72, %v95, 0.0
    %101 = vadd.xlane.f32.xlu0 %v100
    %v102 = vpop.xlane.xlu0 %101
    %v103 = vsel %vm72, %v96, 0.0
    %104 = vadd.xlane.f32.xlu0 %v103
    %v105 = vpop.xlane.xlu0 %104
    %v106 = vsel %vm79, %v97, 0.0
    %107 = vadd.xlane.f32.xlu0 %v106
    %v108 = vpop.xlane.xlu0 %107
    %v109 = vsel %vm72, %v98, 0.0
    %110 = vadd.xlane.f32.xlu0 %v109
    %v111 = vpop.xlane.xlu0 %110
    %v112 = vsel %vm72, %v99, 0.0
    %113 = vadd.xlane.f32.xlu0 %v112
    %v114 = vpop.xlane.xlu0 %113
    %v115 = vmul.f32 %v102, %v89
    %v116 = vmul.f32 %v105, %v89
    %v117 = vmul.f32 %v108, %v89
    %v118 = vmul.f32 %v111, %v89
    %v119 = vmul.f32 %v114, %v89
    %v120 = vmul.f32 %v90, %v90
    %v121 = vmul.f32 %v91, %v91
    %v122 = vmul.f32 %v92, %v92
    %v123 = vmul.f32 %v93, %v93
    %v124 = vmul.f32 %v94, %v94
    %v125 = vsub.f32 %v115, %v120
    %v126 = vsub.f32 %v116, %v121
    %v127 = vsub.f32 %v117, %v122
    %v128 = vsub.f32 %v118, %v123
    %v129 = vsub.f32 %v119, %v124
    %v130 = vsub.f32 %v37, %v90
    %v131 = vsub.f32 %v38, %v91
    %v132 = vsub.f32 %v32, %v92
    %v133 = vsub.f32 %v39, %v93
    %v134 = vsub.f32 %v40, %v94
    %v135 = vadd.f32 %v125, 1e-05
    %v136 = vadd.f32 %v126, 1e-05
    %v137 = vadd.f32 %v127, 1e-05
    %v138 = vadd.f32 %v128, 1e-05
    %v139 = vadd.f32 %v129, 1e-05
    %v140 = vrsqrt.pop %v135
    %v141 = vrsqrt.pop %v136
    %v142 = vrsqrt.pop %v137
    %v143 = vrsqrt.pop %v138
    %v144 = vrsqrt.pop %v139
    %v145 = vmul.f32 %v130, %v140
    %v146 = vmul.f32 %v131, %v141
    %v147 = vmul.f32 %v132, %v142
    %v148 = vmul.f32 %v133, %v143
    %v149 = vmul.f32 %v134, %v144
    %v150 = vlaneseq
    %v151 = vshrl.u32 %v150, 7
    %v152 = vsub.s32 0, %v151
    %v153 = vrot.slane %v65, %v152
    %v154 = vmul.f32 %v145, %v153
    %v155 = vmul.f32 %v146, %v153
    %v156 = vmul.f32 %v147, %v153
    %v157 = vmul.f32 %v148, %v153
    %v158 = vmul.f32 %v149, %v153
    %v159 = vlaneseq
    %v160 = vshrl.u32 %v159, 7
    %v161 = vsub.s32 0, %v160
    %v162 = vrot.slane %v66, %v161
    %v163 = vadd.f32 %v154, %v162
    %v164 = vadd.f32 %v155, %v162
    %v165 = vadd.f32 %v156, %v162
    %v166 = vadd.f32 %v157, %v162
    %v167 = vadd.f32 %v158, %v162
    %v168 = vpack.c.bf16 %v164, %v163
    %v169 = vpack.c.bf16 %v165, %v165
    %v174 = vunpack.c.l.b16 %v41
    %v175 = vunpack.c.l.b16 %v42
    %v176 = vunpack.c.l.b16 %v43
    %v177 = vunpack.c.l.b16 %v44
    %v178 = vpack.c.b16 %v175, %v174
    %v179 = vpack.c.b16 %v177, %v176
    %v183 = vsel %vm72, %v168, 0
    %v186 = vsel %vm72, %v169, 0
    %188 = vmatprep.subr.bf16.mxu0 0
    %189 = vmatpush1.bf16.msra.mxu0 %v178
    %190 = vmatprep.subr.bf16.mxu0 0
    %191 = vmatpush1.bf16.msra.mxu0 %v179
    %192 = vmatprep.subr.bf16.mxu0 0
    %193 = vmatpush1.bf16.msra.mxu0 0
    %194 = vmatprep.subr.bf16.mxu0 0
    %195 = vmatpush1.bf16.msra.mxu0 0
    %196 = vmatprep.subr.bf16.mxu0 0
    %197 = vmatpush1.bf16.msra.mxu0 0
    %198 = vmatprep.subr.bf16.mxu0 0
    %199 = vmatpush1.bf16.msra.mxu0 0
    %200 = vmatprep.subr.bf16.mxu0 0
    %201 = vmatpush1.bf16.msra.mxu0 0
    %202 = vmatprep.subr.bf16.mxu0 0
    %203 = vmatpush1.bf16.msra.mxu0 0
    %204 = vmatprep.subr.bf16.mxu0 0
    %205 = vmatpush1.bf16.msra.mxu0 0
    %206 = vmatprep.subr.bf16.mxu0 0
    %207 = vmatpush1.bf16.msra.mxu0 0
    %208 = vmatprep.subr.bf16.mxu0 0
    %209 = vmatpush1.bf16.msra.mxu0 0
    %210 = vmatprep.subr.bf16.mxu0 0
    %211 = vmatpush1.bf16.msra.mxu0 0
    %212 = vmatprep.subr.bf16.mxu0 0
    %213 = vmatpush1.bf16.msra.mxu0 0
    %214 = vmatprep.subr.bf16.mxu0 0
    %215 = vmatpush1.bf16.msra.mxu0 0
    %216 = vmatprep.subr.bf16.mxu0 0
    %217 = vmatpush1.bf16.msra.mxu0 0
    %218 = vmatprep.subr.bf16.mxu0 0
    %219 = vmatpush1.bf16.msra.mxu0 0
    %220 = vmatprep.mubr.bf16.mxu0 0
    %221 = vmatmul.mubr.bf16.gmra.mrb[0].mxu0 %v183
    %v222 = vpop.f32.mrb[0].mxu0
    %v223 = vadd.f32 0.0, %v222
    %v224 = vpop.f32.mrb[0].mxu0
    %v225 = vpop.f32.mrb[0].mxu0
    %v226 = vadd.f32 0.0, %v225
    %v227 = vpop.f32.mrb[0].mxu0
    %228 = vmatprep.mubr.bf16.mxu0 0
    %229 = vmatmul.mubr.bf16.gmra.mrb[0].mxu0 %v186
    %v230 = vpop.f32.mrb[0].mxu0
    %v231 = vadd.f32 0.0, %v230
    %v232 = vpop.f32.mrb[0].mxu0
    %v233 = vpop.f32.mrb[0].mxu0
    %v234 = vpop.f32.mrb[0].mxu0
    %235 = vdwg.mxu0
    %v236 = vpack.c.bf16 %v167, %v166
    %v238 = vsel %vm72, %v236, 0
    %240 = vmatprep.subr.bf16.mxu0 0
    %241 = vmatpush1.bf16.msra.mxu0 %v178
    %242 = vmatprep.subr.bf16.mxu0 0
    %243 = vmatpush1.bf16.msra.mxu0 %v179
    %244 = vmatprep.subr.bf16.mxu0 0
    %245 = vmatpush1.bf16.msra.mxu0 0
    %246 = vmatprep.subr.bf16.mxu0 0
    %247 = vmatpush1.bf16.msra.mxu0 0
    %248 = vmatprep.subr.bf16.mxu0 0
    %249 = vmatpush1.bf16.msra.mxu0 0
    %250 = vmatprep.subr.bf16.mxu0 0
    %251 = vmatpush1.bf16.msra.mxu0 0
    %252 = vmatprep.subr.bf16.mxu0 0
    %253 = vmatpush1.bf16.msra.mxu0 0
    %254 = vmatprep.subr.bf16.mxu0 0
    %255 = vmatpush1.bf16.msra.mxu0 0
    %256 = vmatprep.subr.bf16.mxu0 0
    %257 = vmatpush1.bf16.msra.mxu0 0
    %258 = vmatprep.subr.bf16.mxu0 0
    %259 = vmatpush1.bf16.msra.mxu0 0
    %260 = vmatprep.subr.bf16.mxu0 0
    %261 = vmatpush1.bf16.msra.mxu0 0
    %262 = vmatprep.subr.bf16.mxu0 0
    %263 = vmatpush1.bf16.msra.mxu0 0
    %264 = vmatprep.subr.bf16.mxu0 0
    %265 = vmatpush1.bf16.msra.mxu0 0
    %266 = vmatprep.subr.bf16.mxu0 0
    %267 = vmatpush1.bf16.msra.mxu0 0
    %268 = vmatprep.subr.bf16.mxu0 0
    %269 = vmatpush1.bf16.msra.mxu0 0
    %270 = vmatprep.subr.bf16.mxu0 0
    %271 = vmatpush1.bf16.msra.mxu0 0
    %272 = vmatprep.mubr.bf16.mxu0 0
    %273 = vmatmul.mubr.bf16.gmra.mrb[0].mxu0 %v238
    %v274 = vpop.f32.mrb[0].mxu0
    %v275 = vadd.f32 0.0, %v274
    %v276 = vpop.f32.mrb[0].mxu0
    %v277 = vpop.f32.mrb[0].mxu0
    %v278 = vadd.f32 0.0, %v277
    %v279 = vpop.f32.mrb[0].mxu0
    %280 = vmatprep.mubr.bf16.mxu0 0
    %281 = vmatmul.mubr.bf16.gmra.mrb[0].mxu0 %v186
    %v282 = vpop.f32.mrb[0].mxu0
    %v283 = vadd.f32 0.0, %v282
    %v284 = vpop.f32.mrb[0].mxu0
    %v285 = vpop.f32.mrb[0].mxu0
    %v286 = vpop.f32.mrb[0].mxu0
    %287 = vdwg.mxu0
    %v288 = vpack.c.bf16 %v226, %v223
    %v289 = vpack.c.bf16 %v231, %v231
    %v290 = vpack.c.bf16 %v278, %v275
    %v291 = vpack.c.bf16 %v283, %v283
    %294 = vrot.lane.b32.xlu0 %v288, 96
    %v295 = vpop.permute.xlu0 %294
    %296 = vrot.lane.b32.xlu0 %v289, 96
    %v297 = vpop.permute.xlu0 %296
    %vm298 = vcmask 64512
    %v300 = vsel %vm298, %v288, 0
    %v303 = vsel %vm298, %v289, 0
    %v306 = vsel %vm298, %v295, 0
    %v309 = vsel %vm298, %v297, 0
    %311 = vmatprep.subr.bf16.mxu0 0
    %312 = vmatpush1.bf16.xpose.msra.mxu0 %v306
    %313 = vmatprep.subr.bf16.mxu0 0
    %314 = vmatpush1.bf16.xpose.msra.mxu0 %v309
    %315 = vmatprep.subr.bf16.mxu0 0
    %316 = vmatpush1.bf16.xpose.msra.mxu0 0
    %317 = vmatprep.subr.bf16.mxu0 0
    %318 = vmatpush1.bf16.xpose.msra.mxu0 0
    %319 = vmatprep.subr.bf16.mxu0 0
    %320 = vmatpush1.bf16.xpose.msra.mxu0 0
    %321 = vmatprep.subr.bf16.mxu0 0
    %322 = vmatpush1.bf16.xpose.msra.mxu0 0
    %323 = vmatprep.subr.bf16.mxu0 0
    %324 = vmatpush1.bf16.xpose.msra.mxu0 0
    %325 = vmatprep.subr.bf16.mxu0 0
    %326 = vmatpush1.bf16.xpose.msra.mxu0 0
    %327 = vmatprep.subr.bf16.mxu0 0
    %328 = vmatpush1.bf16.xpose.msra.mxu0 0
    %329 = vmatprep.subr.bf16.mxu0 0
    %330 = vmatpush1.bf16.xpose.msra.mxu0 0
    %331 = vmatprep.subr.bf16.mxu0 0
    %332 = vmatpush1.bf16.xpose.msra.mxu0 0
    %333 = vmatprep.subr.bf16.mxu0 0
    %334 = vmatpush1.bf16.xpose.msra.mxu0 0
    %335 = vmatprep.subr.bf16.mxu0 0
    %336 = vmatpush1.bf16.xpose.msra.mxu0 0
    %337 = vmatprep.subr.bf16.mxu0 0
    %338 = vmatpush1.bf16.xpose.msra.mxu0 0
    %339 = vmatprep.subr.bf16.mxu0 0
    %340 = vmatpush1.bf16.xpose.msra.mxu0 0
    %341 = vmatprep.subr.bf16.mxu0 0
    %342 = vmatpush1.bf16.xpose.msra.mxu0 0
    %343 = vmatprep.mubr.bf16.mxu0 0
    %344 = vmatmul.mubr.bf16.gmra.mrb[0].mxu0 %v300
    %v345 = vpop.f32.mrb[0].mxu0
    %v346 = vadd.f32 0.0, %v345
    %v347 = vpop.f32.mrb[0].mxu0
    %v348 = vpop.f32.mrb[0].mxu0
    %v349 = vadd.f32 0.0, %v348
    %v350 = vpop.f32.mrb[0].mxu0
    %351 = vmatprep.mubr.bf16.mxu0 0
    %352 = vmatmul.mubr.bf16.gmra.mrb[0].mxu0 %v303
    %v353 = vpop.f32.mrb[0].mxu0
    %v354 = vadd.f32 0.0, %v353
    %v355 = vpop.f32.mrb[0].mxu0
    %v356 = vpop.f32.mrb[0].mxu0
    %v357 = vpop.f32.mrb[0].mxu0
    %358 = vdwg.mxu0
    %361 = vrot.lane.b32.xlu0 %v290, 96
    %v362 = vpop.permute.xlu0 %361
    %363 = vrot.lane.b32.xlu0 %v291, 96
    %v364 = vpop.permute.xlu0 %363
    %v366 = vsel %vm298, %v290, 0
    %v369 = vsel %vm298, %v291, 0
    %v372 = vsel %vm298, %v362, 0
    %v375 = vsel %vm298, %v364, 0
    %377 = vmatprep.subr.bf16.mxu0 0
    %378 = vmatpush1.bf16.xpose.msra.mxu0 %v372
    %379 = vmatprep.subr.bf16.mxu0 0
    %380 = vmatpush1.bf16.xpose.msra.mxu0 %v375
    %381 = vmatprep.subr.bf16.mxu0 0
    %382 = vmatpush1.bf16.xpose.msra.mxu0 0
    %383 = vmatprep.subr.bf16.mxu0 0
    %384 = vmatpush1.bf16.xpose.msra.mxu0 0
    %385 = vmatprep.subr.bf16.mxu0 0
    %386 = vmatpush1.bf16.xpose.msra.mxu0 0
    %387 = vmatprep.subr.bf16.mxu0 0
    %388 = vmatpush1.bf16.xpose.msra.mxu0 0
    %389 = vmatprep.subr.bf16.mxu0 0
    %390 = vmatpush1.bf16.xpose.msra.mxu0 0
    %391 = vmatprep.subr.bf16.mxu0 0
    %392 = vmatpush1.bf16.xpose.msra.mxu0 0
    %393 = vmatprep.subr.bf16.mxu0 0
    %394 = vmatpush1.bf16.xpose.msra.mxu0 0
    %395 = vmatprep.subr.bf16.mxu0 0
    %396 = vmatpush1.bf16.xpose.msra.mxu0 0
    %397 = vmatprep.subr.bf16.mxu0 0
    %398 = vmatpush1.bf16.xpose.msra.mxu0 0
    %399 = vmatprep.subr.bf16.mxu0 0
    %400 = vmatpush1.bf16.xpose.msra.mxu0 0
    %401 = vmatprep.subr.bf16.mxu0 0
    %402 = vmatpush1.bf16.xpose.msra.mxu0 0
    %403 = vmatprep.subr.bf16.mxu0 0
    %404 = vmatpush1.bf16.xpose.msra.mxu0 0
    %405 = vmatprep.subr.bf16.mxu0 0
    %406 = vmatpush1.bf16.xpose.msra.mxu0 0
    %407 = vmatprep.subr.bf16.mxu0 0
    %408 = vmatpush1.bf16.xpose.msra.mxu0 0
    %409 = vmatprep.mubr.bf16.mxu0 0
    %410 = vmatmul.mubr.bf16.gmra.mrb[0].mxu0 %v366
    %v411 = vpop.f32.mrb[0].mxu0
    %v412 = vadd.f32 0.0, %v411
    %v413 = vpop.f32.mrb[0].mxu0
    %v414 = vpop.f32.mrb[0].mxu0
    %v415 = vadd.f32 0.0, %v414
    %v416 = vpop.f32.mrb[0].mxu0
    %417 = vmatprep.mubr.bf16.mxu0 0
    %418 = vmatmul.mubr.bf16.gmra.mrb[0].mxu0 %v369
    %v419 = vpop.f32.mrb[0].mxu0
    %v420 = vadd.f32 0.0, %v419
    %v421 = vpop.f32.mrb[0].mxu0
    %v422 = vpop.f32.mrb[0].mxu0
    %v423 = vpop.f32.mrb[0].mxu0
    %424 = vdwg.mxu0
    %v425 = vmul.f32 %v346, 0.35355338
    %v426 = vmul.f32 %v349, 0.35355338
    %v427 = vmul.f32 %v354, 0.35355338
    %v428 = vmul.f32 %v412, 0.35355338
    %v429 = vmul.f32 %v415, 0.35355338
    %v430 = vmul.f32 %v420, 0.35355338
    %vm431 = vcmask 138240
    %v432 = vsel %vm431, %v425, -inf
    %433 = vmax.xlane.f32.xlu0 %v432
    %v434 = vpop.xlane.xlu0 %433
    %v435 = vsel %vm431, %v426, -inf
    %436 = vmax.xlane.f32.xlu0 %v435
    %v437 = vpop.xlane.xlu0 %436
    %vm438 = vcmask 131072
    %v439 = vsel %vm438, %v427, -inf
    %440 = vmax.xlane.f32.xlu0 %v439
    %v441 = vpop.xlane.xlu0 %440
    %v442 = vsel %vm431, %v428, -inf
    %443 = vmax.xlane.f32.xlu0 %v442
    %v444 = vpop.xlane.xlu0 %443
    %v445 = vsel %vm431, %v429, -inf
    %446 = vmax.xlane.f32.xlu0 %v445
    %v447 = vpop.xlane.xlu0 %446
    %v448 = vsel %vm438, %v430, -inf
    %449 = vmax.xlane.f32.xlu0 %v448
    %v450 = vpop.xlane.xlu0 %449
    %v451 = vsub.f32 %v425, %v434
    %v452 = vsub.f32 %v426, %v437
    %v453 = vsub.f32 %v427, %v441
    %v454 = vsub.f32 %v428, %v444
    %v455 = vsub.f32 %v429, %v447
    %v456 = vsub.f32 %v430, %v450
    %v457 = vmul.f32 %v451, 1.442695
    %v458 = vpow.pop %v457
    %v459 = vmul.f32 %v452, 1.442695
    %v460 = vpow.pop %v459
    %v461 = vmul.f32 %v453, 1.442695
    %v462 = vpow.pop %v461
    %v463 = vmul.f32 %v454, 1.442695
    %v464 = vpow.pop %v463
    %v465 = vmul.f32 %v455, 1.442695
    %v466 = vpow.pop %v465
    %v467 = vmul.f32 %v456, 1.442695
    %v468 = vpow.pop %v467
    %v469 = vsel %vm431, %v458, 0.0
    %470 = vadd.xlane.f32.xlu0 %v469
    %v471 = vpop.xlane.xlu0 %470
    %v472 = vsel %vm431, %v460, 0.0
    %473 = vadd.xlane.f32.xlu0 %v472
    %v474 = vpop.xlane.xlu0 %473
    %v475 = vsel %vm438, %v462, 0.0
    %476 = vadd.xlane.f32.xlu0 %v475
    %v477 = vpop.xlane.xlu0 %476
    %v478 = vsel %vm431, %v464, 0.0
    %479 = vadd.xlane.f32.xlu0 %v478
    %v480 = vpop.xlane.xlu0 %479
    %v481 = vsel %vm431, %v466, 0.0
    %482 = vadd.xlane.f32.xlu0 %v481
    %v483 = vpop.xlane.xlu0 %482
    %v484 = vsel %vm438, %v468, 0.0
    %485 = vadd.xlane.f32.xlu0 %v484
    %v486 = vpop.xlane.xlu0 %485
    %v487 = vrcp.pop %v471
    %v488 = vrcp.pop %v474
    %v489 = vrcp.pop %v477
    %v490 = vrcp.pop %v480
    %v491 = vrcp.pop %v483
    %v492 = vrcp.pop %v486
    %v493 = vmul.f32 %v458, %v487
    %v494 = vmul.f32 %v460, %v488
    %v495 = vmul.f32 %v462, %v489
    %v496 = vmul.f32 %v464, %v490
    %v497 = vmul.f32 %v466, %v491
    %v498 = vmul.f32 %v468, %v492
    %v499 = vpack.c.bf16 %v494, %v493
    %v500 = vpack.c.bf16 %v495, %v495
    %v501 = vpack.c.bf16 %v497, %v496
    %v502 = vpack.c.bf16 %v498, %v498
    %503 = vrot.lane.b32.xlu0 %v288, 64
    %v504 = vpop.permute.xlu0 %503
    %505 = vrot.lane.b32.xlu0 %v289, 64
    %v506 = vpop.permute.xlu0 %505
    %v509 = vsel %vm431, %v499, 0
    %v512 = vsel %vm431, %v500, 0
    %vm514 = vcmask 1040384
    %v515 = vsel 0, 4294967295, 65535
    %v516 = vsel %vm514, %v515, 0
    %v518 = vand.u32 %v506, %v516
    %520 = vmatprep.subr.bf16.mxu0 0
    %521 = vmatpush1.bf16.msra.mxu0 %v504
    %522 = vmatprep.subr.bf16.mxu0 0
    %523 = vmatpush1.bf16.msra.mxu0 %v518
    %524 = vmatprep.subr.bf16.mxu0 0
    %525 = vmatpush1.bf16.msra.mxu0 0
    %526 = vmatprep.subr.bf16.mxu0 0
    %527 = vmatpush1.bf16.msra.mxu0 0
    %528 = vmatprep.subr.bf16.mxu0 0
    %529 = vmatpush1.bf16.msra.mxu0 0
    %530 = vmatprep.subr.bf16.mxu0 0
    %531 = vmatpush1.bf16.msra.mxu0 0
    %532 = vmatprep.subr.bf16.mxu0 0
    %533 = vmatpush1.bf16.msra.mxu0 0
    %534 = vmatprep.subr.bf16.mxu0 0
    %535 = vmatpush1.bf16.msra.mxu0 0
    %536 = vmatprep.subr.bf16.mxu0 0
    %537 = vmatpush1.bf16.msra.mxu0 0
    %538 = vmatprep.subr.bf16.mxu0 0
    %539 = vmatpush1.bf16.msra.mxu0 0
    %540 = vmatprep.subr.bf16.mxu0 0
    %541 = vmatpush1.bf16.msra.mxu0 0
    %542 = vmatprep.subr.bf16.mxu0 0
    %543 = vmatpush1.bf16.msra.mxu0 0
    %544 = vmatprep.subr.bf16.mxu0 0
    %545 = vmatpush1.bf16.msra.mxu0 0
    %546 = vmatprep.subr.bf16.mxu0 0
    %547 = vmatpush1.bf16.msra.mxu0 0
    %548 = vmatprep.subr.bf16.mxu0 0
    %549 = vmatpush1.bf16.msra.mxu0 0
    %550 = vmatprep.subr.bf16.mxu0 0
    %551 = vmatpush1.bf16.msra.mxu0 0
    %552 = vmatprep.mubr.bf16.mxu0 0
    %553 = vmatmul.mubr.bf16.gmra.mrb[0].mxu0 %v509
    %v554 = vpop.f32.mrb[0].mxu0
    %v555 = vadd.f32 0.0, %v554
    %v556 = vpop.f32.mrb[0].mxu0
    %v557 = vpop.f32.mrb[0].mxu0
    %v558 = vadd.f32 0.0, %v557
    %v559 = vpop.f32.mrb[0].mxu0
    %560 = vmatprep.mubr.bf16.mxu0 0
    %561 = vmatmul.mubr.bf16.gmra.mrb[0].mxu0 %v512
    %v562 = vpop.f32.mrb[0].mxu0
    %v563 = vadd.f32 0.0, %v562
    %v564 = vpop.f32.mrb[0].mxu0
    %v565 = vpop.f32.mrb[0].mxu0
    %v566 = vpop.f32.mrb[0].mxu0
    %567 = vdwg.mxu0
    %568 = vrot.lane.b32.xlu0 %v290, 64
    %v569 = vpop.permute.xlu0 %568
    %570 = vrot.lane.b32.xlu0 %v291, 64
    %v571 = vpop.permute.xlu0 %570
    %v574 = vsel %vm431, %v501, 0
    %v577 = vsel %vm431, %v502, 0
    %v580 = vand.u32 %v571, %v516
    %582 = vmatprep.subr.bf16.mxu0 0
    %583 = vmatpush1.bf16.msra.mxu0 %v569
    %584 = vmatprep.subr.bf16.mxu0 0
    %585 = vmatpush1.bf16.msra.mxu0 %v580
    %586 = vmatprep.subr.bf16.mxu0 0
    %587 = vmatpush1.bf16.msra.mxu0 0
    %588 = vmatprep.subr.bf16.mxu0 0
    %589 = vmatpush1.bf16.msra.mxu0 0
    %590 = vmatprep.subr.bf16.mxu0 0
    %591 = vmatpush1.bf16.msra.mxu0 0
    %592 = vmatprep.subr.bf16.mxu0 0
    %593 = vmatpush1.bf16.msra.mxu0 0
    %594 = vmatprep.subr.bf16.mxu0 0
    %595 = vmatpush1.bf16.msra.mxu0 0
    %596 = vmatprep.subr.bf16.mxu0 0
    %597 = vmatpush1.bf16.msra.mxu0 0
    %598 = vmatprep.subr.bf16.mxu0 0
    %599 = vmatpush1.bf16.msra.mxu0 0
    %600 = vmatprep.subr.bf16.mxu0 0
    %601 = vmatpush1.bf16.msra.mxu0 0
    %602 = vmatprep.subr.bf16.mxu0 0
    %603 = vmatpush1.bf16.msra.mxu0 0
    %604 = vmatprep.subr.bf16.mxu0 0
    %605 = vmatpush1.bf16.msra.mxu0 0
    %606 = vmatprep.subr.bf16.mxu0 0
    %607 = vmatpush1.bf16.msra.mxu0 0
    %608 = vmatprep.subr.bf16.mxu0 0
    %609 = vmatpush1.bf16.msra.mxu0 0
    %610 = vmatprep.subr.bf16.mxu0 0
    %611 = vmatpush1.bf16.msra.mxu0 0
    %612 = vmatprep.subr.bf16.mxu0 0
    %613 = vmatpush1.bf16.msra.mxu0 0
    %614 = vmatprep.mubr.bf16.mxu0 0
    %615 = vmatmul.mubr.bf16.gmra.mrb[0].mxu0 %v574
    %v616 = vpop.f32.mrb[0].mxu0
    %v617 = vadd.f32 0.0, %v616
    %v618 = vpop.f32.mrb[0].mxu0
    %v619 = vpop.f32.mrb[0].mxu0
    %v620 = vadd.f32 0.0, %v619
    %v621 = vpop.f32.mrb[0].mxu0
    %622 = vmatprep.mubr.bf16.mxu0 0
    %623 = vmatmul.mubr.bf16.gmra.mrb[0].mxu0 %v577
    %v624 = vpop.f32.mrb[0].mxu0
    %v625 = vadd.f32 0.0, %v624
    %v626 = vpop.f32.mrb[0].mxu0
    %v627 = vpop.f32.mrb[0].mxu0
    %v628 = vpop.f32.mrb[0].mxu0
    %629 = vdwg.mxu0
    %630 = vrot.lane.b32.xlu0 %v288, 120
    %v631 = vpop.permute.xlu0 %630
    %632 = vrot.lane.b32.xlu0 %v289, 120
    %v633 = vpop.permute.xlu0 %632
    %634 = vrot.lane.b32.xlu0 %v288, 88
    %v635 = vpop.permute.xlu0 %634
    %636 = vrot.lane.b32.xlu0 %v289, 88
    %v637 = vpop.permute.xlu0 %636
    %v639 = vsel %vm298, %v631, 0
    %v642 = vsel %vm298, %v633, 0
    %v645 = vsel %vm298, %v635, 0
    %v648 = vsel %vm298, %v637, 0
    %650 = vmatprep.subr.bf16.mxu0 0
    %651 = vmatpush1.bf16.xpose.msra.mxu0 %v645
    %652 = vmatprep.subr.bf16.mxu0 0
    %653 = vmatpush1.bf16.xpose.msra.mxu0 %v648
    %654 = vmatprep.subr.bf16.mxu0 0
    %655 = vmatpush1.bf16.xpose.msra.mxu0 0
    %656 = vmatprep.subr.bf16.mxu0 0
    %657 = vmatpush1.bf16.xpose.msra.mxu0 0
    %658 = vmatprep.subr.bf16.mxu0 0
    %659 = vmatpush1.bf16.xpose.msra.mxu0 0
    %660 = vmatprep.subr.bf16.mxu0 0
    %661 = vmatpush1.bf16.xpose.msra.mxu0 0
    %662 = vmatprep.subr.bf16.mxu0 0
    %663 = vmatpush1.bf16.xpose.msra.mxu0 0
    %664 = vmatprep.subr.bf16.mxu0 0
    %665 = vmatpush1.bf16.xpose.msra.mxu0 0
    %666 = vmatprep.subr.bf16.mxu0 0
    %667 = vmatpush1.bf16.xpose.msra.mxu0 0
    %668 = vmatprep.subr.bf16.mxu0 0
    %669 = vmatpush1.bf16.xpose.msra.mxu0 0
    %670 = vmatprep.subr.bf16.mxu0 0
    %671 = vmatpush1.bf16.xpose.msra.mxu0 0
    %672 = vmatprep.subr.bf16.mxu0 0
    %673 = vmatpush1.bf16.xpose.msra.mxu0 0
    %674 = vmatprep.subr.bf16.mxu0 0
    %675 = vmatpush1.bf16.xpose.msra.mxu0 0
    %676 = vmatprep.subr.bf16.mxu0 0
    %677 = vmatpush1.bf16.xpose.msra.mxu0 0
    %678 = vmatprep.subr.bf16.mxu0 0
    %679 = vmatpush1.bf16.xpose.msra.mxu0 0
    %680 = vmatprep.subr.bf16.mxu0 0
    %681 = vmatpush1.bf16.xpose.msra.mxu0 0
    %682 = vmatprep.mubr.bf16.mxu0 0
    %683 = vmatmul.mubr.bf16.gmra.mrb[0].mxu0 %v639
    %v684 = vpop.f32.mrb[0].mxu0
    %v685 = vadd.f32 0.0, %v684
    %v686 = vpop.f32.mrb[0].mxu0
    %v687 = vpop.f32.mrb[0].mxu0
    %v688 = vadd.f32 0.0, %v687
    %v689 = vpop.f32.mrb[0].mxu0
    %690 = vmatprep.mubr.bf16.mxu0 0
    %691 = vmatmul.mubr.bf16.gmra.mrb[0].mxu0 %v642
    %v692 = vpop.f32.mrb[0].mxu0
    %v693 = vadd.f32 0.0, %v692
    %v694 = vpop.f32.mrb[0].mxu0
    %v695 = vpop.f32.mrb[0].mxu0
    %v696 = vpop.f32.mrb[0].mxu0
    %697 = vdwg.mxu0
    %698 = vrot.lane.b32.xlu0 %v290, 120
    %v699 = vpop.permute.xlu0 %698
    %700 = vrot.lane.b32.xlu0 %v291, 120
    %v701 = vpop.permute.xlu0 %700
    %702 = vrot.lane.b32.xlu0 %v290, 88
    %v703 = vpop.permute.xlu0 %702
    %704 = vrot.lane.b32.xlu0 %v291, 88
    %v705 = vpop.permute.xlu0 %704
    %v707 = vsel %vm298, %v699, 0
    %v710 = vsel %vm298, %v701, 0
    %v713 = vsel %vm298, %v703, 0
    %v716 = vsel %vm298, %v705, 0
    %718 = vmatprep.subr.bf16.mxu0 0
    %719 = vmatpush1.bf16.xpose.msra.mxu0 %v713
    %720 = vmatprep.subr.bf16.mxu0 0
    %721 = vmatpush1.bf16.xpose.msra.mxu0 %v716
    %722 = vmatprep.subr.bf16.mxu0 0
    %723 = vmatpush1.bf16.xpose.msra.mxu0 0
    %724 = vmatprep.subr.bf16.mxu0 0
    %725 = vmatpush1.bf16.xpose.msra.mxu0 0
    %726 = vmatprep.subr.bf16.mxu0 0
    %727 = vmatpush1.bf16.xpose.msra.mxu0 0
    %728 = vmatprep.subr.bf16.mxu0 0
    %729 = vmatpush1.bf16.xpose.msra.mxu0 0
    %730 = vmatprep.subr.bf16.mxu0 0
    %731 = vmatpush1.bf16.xpose.msra.mxu0 0
    %732 = vmatprep.subr.bf16.mxu0 0
    %733 = vmatpush1.bf16.xpose.msra.mxu0 0
    %734 = vmatprep.subr.bf16.mxu0 0
    %735 = vmatpush1.bf16.xpose.msra.mxu0 0
    %736 = vmatprep.subr.bf16.mxu0 0
    %737 = vmatpush1.bf16.xpose.msra.mxu0 0
    %738 = vmatprep.subr.bf16.mxu0 0
    %739 = vmatpush1.bf16.xpose.msra.mxu0 0
    %740 = vmatprep.subr.bf16.mxu0 0
    %741 = vmatpush1.bf16.xpose.msra.mxu0 0
    %742 = vmatprep.subr.bf16.mxu0 0
    %743 = vmatpush1.bf16.xpose.msra.mxu0 0
    %744 = vmatprep.subr.bf16.mxu0 0
    %745 = vmatpush1.bf16.xpose.msra.mxu0 0
    %746 = vmatprep.subr.bf16.mxu0 0
    %747 = vmatpush1.bf16.xpose.msra.mxu0 0
    %748 = vmatprep.subr.bf16.mxu0 0
    %749 = vmatpush1.bf16.xpose.msra.mxu0 0
    %750 = vmatprep.mubr.bf16.mxu0 0
    %751 = vmatmul.mubr.bf16.gmra.mrb[0].mxu0 %v707
    %v752 = vpop.f32.mrb[0].mxu0
    %v753 = vadd.f32 0.0, %v752
    %v754 = vpop.f32.mrb[0].mxu0
    %v755 = vpop.f32.mrb[0].mxu0
    %v756 = vadd.f32 0.0, %v755
    %v757 = vpop.f32.mrb[0].mxu0
    %758 = vmatprep.mubr.bf16.mxu0 0
    %759 = vmatmul.mubr.bf16.gmra.mrb[0].mxu0 %v710
    %v760 = vpop.f32.mrb[0].mxu0
    %v761 = vadd.f32 0.0, %v760
    %v762 = vpop.f32.mrb[0].mxu0
    %v763 = vpop.f32.mrb[0].mxu0
    %v764 = vpop.f32.mrb[0].mxu0
    %765 = vdwg.mxu0
    %v766 = vmul.f32 %v685, 0.35355338
    %v767 = vmul.f32 %v688, 0.35355338
    %v768 = vmul.f32 %v693, 0.35355338
    %v769 = vmul.f32 %v753, 0.35355338
    %v770 = vmul.f32 %v756, 0.35355338
    %v771 = vmul.f32 %v761, 0.35355338
    %v772 = vsel %vm431, %v766, -inf
    %773 = vmax.xlane.f32.xlu0 %v772
    %v774 = vpop.xlane.xlu0 %773
    %v775 = vsel %vm431, %v767, -inf
    %776 = vmax.xlane.f32.xlu0 %v775
    %v777 = vpop.xlane.xlu0 %776
    %v778 = vsel %vm438, %v768, -inf
    %779 = vmax.xlane.f32.xlu0 %v778
    %v780 = vpop.xlane.xlu0 %779
    %v781 = vsel %vm431, %v769, -inf
    %782 = vmax.xlane.f32.xlu0 %v781
    %v783 = vpop.xlane.xlu0 %782
    %v784 = vsel %vm431, %v770, -inf
    %785 = vmax.xlane.f32.xlu0 %v784
    %v786 = vpop.xlane.xlu0 %785
    %v787 = vsel %vm438, %v771, -inf
    %788 = vmax.xlane.f32.xlu0 %v787
    %v789 = vpop.xlane.xlu0 %788
    %v790 = vsub.f32 %v766, %v774
    %v791 = vsub.f32 %v767, %v777
    %v792 = vsub.f32 %v768, %v780
    %v793 = vsub.f32 %v769, %v783
    %v794 = vsub.f32 %v770, %v786
    %v795 = vsub.f32 %v771, %v789
    %v796 = vmul.f32 %v790, 1.442695
    %v797 = vpow.pop %v796
    %v798 = vmul.f32 %v791, 1.442695
    %v799 = vpow.pop %v798
    %v800 = vmul.f32 %v792, 1.442695
    %v801 = vpow.pop %v800
    %v802 = vmul.f32 %v793, 1.442695
    %v803 = vpow.pop %v802
    %v804 = vmul.f32 %v794, 1.442695
    %v805 = vpow.pop %v804
    %v806 = vmul.f32 %v795, 1.442695
    %v807 = vpow.pop %v806
    %v808 = vsel %vm431, %v797, 0.0
    %809 = vadd.xlane.f32.xlu0 %v808
    %v810 = vpop.xlane.xlu0 %809
    %v811 = vsel %vm431, %v799, 0.0
    %812 = vadd.xlane.f32.xlu0 %v811
    %v813 = vpop.xlane.xlu0 %812
    %v814 = vsel %vm438, %v801, 0.0
    %815 = vadd.xlane.f32.xlu0 %v814
    %v816 = vpop.xlane.xlu0 %815
    %v817 = vsel %vm431, %v803, 0.0
    %818 = vadd.xlane.f32.xlu0 %v817
    %v819 = vpop.xlane.xlu0 %818
    %v820 = vsel %vm431, %v805, 0.0
    %821 = vadd.xlane.f32.xlu0 %v820
    %v822 = vpop.xlane.xlu0 %821
    %v823 = vsel %vm438, %v807, 0.0
    %824 = vadd.xlane.f32.xlu0 %v823
    %v825 = vpop.xlane.xlu0 %824
    %v826 = vrcp.pop %v810
    %v827 = vrcp.pop %v813
    %v828 = vrcp.pop %v816
    %v829 = vrcp.pop %v819
    %v830 = vrcp.pop %v822
    %v831 = vrcp.pop %v825
    %v832 = vmul.f32 %v797, %v826
    %v833 = vmul.f32 %v799, %v827
    %v834 = vmul.f32 %v801, %v828
    %v835 = vmul.f32 %v803, %v829
    %v836 = vmul.f32 %v805, %v830
    %v837 = vmul.f32 %v807, %v831
    %v838 = vpack.c.bf16 %v833, %v832
    %v839 = vpack.c.bf16 %v834, %v834
    %v840 = vpack.c.bf16 %v836, %v835
    %v841 = vpack.c.bf16 %v837, %v837
    %842 = vrot.lane.b32.xlu0 %v288, 56
    %v843 = vpop.permute.xlu0 %842
    %844 = vrot.lane.b32.xlu0 %v289, 56
    %v845 = vpop.permute.xlu0 %844
    %v848 = vsel %vm431, %v838, 0
    %v851 = vsel %vm431, %v839, 0
    %v854 = vand.u32 %v845, %v516
    %856 = vmatprep.subr.bf16.mxu0 0
    %857 = vmatpush1.bf16.msra.mxu0 %v843
    %858 = vmatprep.subr.bf16.mxu0 0
    %859 = vmatpush1.bf16.msra.mxu0 %v854
    %860 = vmatprep.subr.bf16.mxu0 0
    %861 = vmatpush1.bf16.msra.mxu0 0
    %862 = vmatprep.subr.bf16.mxu0 0
    %863 = vmatpush1.bf16.msra.mxu0 0
    %864 = vmatprep.subr.bf16.mxu0 0
    %865 = vmatpush1.bf16.msra.mxu0 0
    %866 = vmatprep.subr.bf16.mxu0 0
    %867 = vmatpush1.bf16.msra.mxu0 0
    %868 = vmatprep.subr.bf16.mxu0 0
    %869 = vmatpush1.bf16.msra.mxu0 0
    %870 = vmatprep.subr.bf16.mxu0 0
    %871 = vmatpush1.bf16.msra.mxu0 0
    %872 = vmatprep.subr.bf16.mxu0 0
    %873 = vmatpush1.bf16.msra.mxu0 0
    %874 = vmatprep.subr.bf16.mxu0 0
    %875 = vmatpush1.bf16.msra.mxu0 0
    %876 = vmatprep.subr.bf16.mxu0 0
    %877 = vmatpush1.bf16.msra.mxu0 0
    %878 = vmatprep.subr.bf16.mxu0 0
    %879 = vmatpush1.bf16.msra.mxu0 0
    %880 = vmatprep.subr.bf16.mxu0 0
    %881 = vmatpush1.bf16.msra.mxu0 0
    %882 = vmatprep.subr.bf16.mxu0 0
    %883 = vmatpush1.bf16.msra.mxu0 0
    %884 = vmatprep.subr.bf16.mxu0 0
    %885 = vmatpush1.bf16.msra.mxu0 0
    %886 = vmatprep.subr.bf16.mxu0 0
    %887 = vmatpush1.bf16.msra.mxu0 0
    %888 = vmatprep.mubr.bf16.mxu0 0
    %889 = vmatmul.mubr.bf16.gmra.mrb[0].mxu0 %v848
    %v890 = vpop.f32.mrb[0].mxu0
    %v891 = vadd.f32 0.0, %v890
    %v892 = vpop.f32.mrb[0].mxu0
    %v893 = vpop.f32.mrb[0].mxu0
    %v894 = vadd.f32 0.0, %v893
    %v895 = vpop.f32.mrb[0].mxu0
    %896 = vmatprep.mubr.bf16.mxu0 0
    %897 = vmatmul.mubr.bf16.gmra.mrb[0].mxu0 %v851
    %v898 = vpop.f32.mrb[0].mxu0
    %v899 = vadd.f32 0.0, %v898
    %v900 = vpop.f32.mrb[0].mxu0
    %v901 = vpop.f32.mrb[0].mxu0
    %v902 = vpop.f32.mrb[0].mxu0
    %903 = vdwg.mxu0
    %904 = vrot.lane.b32.xlu0 %v290, 56
    %v905 = vpop.permute.xlu0 %904
    %906 = vrot.lane.b32.xlu0 %v291, 56
    %v907 = vpop.permute.xlu0 %906
    %v910 = vsel %vm431, %v840, 0
    %v913 = vsel %vm431, %v841, 0
    %v916 = vand.u32 %v907, %v516
    %918 = vmatprep.subr.bf16.mxu0 0
    %919 = vmatpush1.bf16.msra.mxu0 %v905
    %920 = vmatprep.subr.bf16.mxu0 0
    %921 = vmatpush1.bf16.msra.mxu0 %v916
    %922 = vmatprep.subr.bf16.mxu0 0
    %923 = vmatpush1.bf16.msra.mxu0 0
    %924 = vmatprep.subr.bf16.mxu0 0
    %925 = vmatpush1.bf16.msra.mxu0 0
    %926 = vmatprep.subr.bf16.mxu0 0
    %927 = vmatpush1.bf16.msra.mxu0 0
    %928 = vmatprep.subr.bf16.mxu0 0
    %929 = vmatpush1.bf16.msra.mxu0 0
    %930 = vmatprep.subr.bf16.mxu0 0
    %931 = vmatpush1.bf16.msra.mxu0 0
    %932 = vmatprep.subr.bf16.mxu0 0
    %933 = vmatpush1.bf16.msra.mxu0 0
    %934 = vmatprep.subr.bf16.mxu0 0
    %935 = vmatpush1.bf16.msra.mxu0 0
    %936 = vmatprep.subr.bf16.mxu0 0
    %937 = vmatpush1.bf16.msra.mxu0 0
    %938 = vmatprep.subr.bf16.mxu0 0
    %939 = vmatpush1.bf16.msra.mxu0 0
    %940 = vmatprep.subr.bf16.mxu0 0
    %941 = vmatpush1.bf16.msra.mxu0 0
    %942 = vmatprep.subr.bf16.mxu0 0
    %943 = vmatpush1.bf16.msra.mxu0 0
    %944 = vmatprep.subr.bf16.mxu0 0
    %945 = vmatpush1.bf16.msra.mxu0 0
    %946 = vmatprep.subr.bf16.mxu0 0
    %947 = vmatpush1.bf16.msra.mxu0 0
    %948 = vmatprep.subr.bf16.mxu0 0
    %949 = vmatpush1.bf16.msra.mxu0 0
    %950 = vmatprep.mubr.bf16.mxu0 0
    %951 = vmatmul.mubr.bf16.gmra.mrb[0].mxu0 %v910
    %v952 = vpop.f32.mrb[0].mxu0
    %v953 = vadd.f32 0.0, %v952
    %v954 = vpop.f32.mrb[0].mxu0
    %v955 = vpop.f32.mrb[0].mxu0
    %v956 = vadd.f32 0.0, %v955
    %v957 = vpop.f32.mrb[0].mxu0
    %958 = vmatprep.mubr.bf16.mxu0 0
    %959 = vmatmul.mubr.bf16.gmra.mrb[0].mxu0 %v913
    %v960 = vpop.f32.mrb[0].mxu0
    %v961 = vadd.f32 0.0, %v960
    %v962 = vpop.f32.mrb[0].mxu0
    %v963 = vpop.f32.mrb[0].mxu0
    %v964 = vpop.f32.mrb[0].mxu0
    %965 = vdwg.mxu0
    %966 = vrot.lane.b32.xlu0 %v288, 112
    %v967 = vpop.permute.xlu0 %966
    %968 = vrot.lane.b32.xlu0 %v289, 112
    %v969 = vpop.permute.xlu0 %968
    %970 = vrot.lane.b32.xlu0 %v288, 80
    %v971 = vpop.permute.xlu0 %970
    %972 = vrot.lane.b32.xlu0 %v289, 80
    %v973 = vpop.permute.xlu0 %972
    %v975 = vsel %vm298, %v967, 0
    %v978 = vsel %vm298, %v969, 0
    %v981 = vsel %vm298, %v971, 0
    %v984 = vsel %vm298, %v973, 0
    %986 = vmatprep.subr.bf16.mxu0 0
    %987 = vmatpush1.bf16.xpose.msra.mxu0 %v981
    %988 = vmatprep.subr.bf16.mxu0 0
    %989 = vmatpush1.bf16.xpose.msra.mxu0 %v984
    %990 = vmatprep.subr.bf16.mxu0 0
    %991 = vmatpush1.bf16.xpose.msra.mxu0 0
    %992 = vmatprep.subr.bf16.mxu0 0
    %993 = vmatpush1.bf16.xpose.msra.mxu0 0
    %994 = vmatprep.subr.bf16.mxu0 0
    %995 = vmatpush1.bf16.xpose.msra.mxu0 0
    %996 = vmatprep.subr.bf16.mxu0 0
    %997 = vmatpush1.bf16.xpose.msra.mxu0 0
    %998 = vmatprep.subr.bf16.mxu0 0
    %999 = vmatpush1.bf16.xpose.msra.mxu0 0
    %1000 = vmatprep.subr.bf16.mxu0 0
    %1001 = vmatpush1.bf16.xpose.msra.mxu0 0
    %1002 = vmatprep.subr.bf16.mxu0 0
    %1003 = vmatpush1.bf16.xpose.msra.mxu0 0
    %1004 = vmatprep.subr.bf16.mxu0 0
    %1005 = vmatpush1.bf16.xpose.msra.mxu0 0
    %1006 = vmatprep.subr.bf16.mxu0 0
    %1007 = vmatpush1.bf16.xpose.msra.mxu0 0
    %1008 = vmatprep.subr.bf16.mxu0 0
    %1009 = vmatpush1.bf16.xpose.msra.mxu0 0
    %1010 = vmatprep.subr.bf16.mxu0 0
    %1011 = vmatpush1.bf16.xpose.msra.mxu0 0
    %1012 = vmatprep.subr.bf16.mxu0 0
    %1013 = vmatpush1.bf16.xpose.msra.mxu0 0
    %1014 = vmatprep.subr.bf16.mxu0 0
    %1015 = vmatpush1.bf16.xpose.msra.mxu0 0
    %1016 = vmatprep.subr.bf16.mxu0 0
    %1017 = vmatpush1.bf16.xpose.msra.mxu0 0
    %1018 = vmatprep.mubr.bf16.mxu0 0
    %1019 = vmatmul.mubr.bf16.gmra.mrb[0].mxu0 %v975
    %v1020 = vpop.f32.mrb[0].mxu0
    %v1021 = vadd.f32 0.0, %v1020
    %v1022 = vpop.f32.mrb[0].mxu0
    %v1023 = vpop.f32.mrb[0].mxu0
    %v1024 = vadd.f32 0.0, %v1023
    %v1025 = vpop.f32.mrb[0].mxu0
    %1026 = vmatprep.mubr.bf16.mxu0 0
    %1027 = vmatmul.mubr.bf16.gmra.mrb[0].mxu0 %v978
    %v1028 = vpop.f32.mrb[0].mxu0
    %v1029 = vadd.f32 0.0, %v1028
    %v1030 = vpop.f32.mrb[0].mxu0
    %v1031 = vpop.f32.mrb[0].mxu0
    %v1032 = vpop.f32.mrb[0].mxu0
    %1033 = vdwg.mxu0
    %1034 = vrot.lane.b32.xlu0 %v290, 112
    %v1035 = vpop.permute.xlu0 %1034
    %1036 = vrot.lane.b32.xlu0 %v291, 112
    %v1037 = vpop.permute.xlu0 %1036
    %1038 = vrot.lane.b32.xlu0 %v290, 80
    %v1039 = vpop.permute.xlu0 %1038
    %1040 = vrot.lane.b32.xlu0 %v291, 80
    %v1041 = vpop.permute.xlu0 %1040
    %v1043 = vsel %vm298, %v1035, 0
    %v1046 = vsel %vm298, %v1037, 0
    %v1049 = vsel %vm298, %v1039, 0
    %v1052 = vsel %vm298, %v1041, 0
    %1054 = vmatprep.subr.bf16.mxu0 0
    %1055 = vmatpush1.bf16.xpose.msra.mxu0 %v1049
    %1056 = vmatprep.subr.bf16.mxu0 0
    %1057 = vmatpush1.bf16.xpose.msra.mxu0 %v1052
    %1058 = vmatprep.subr.bf16.mxu0 0
    %1059 = vmatpush1.bf16.xpose.msra.mxu0 0
    %1060 = vmatprep.subr.bf16.mxu0 0
    %1061 = vmatpush1.bf16.xpose.msra.mxu0 0
    %1062 = vmatprep.subr.bf16.mxu0 0
    %1063 = vmatpush1.bf16.xpose.msra.mxu0 0
    %1064 = vmatprep.subr.bf16.mxu0 0
    %1065 = vmatpush1.bf16.xpose.msra.mxu0 0
    %1066 = vmatprep.subr.bf16.mxu0 0
    %1067 = vmatpush1.bf16.xpose.msra.mxu0 0
    %1068 = vmatprep.subr.bf16.mxu0 0
    %1069 = vmatpush1.bf16.xpose.msra.mxu0 0
    %1070 = vmatprep.subr.bf16.mxu0 0
    %1071 = vmatpush1.bf16.xpose.msra.mxu0 0
    %1072 = vmatprep.subr.bf16.mxu0 0
    %1073 = vmatpush1.bf16.xpose.msra.mxu0 0
    %1074 = vmatprep.subr.bf16.mxu0 0
    %1075 = vmatpush1.bf16.xpose.msra.mxu0 0
    %1076 = vmatprep.subr.bf16.mxu0 0
    %1077 = vmatpush1.bf16.xpose.msra.mxu0 0
    %1078 = vmatprep.subr.bf16.mxu0 0
    %1079 = vmatpush1.bf16.xpose.msra.mxu0 0
    %1080 = vmatprep.subr.bf16.mxu0 0
    %1081 = vmatpush1.bf16.xpose.msra.mxu0 0
    %1082 = vmatprep.subr.bf16.mxu0 0
    %1083 = vmatpush1.bf16.xpose.msra.mxu0 0
    %1084 = vmatprep.subr.bf16.mxu0 0
    %1085 = vmatpush1.bf16.xpose.msra.mxu0 0
    %1086 = vmatprep.mubr.bf16.mxu0 0
    %1087 = vmatmul.mubr.bf16.gmra.mrb[0].mxu0 %v1043
    %v1088 = vpop.f32.mrb[0].mxu0
    %v1089 = vadd.f32 0.0, %v1088
    %v1090 = vpop.f32.mrb[0].mxu0
    %v1091 = vpop.f32.mrb[0].mxu0
    %v1092 = vadd.f32 0.0, %v1091
    %v1093 = vpop.f32.mrb[0].mxu0
    %1094 = vmatprep.mubr.bf16.mxu0 0
    %1095 = vmatmul.mubr.bf16.gmra.mrb[0].mxu0 %v1046
    %v1096 = vpop.f32.mrb[0].mxu0
    %v1097 = vadd.f32 0.0, %v1096
    %v1098 = vpop.f32.mrb[0].mxu0
    %v1099 = vpop.f32.mrb[0].mxu0
    %v1100 = vpop.f32.mrb[0].mxu0
    %1101 = vdwg.mxu0
    %v1102 = vmul.f32 %v1021, 0.35355338
    %v1103 = vmul.f32 %v1024, 0.35355338
    %v1104 = vmul.f32 %v1029, 0.35355338
    %v1105 = vmul.f32 %v1089, 0.35355338
    %v1106 = vmul.f32 %v1092, 0.35355338
    %v1107 = vmul.f32 %v1097, 0.35355338
    %v1108 = vsel %vm431, %v1102, -inf
    %1109 = vmax.xlane.f32.xlu0 %v1108
    %v1110 = vpop.xlane.xlu0 %1109
    %v1111 = vsel %vm431, %v1103, -inf
    %1112 = vmax.xlane.f32.xlu0 %v1111
    %v1113 = vpop.xlane.xlu0 %1112
    %v1114 = vsel %vm438, %v1104, -inf
    %1115 = vmax.xlane.f32.xlu0 %v1114
    %v1116 = vpop.xlane.xlu0 %1115
    %v1117 = vsel %vm431, %v1105, -inf
    %1118 = vmax.xlane.f32.xlu0 %v1117
    %v1119 = vpop.xlane.xlu0 %1118
    %v1120 = vsel %vm431, %v1106, -inf
    %1121 = vmax.xlane.f32.xlu0 %v1120
    %v1122 = vpop.xlane.xlu0 %1121
    %v1123 = vsel %vm438, %v1107, -inf
    %1124 = vmax.xlane.f32.xlu0 %v1123
    %v1125 = vpop.xlane.xlu0 %1124
    %v1126 = vsub.f32 %v1102, %v1110
    %v1127 = vsub.f32 %v1103, %v1113
    %v1128 = vsub.f32 %v1104, %v1116
    %v1129 = vsub.f32 %v1105, %v1119
    %v1130 = vsub.f32 %v1106, %v1122
    %v1131 = vsub.f32 %v1107, %v1125
    %v1132 = vmul.f32 %v1126, 1.442695
    %v1133 = vpow.pop %v1132
    %v1134 = vmul.f32 %v1127, 1.442695
    %v1135 = vpow.pop %v1134
    %v1136 = vmul.f32 %v1128, 1.442695
    %v1137 = vpow.pop %v1136
    %v1138 = vmul.f32 %v1129, 1.442695
    %v1139 = vpow.pop %v1138
    %v1140 = vmul.f32 %v1130, 1.442695
    %v1141 = vpow.pop %v1140
    %v1142 = vmul.f32 %v1131, 1.442695
    %v1143 = vpow.pop %v1142
    %v1144 = vsel %vm431, %v1133, 0.0
    %1145 = vadd.xlane.f32.xlu0 %v1144
    %v1146 = vpop.xlane.xlu0 %1145
    %v1147 = vsel %vm431, %v1135, 0.0
    %1148 = vadd.xlane.f32.xlu0 %v1147
    %v1149 = vpop.xlane.xlu0 %1148
    %v1150 = vsel %vm438, %v1137, 0.0
    %1151 = vadd.xlane.f32.xlu0 %v1150
    %v1152 = vpop.xlane.xlu0 %1151
    %v1153 = vsel %vm431, %v1139, 0.0
    %1154 = vadd.xlane.f32.xlu0 %v1153
    %v1155 = vpop.xlane.xlu0 %1154
    %v1156 = vsel %vm431, %v1141, 0.0
    %1157 = vadd.xlane.f32.xlu0 %v1156
    %v1158 = vpop.xlane.xlu0 %1157
    %v1159 = vsel %vm438, %v1143, 0.0
    %1160 = vadd.xlane.f32.xlu0 %v1159
    %v1161 = vpop.xlane.xlu0 %1160
    %v1162 = vrcp.pop %v1146
    %v1163 = vrcp.pop %v1149
    %v1164 = vrcp.pop %v1152
    %v1165 = vrcp.pop %v1155
    %v1166 = vrcp.pop %v1158
    %v1167 = vrcp.pop %v1161
    %v1168 = vmul.f32 %v1133, %v1162
    %v1169 = vmul.f32 %v1135, %v1163
    %v1170 = vmul.f32 %v1137, %v1164
    %v1171 = vmul.f32 %v1139, %v1165
    %v1172 = vmul.f32 %v1141, %v1166
    %v1173 = vmul.f32 %v1143, %v1167
    %v1174 = vpack.c.bf16 %v1169, %v1168
    %v1175 = vpack.c.bf16 %v1170, %v1170
    %v1176 = vpack.c.bf16 %v1172, %v1171
    %v1177 = vpack.c.bf16 %v1173, %v1173
    %1178 = vrot.lane.b32.xlu0 %v288, 48
    %v1179 = vpop.permute.xlu0 %1178
    %1180 = vrot.lane.b32.xlu0 %v289, 48
    %v1181 = vpop.permute.xlu0 %1180
    %v1184 = vsel %vm431, %v1174, 0
    %v1187 = vsel %vm431, %v1175, 0
    %v1190 = vand.u32 %v1181, %v516
    %1192 = vmatprep.subr.bf16.mxu0 0
    %1193 = vmatpush1.bf16.msra.mxu0 %v1179
    %1194 = vmatprep.subr.bf16.mxu0 0
    %1195 = vmatpush1.bf16.msra.mxu0 %v1190
    %1196 = vmatprep.subr.bf16.mxu0 0
    %1197 = vmatpush1.bf16.msra.mxu0 0
    %1198 = vmatprep.subr.bf16.mxu0 0
    %1199 = vmatpush1.bf16.msra.mxu0 0
    %1200 = vmatprep.subr.bf16.mxu0 0
    %1201 = vmatpush1.bf16.msra.mxu0 0
    %1202 = vmatprep.subr.bf16.mxu0 0
    %1203 = vmatpush1.bf16.msra.mxu0 0
    %1204 = vmatprep.subr.bf16.mxu0 0
    %1205 = vmatpush1.bf16.msra.mxu0 0
    %1206 = vmatprep.subr.bf16.mxu0 0
    %1207 = vmatpush1.bf16.msra.mxu0 0
    %1208 = vmatprep.subr.bf16.mxu0 0
    %1209 = vmatpush1.bf16.msra.mxu0 0
    %1210 = vmatprep.subr.bf16.mxu0 0
    %1211 = vmatpush1.bf16.msra.mxu0 0
    %1212 = vmatprep.subr.bf16.mxu0 0
    %1213 = vmatpush1.bf16.msra.mxu0 0
    %1214 = vmatprep.subr.bf16.mxu0 0
    %1215 = vmatpush1.bf16.msra.mxu0 0
    %1216 = vmatprep.subr.bf16.mxu0 0
    %1217 = vmatpush1.bf16.msra.mxu0 0
    %1218 = vmatprep.subr.bf16.mxu0 0
    %1219 = vmatpush1.bf16.msra.mxu0 0
    %1220 = vmatprep.subr.bf16.mxu0 0
    %1221 = vmatpush1.bf16.msra.mxu0 0
    %1222 = vmatprep.subr.bf16.mxu0 0
    %1223 = vmatpush1.bf16.msra.mxu0 0
    %1224 = vmatprep.mubr.bf16.mxu0 0
    %1225 = vmatmul.mubr.bf16.gmra.mrb[0].mxu0 %v1184
    %v1226 = vpop.f32.mrb[0].mxu0
    %v1227 = vadd.f32 0.0, %v1226
    %v1228 = vpop.f32.mrb[0].mxu0
    %v1229 = vpop.f32.mrb[0].mxu0
    %v1230 = vadd.f32 0.0, %v1229
    %v1231 = vpop.f32.mrb[0].mxu0
    %1232 = vmatprep.mubr.bf16.mxu0 0
    %1233 = vmatmul.mubr.bf16.gmra.mrb[0].mxu0 %v1187
    %v1234 = vpop.f32.mrb[0].mxu0
    %v1235 = vadd.f32 0.0, %v1234
    %v1236 = vpop.f32.mrb[0].mxu0
    %v1237 = vpop.f32.mrb[0].mxu0
    %v1238 = vpop.f32.mrb[0].mxu0
    %1239 = vdwg.mxu0
    %1240 = vrot.lane.b32.xlu0 %v290, 48
    %v1241 = vpop.permute.xlu0 %1240
    %1242 = vrot.lane.b32.xlu0 %v291, 48
    %v1243 = vpop.permute.xlu0 %1242
    %v1246 = vsel %vm431, %v1176, 0
    %v1249 = vsel %vm431, %v1177, 0
    %v1252 = vand.u32 %v1243, %v516
    %1254 = vmatprep.subr.bf16.mxu0 0
    %1255 = vmatpush1.bf16.msra.mxu0 %v1241
    %1256 = vmatprep.subr.bf16.mxu0 0
    %1257 = vmatpush1.bf16.msra.mxu0 %v1252
    %1258 = vmatprep.subr.bf16.mxu0 0
    %1259 = vmatpush1.bf16.msra.mxu0 0
    %1260 = vmatprep.subr.bf16.mxu0 0
    %1261 = vmatpush1.bf16.msra.mxu0 0
    %1262 = vmatprep.subr.bf16.mxu0 0
    %1263 = vmatpush1.bf16.msra.mxu0 0
    %1264 = vmatprep.subr.bf16.mxu0 0
    %1265 = vmatpush1.bf16.msra.mxu0 0
    %1266 = vmatprep.subr.bf16.mxu0 0
    %1267 = vmatpush1.bf16.msra.mxu0 0
    %1268 = vmatprep.subr.bf16.mxu0 0
    %1269 = vmatpush1.bf16.msra.mxu0 0
    %1270 = vmatprep.subr.bf16.mxu0 0
    %1271 = vmatpush1.bf16.msra.mxu0 0
    %1272 = vmatprep.subr.bf16.mxu0 0
    %1273 = vmatpush1.bf16.msra.mxu0 0
    %1274 = vmatprep.subr.bf16.mxu0 0
    %1275 = vmatpush1.bf16.msra.mxu0 0
    %1276 = vmatprep.subr.bf16.mxu0 0
    %1277 = vmatpush1.bf16.msra.mxu0 0
    %1278 = vmatprep.subr.bf16.mxu0 0
    %1279 = vmatpush1.bf16.msra.mxu0 0
    %1280 = vmatprep.subr.bf16.mxu0 0
    %1281 = vmatpush1.bf16.msra.mxu0 0
    %1282 = vmatprep.subr.bf16.mxu0 0
    %1283 = vmatpush1.bf16.msra.mxu0 0
    %1284 = vmatprep.subr.bf16.mxu0 0
    %1285 = vmatpush1.bf16.msra.mxu0 0
    %1286 = vmatprep.mubr.bf16.mxu0 0
    %1287 = vmatmul.mubr.bf16.gmra.mrb[0].mxu0 %v1246
    %v1288 = vpop.f32.mrb[0].mxu0
    %v1289 = vadd.f32 0.0, %v1288
    %v1290 = vpop.f32.mrb[0].mxu0
    %v1291 = vpop.f32.mrb[0].mxu0
    %v1292 = vadd.f32 0.0, %v1291
    %v1293 = vpop.f32.mrb[0].mxu0
    %1294 = vmatprep.mubr.bf16.mxu0 0
    %1295 = vmatmul.mubr.bf16.gmra.mrb[0].mxu0 %v1249
    %v1296 = vpop.f32.mrb[0].mxu0
    %v1297 = vadd.f32 0.0, %v1296
    %v1298 = vpop.f32.mrb[0].mxu0
    %v1299 = vpop.f32.mrb[0].mxu0
    %v1300 = vpop.f32.mrb[0].mxu0
    %1301 = vdwg.mxu0
    %1302 = vrot.lane.b32.xlu0 %v288, 104
    %v1303 = vpop.permute.xlu0 %1302
    %1304 = vrot.lane.b32.xlu0 %v289, 104
    %v1305 = vpop.permute.xlu0 %1304
    %1306 = vrot.lane.b32.xlu0 %v288, 72
    %v1307 = vpop.permute.xlu0 %1306
    %1308 = vrot.lane.b32.xlu0 %v289, 72
    %v1309 = vpop.permute.xlu0 %1308
    %v1311 = vsel %vm298, %v1303, 0
    %v1314 = vsel %vm298, %v1305, 0
    %v1317 = vsel %vm298, %v1307, 0
    %v1320 = vsel %vm298, %v1309, 0
    %1322 = vmatprep.subr.bf16.mxu0 0
    %1323 = vmatpush1.bf16.xpose.msra.mxu0 %v1317
    %1324 = vmatprep.subr.bf16.mxu0 0
    %1325 = vmatpush1.bf16.xpose.msra.mxu0 %v1320
    %1326 = vmatprep.subr.bf16.mxu0 0
    %1327 = vmatpush1.bf16.xpose.msra.mxu0 0
    %1328 = vmatprep.subr.bf16.mxu0 0
    %1329 = vmatpush1.bf16.xpose.msra.mxu0 0
    %1330 = vmatprep.subr.bf16.mxu0 0
    %1331 = vmatpush1.bf16.xpose.msra.mxu0 0
    %1332 = vmatprep.subr.bf16.mxu0 0
    %1333 = vmatpush1.bf16.xpose.msra.mxu0 0
    %1334 = vmatprep.subr.bf16.mxu0 0
    %1335 = vmatpush1.bf16.xpose.msra.mxu0 0
    %1336 = vmatprep.subr.bf16.mxu0 0
    %1337 = vmatpush1.bf16.xpose.msra.mxu0 0
    %1338 = vmatprep.subr.bf16.mxu0 0
    %1339 = vmatpush1.bf16.xpose.msra.mxu0 0
    %1340 = vmatprep.subr.bf16.mxu0 0
    %1341 = vmatpush1.bf16.xpose.msra.mxu0 0
    %1342 = vmatprep.subr.bf16.mxu0 0
    %1343 = vmatpush1.bf16.xpose.msra.mxu0 0
    %1344 = vmatprep.subr.bf16.mxu0 0
    %1345 = vmatpush1.bf16.xpose.msra.mxu0 0
    %1346 = vmatprep.subr.bf16.mxu0 0
    %1347 = vmatpush1.bf16.xpose.msra.mxu0 0
    %1348 = vmatprep.subr.bf16.mxu0 0
    %1349 = vmatpush1.bf16.xpose.msra.mxu0 0
    %1350 = vmatprep.subr.bf16.mxu0 0
    %1351 = vmatpush1.bf16.xpose.msra.mxu0 0
    %1352 = vmatprep.subr.bf16.mxu0 0
    %1353 = vmatpush1.bf16.xpose.msra.mxu0 0
    %1354 = vmatprep.mubr.bf16.mxu0 0
    %1355 = vmatmul.mubr.bf16.gmra.mrb[0].mxu0 %v1311
    %v1356 = vpop.f32.mrb[0].mxu0
    %v1357 = vadd.f32 0.0, %v1356
    %v1358 = vpop.f32.mrb[0].mxu0
    %v1359 = vpop.f32.mrb[0].mxu0
    %v1360 = vadd.f32 0.0, %v1359
    %v1361 = vpop.f32.mrb[0].mxu0
    %1362 = vmatprep.mubr.bf16.mxu0 0
    %1363 = vmatmul.mubr.bf16.gmra.mrb[0].mxu0 %v1314
    %v1364 = vpop.f32.mrb[0].mxu0
    %v1365 = vadd.f32 0.0, %v1364
    %v1366 = vpop.f32.mrb[0].mxu0
    %v1367 = vpop.f32.mrb[0].mxu0
    %v1368 = vpop.f32.mrb[0].mxu0
    %1369 = vdwg.mxu0
    %1370 = vrot.lane.b32.xlu0 %v290, 104
    %v1371 = vpop.permute.xlu0 %1370
    %1372 = vrot.lane.b32.xlu0 %v291, 104
    %v1373 = vpop.permute.xlu0 %1372
    %1374 = vrot.lane.b32.xlu0 %v290, 72
    %v1375 = vpop.permute.xlu0 %1374
    %1376 = vrot.lane.b32.xlu0 %v291, 72
    %v1377 = vpop.permute.xlu0 %1376
    %v1379 = vsel %vm298, %v1371, 0
    %v1382 = vsel %vm298, %v1373, 0
    %v1385 = vsel %vm298, %v1375, 0
    %v1388 = vsel %vm298, %v1377, 0
    %1390 = vmatprep.subr.bf16.mxu0 0
    %1391 = vmatpush1.bf16.xpose.msra.mxu0 %v1385
    %1392 = vmatprep.subr.bf16.mxu0 0
    %1393 = vmatpush1.bf16.xpose.msra.mxu0 %v1388
    %1394 = vmatprep.subr.bf16.mxu0 0
    %1395 = vmatpush1.bf16.xpose.msra.mxu0 0
    %1396 = vmatprep.subr.bf16.mxu0 0
    %1397 = vmatpush1.bf16.xpose.msra.mxu0 0
    %1398 = vmatprep.subr.bf16.mxu0 0
    %1399 = vmatpush1.bf16.xpose.msra.mxu0 0
    %1400 = vmatprep.subr.bf16.mxu0 0
    %1401 = vmatpush1.bf16.xpose.msra.mxu0 0
    %1402 = vmatprep.subr.bf16.mxu0 0
    %1403 = vmatpush1.bf16.xpose.msra.mxu0 0
    %1404 = vmatprep.subr.bf16.mxu0 0
    %1405 = vmatpush1.bf16.xpose.msra.mxu0 0
    %1406 = vmatprep.subr.bf16.mxu0 0
    %1407 = vmatpush1.bf16.xpose.msra.mxu0 0
    %1408 = vmatprep.subr.bf16.mxu0 0
    %1409 = vmatpush1.bf16.xpose.msra.mxu0 0
    %1410 = vmatprep.subr.bf16.mxu0 0
    %1411 = vmatpush1.bf16.xpose.msra.mxu0 0
    %1412 = vmatprep.subr.bf16.mxu0 0
    %1413 = vmatpush1.bf16.xpose.msra.mxu0 0
    %1414 = vmatprep.subr.bf16.mxu0 0
    %1415 = vmatpush1.bf16.xpose.msra.mxu0 0
    %1416 = vmatprep.subr.bf16.mxu0 0
    %1417 = vmatpush1.bf16.xpose.msra.mxu0 0
    %1418 = vmatprep.subr.bf16.mxu0 0
    %1419 = vmatpush1.bf16.xpose.msra.mxu0 0
    %1420 = vmatprep.subr.bf16.mxu0 0
    %1421 = vmatpush1.bf16.xpose.msra.mxu0 0
    %1422 = vmatprep.mubr.bf16.mxu0 0
    %1423 = vmatmul.mubr.bf16.gmra.mrb[0].mxu0 %v1379
    %v1424 = vpop.f32.mrb[0].mxu0
    %v1425 = vadd.f32 0.0, %v1424
    %v1426 = vpop.f32.mrb[0].mxu0
    %v1427 = vpop.f32.mrb[0].mxu0
    %v1428 = vadd.f32 0.0, %v1427
    %v1429 = vpop.f32.mrb[0].mxu0
    %1430 = vmatprep.mubr.bf16.mxu0 0
    %1431 = vmatmul.mubr.bf16.gmra.mrb[0].mxu0 %v1382
    %v1432 = vpop.f32.mrb[0].mxu0
    %v1433 = vadd.f32 0.0, %v1432
    %v1434 = vpop.f32.mrb[0].mxu0
    %v1435 = vpop.f32.mrb[0].mxu0
    %v1436 = vpop.f32.mrb[0].mxu0
    %1437 = vdwg.mxu0
    %v1438 = vmul.f32 %v1357, 0.35355338
    %v1439 = vmul.f32 %v1360, 0.35355338
    %v1440 = vmul.f32 %v1365, 0.35355338
    %v1441 = vmul.f32 %v1425, 0.35355338
    %v1442 = vmul.f32 %v1428, 0.35355338
    %v1443 = vmul.f32 %v1433, 0.35355338
    %v1444 = vsel %vm431, %v1438, -inf
    %1445 = vmax.xlane.f32.xlu0 %v1444
    %v1446 = vpop.xlane.xlu0 %1445
    %v1447 = vsel %vm431, %v1439, -inf
    %1448 = vmax.xlane.f32.xlu0 %v1447
    %v1449 = vpop.xlane.xlu0 %1448
    %v1450 = vsel %vm438, %v1440, -inf
    %1451 = vmax.xlane.f32.xlu0 %v1450
    %v1452 = vpop.xlane.xlu0 %1451
    %v1453 = vsel %vm431, %v1441, -inf
    %1454 = vmax.xlane.f32.xlu0 %v1453
    %v1455 = vpop.xlane.xlu0 %1454
    %v1456 = vsel %vm431, %v1442, -inf
    %1457 = vmax.xlane.f32.xlu0 %v1456
    %v1458 = vpop.xlane.xlu0 %1457
    %v1459 = vsel %vm438, %v1443, -inf
    %1460 = vmax.xlane.f32.xlu0 %v1459
    %v1461 = vpop.xlane.xlu0 %1460
    %v1462 = vsub.f32 %v1438, %v1446
    %v1463 = vsub.f32 %v1439, %v1449
    %v1464 = vsub.f32 %v1440, %v1452
    %v1465 = vsub.f32 %v1441, %v1455
    %v1466 = vsub.f32 %v1442, %v1458
    %v1467 = vsub.f32 %v1443, %v1461
    %v1468 = vmul.f32 %v1462, 1.442695
    %v1469 = vpow.pop %v1468
    %v1470 = vmul.f32 %v1463, 1.442695
    %v1471 = vpow.pop %v1470
    %v1472 = vmul.f32 %v1464, 1.442695
    %v1473 = vpow.pop %v1472
    %v1474 = vmul.f32 %v1465, 1.442695
    %v1475 = vpow.pop %v1474
    %v1476 = vmul.f32 %v1466, 1.442695
    %v1477 = vpow.pop %v1476
    %v1478 = vmul.f32 %v1467, 1.442695
    %v1479 = vpow.pop %v1478
    %v1480 = vsel %vm431, %v1469, 0.0
    %1481 = vadd.xlane.f32.xlu0 %v1480
    %v1482 = vpop.xlane.xlu0 %1481
    %v1483 = vsel %vm431, %v1471, 0.0
    %1484 = vadd.xlane.f32.xlu0 %v1483
    %v1485 = vpop.xlane.xlu0 %1484
    %v1486 = vsel %vm438, %v1473, 0.0
    %1487 = vadd.xlane.f32.xlu0 %v1486
    %v1488 = vpop.xlane.xlu0 %1487
    %v1489 = vsel %vm431, %v1475, 0.0
    %1490 = vadd.xlane.f32.xlu0 %v1489
    %v1491 = vpop.xlane.xlu0 %1490
    %v1492 = vsel %vm431, %v1477, 0.0
    %1493 = vadd.xlane.f32.xlu0 %v1492
    %v1494 = vpop.xlane.xlu0 %1493
    %v1495 = vsel %vm438, %v1479, 0.0
    %1496 = vadd.xlane.f32.xlu0 %v1495
    %v1497 = vpop.xlane.xlu0 %1496
    %v1498 = vrcp.pop %v1482
    %v1499 = vrcp.pop %v1485
    %v1500 = vrcp.pop %v1488
    %v1501 = vrcp.pop %v1491
    %v1502 = vrcp.pop %v1494
    %v1503 = vrcp.pop %v1497
    %v1504 = vmul.f32 %v1469, %v1498
    %v1505 = vmul.f32 %v1471, %v1499
    %v1506 = vmul.f32 %v1473, %v1500
    %v1507 = vmul.f32 %v1475, %v1501
    %v1508 = vmul.f32 %v1477, %v1502
    %v1509 = vmul.f32 %v1479, %v1503
    %v1510 = vpack.c.bf16 %v1505, %v1504
    %v1511 = vpack.c.bf16 %v1506, %v1506
    %v1512 = vpack.c.bf16 %v1508, %v1507
    %v1513 = vpack.c.bf16 %v1509, %v1509
    %1514 = vrot.lane.b32.xlu0 %v288, 40
    %v1515 = vpop.permute.xlu0 %1514
    %1516 = vrot.lane.b32.xlu0 %v289, 40
    %v1517 = vpop.permute.xlu0 %1516
    %v1520 = vsel %vm431, %v1510, 0
    %v1523 = vsel %vm431, %v1511, 0
    %v1526 = vand.u32 %v1517, %v516
    %1528 = vmatprep.subr.bf16.mxu0 0
    %1529 = vmatpush1.bf16.msra.mxu0 %v1515
    %1530 = vmatprep.subr.bf16.mxu0 0
    %1531 = vmatpush1.bf16.msra.mxu0 %v1526
    %1532 = vmatprep.subr.bf16.mxu0 0
    %1533 = vmatpush1.bf16.msra.mxu0 0
    %1534 = vmatprep.subr.bf16.mxu0 0
    %1535 = vmatpush1.bf16.msra.mxu0 0
    %1536 = vmatprep.subr.bf16.mxu0 0
    %1537 = vmatpush1.bf16.msra.mxu0 0
    %1538 = vmatprep.subr.bf16.mxu0 0
    %1539 = vmatpush1.bf16.msra.mxu0 0
    %1540 = vmatprep.subr.bf16.mxu0 0
    %1541 = vmatpush1.bf16.msra.mxu0 0
    %1542 = vmatprep.subr.bf16.mxu0 0
    %1543 = vmatpush1.bf16.msra.mxu0 0
    %1544 = vmatprep.subr.bf16.mxu0 0
    %1545 = vmatpush1.bf16.msra.mxu0 0
    %1546 = vmatprep.subr.bf16.mxu0 0
    %1547 = vmatpush1.bf16.msra.mxu0 0
    %1548 = vmatprep.subr.bf16.mxu0 0
    %1549 = vmatpush1.bf16.msra.mxu0 0
    %1550 = vmatprep.subr.bf16.mxu0 0
    %1551 = vmatpush1.bf16.msra.mxu0 0
    %1552 = vmatprep.subr.bf16.mxu0 0
    %1553 = vmatpush1.bf16.msra.mxu0 0
    %1554 = vmatprep.subr.bf16.mxu0 0
    %1555 = vmatpush1.bf16.msra.mxu0 0
    %1556 = vmatprep.subr.bf16.mxu0 0
    %1557 = vmatpush1.bf16.msra.mxu0 0
    %1558 = vmatprep.subr.bf16.mxu0 0
    %1559 = vmatpush1.bf16.msra.mxu0 0
    %1560 = vmatprep.mubr.bf16.mxu0 0
    %1561 = vmatmul.mubr.bf16.gmra.mrb[0].mxu0 %v1520
    %v1562 = vpop.f32.mrb[0].mxu0
    %v1563 = vadd.f32 0.0, %v1562
    %v1564 = vpop.f32.mrb[0].mxu0
    %v1565 = vpop.f32.mrb[0].mxu0
    %v1566 = vadd.f32 0.0, %v1565
    %v1567 = vpop.f32.mrb[0].mxu0
    %1568 = vmatprep.mubr.bf16.mxu0 0
    %1569 = vmatmul.mubr.bf16.gmra.mrb[0].mxu0 %v1523
    %v1570 = vpop.f32.mrb[0].mxu0
    %v1571 = vadd.f32 0.0, %v1570
    %v1572 = vpop.f32.mrb[0].mxu0
    %v1573 = vpop.f32.mrb[0].mxu0
    %v1574 = vpop.f32.mrb[0].mxu0
    %1575 = vdwg.mxu0
    %1576 = vrot.lane.b32.xlu0 %v290, 40
    %v1577 = vpop.permute.xlu0 %1576
    %1578 = vrot.lane.b32.xlu0 %v291, 40
    %v1579 = vpop.permute.xlu0 %1578
    %v1582 = vsel %vm431, %v1512, 0
    %v1585 = vsel %vm431, %v1513, 0
    %v1588 = vand.u32 %v1579, %v516
    %1590 = vmatprep.subr.bf16.mxu0 0
    %1591 = vmatpush1.bf16.msra.mxu0 %v1577
    %1592 = vmatprep.subr.bf16.mxu0 0
    %1593 = vmatpush1.bf16.msra.mxu0 %v1588
    %1594 = vmatprep.subr.bf16.mxu0 0
    %1595 = vmatpush1.bf16.msra.mxu0 0
    %1596 = vmatprep.subr.bf16.mxu0 0
    %1597 = vmatpush1.bf16.msra.mxu0 0
    %1598 = vmatprep.subr.bf16.mxu0 0
    %1599 = vmatpush1.bf16.msra.mxu0 0
    %1600 = vmatprep.subr.bf16.mxu0 0
    %1601 = vmatpush1.bf16.msra.mxu0 0
    %1602 = vmatprep.subr.bf16.mxu0 0
    %1603 = vmatpush1.bf16.msra.mxu0 0
    %1604 = vmatprep.subr.bf16.mxu0 0
    %1605 = vmatpush1.bf16.msra.mxu0 0
    %1606 = vmatprep.subr.bf16.mxu0 0
    %1607 = vmatpush1.bf16.msra.mxu0 0
    %1608 = vmatprep.subr.bf16.mxu0 0
    %1609 = vmatpush1.bf16.msra.mxu0 0
    %1610 = vmatprep.subr.bf16.mxu0 0
    %1611 = vmatpush1.bf16.msra.mxu0 0
    %1612 = vmatprep.subr.bf16.mxu0 0
    %1613 = vmatpush1.bf16.msra.mxu0 0
    %1614 = vmatprep.subr.bf16.mxu0 0
    %1615 = vmatpush1.bf16.msra.mxu0 0
    %1616 = vmatprep.subr.bf16.mxu0 0
    %1617 = vmatpush1.bf16.msra.mxu0 0
    %1618 = vmatprep.subr.bf16.mxu0 0
    %1619 = vmatpush1.bf16.msra.mxu0 0
    %1620 = vmatprep.subr.bf16.mxu0 0
    %1621 = vmatpush1.bf16.msra.mxu0 0
    %1622 = vmatprep.mubr.bf16.mxu0 0
    %1623 = vmatmul.mubr.bf16.gmra.mrb[0].mxu0 %v1582
    %v1624 = vpop.f32.mrb[0].mxu0
    %v1625 = vadd.f32 0.0, %v1624
    %v1626 = vpop.f32.mrb[0].mxu0
    %v1627 = vpop.f32.mrb[0].mxu0
    %v1628 = vadd.f32 0.0, %v1627
    %v1629 = vpop.f32.mrb[0].mxu0
    %1630 = vmatprep.mubr.bf16.mxu0 0
    %1631 = vmatmul.mubr.bf16.gmra.mrb[0].mxu0 %v1585
    %v1632 = vpop.f32.mrb[0].mxu0
    %v1633 = vadd.f32 0.0, %v1632
    %v1634 = vpop.f32.mrb[0].mxu0
    %v1635 = vpop.f32.mrb[0].mxu0
    %v1636 = vpop.f32.mrb[0].mxu0
    %1637 = vdwg.mxu0
    %1644 = vrot.lane.b32.xlu0 %v891, 8
    %v1645 = vpop.permute.xlu0 %1644
    %1646 = vrot.lane.b32.xlu0 %v894, 8
    %v1647 = vpop.permute.xlu0 %1646
    %1648 = vrot.lane.b32.xlu0 %v899, 8
    %v1649 = vpop.permute.xlu0 %1648
    %1650 = vrot.lane.b32.xlu0 %v953, 8
    %v1651 = vpop.permute.xlu0 %1650
    %1652 = vrot.lane.b32.xlu0 %v956, 8
    %v1653 = vpop.permute.xlu0 %1652
    %1654 = vrot.lane.b32.xlu0 %v961, 8
    %v1655 = vpop.permute.xlu0 %1654
    %1668 = vrot.lane.b32.xlu0 %v1227, 16
    %v1669 = vpop.permute.xlu0 %1668
    %1670 = vrot.lane.b32.xlu0 %v1230, 16
    %v1671 = vpop.permute.xlu0 %1670
    %1672 = vrot.lane.b32.xlu0 %v1235, 16
    %v1673 = vpop.permute.xlu0 %1672
    %1674 = vrot.lane.b32.xlu0 %v1289, 16
    %v1675 = vpop.permute.xlu0 %1674
    %1676 = vrot.lane.b32.xlu0 %v1292, 16
    %v1677 = vpop.permute.xlu0 %1676
    %1678 = vrot.lane.b32.xlu0 %v1297, 16
    %v1679 = vpop.permute.xlu0 %1678
    %1692 = vrot.lane.b32.xlu0 %v1563, 24
    %v1693 = vpop.permute.xlu0 %1692
    %1694 = vrot.lane.b32.xlu0 %v1566, 24
    %v1695 = vpop.permute.xlu0 %1694
    %1696 = vrot.lane.b32.xlu0 %v1571, 24
    %v1697 = vpop.permute.xlu0 %1696
    %1698 = vrot.lane.b32.xlu0 %v1625, 24
    %v1699 = vpop.permute.xlu0 %1698
    %1700 = vrot.lane.b32.xlu0 %v1628, 24
    %v1701 = vpop.permute.xlu0 %1700
    %1702 = vrot.lane.b32.xlu0 %v1633, 24
    %v1703 = vpop.permute.xlu0 %1702
    %v1710 = vsel %vm298, %v555, %v1645
    %v1711 = vsel %vm298, %v558, %v1647
    %v1712 = vsel %vm298, %v563, %v1649
    %v1713 = vsel %vm298, %v617, %v1651
    %v1714 = vsel %vm298, %v620, %v1653
    %v1715 = vsel %vm298, %v625, %v1655
    %vm1716 = vcmask 130048
    %v1717 = vsel %vm1716, %v1710, %v1669
    %v1718 = vsel %vm1716, %v1711, %v1671
    %v1719 = vsel %vm1716, %v1712, %v1673
    %v1720 = vsel %vm1716, %v1713, %v1675
    %v1721 = vsel %vm1716, %v1714, %v1677
    %v1722 = vsel %vm1716, %v1715, %v1679
    %vm1723 = vcmask 195584
    %v1724 = vsel %vm1723, %v1717, %v1693
    %v1725 = vsel %vm1723, %v1718, %v1695
    %v1726 = vsel %vm1723, %v1719, %v1697
    %v1727 = vsel %vm1723, %v1720, %v1699
    %v1728 = vsel %vm1723, %v1721, %v1701
    %v1729 = vsel %vm1723, %v1722, %v1703
    %v1730 = vpack.c.bf16 %v1725, %v1724
    %v1731 = vpack.c.bf16 %v1726, %v1726
    %1732 = vrot.lane.b32.xlu0 %v178, 32
    %v1733 = vpop.permute.xlu0 %1732
    %1734 = vrot.lane.b32.xlu0 %v179, 32
    %v1735 = vpop.permute.xlu0 %1734
    %v1739 = vsel %vm72, %v1730, 0
    %v1742 = vsel %vm72, %v1731, 0
    %1744 = vmatprep.subr.bf16.mxu0 0
    %1745 = vmatpush1.bf16.msra.mxu0 %v1733
    %1746 = vmatprep.subr.bf16.mxu0 0
    %1747 = vmatpush1.bf16.msra.mxu0 %v1735
    %1748 = vmatprep.subr.bf16.mxu0 0
    %1749 = vmatpush1.bf16.msra.mxu0 0
    %1750 = vmatprep.subr.bf16.mxu0 0
    %1751 = vmatpush1.bf16.msra.mxu0 0
    %1752 = vmatprep.subr.bf16.mxu0 0
    %1753 = vmatpush1.bf16.msra.mxu0 0
    %1754 = vmatprep.subr.bf16.mxu0 0
    %1755 = vmatpush1.bf16.msra.mxu0 0
    %1756 = vmatprep.subr.bf16.mxu0 0
    %1757 = vmatpush1.bf16.msra.mxu0 0
    %1758 = vmatprep.subr.bf16.mxu0 0
    %1759 = vmatpush1.bf16.msra.mxu0 0
    %1760 = vmatprep.subr.bf16.mxu0 0
    %1761 = vmatpush1.bf16.msra.mxu0 0
    %1762 = vmatprep.subr.bf16.mxu0 0
    %1763 = vmatpush1.bf16.msra.mxu0 0
    %1764 = vmatprep.subr.bf16.mxu0 0
    %1765 = vmatpush1.bf16.msra.mxu0 0
    %1766 = vmatprep.subr.bf16.mxu0 0
    %1767 = vmatpush1.bf16.msra.mxu0 0
    %1768 = vmatprep.subr.bf16.mxu0 0
    %1769 = vmatpush1.bf16.msra.mxu0 0
    %1770 = vmatprep.subr.bf16.mxu0 0
    %1771 = vmatpush1.bf16.msra.mxu0 0
    %1772 = vmatprep.subr.bf16.mxu0 0
    %1773 = vmatpush1.bf16.msra.mxu0 0
    %1774 = vmatprep.subr.bf16.mxu0 0
    %1775 = vmatpush1.bf16.msra.mxu0 0
    %1776 = vmatprep.mubr.bf16.mxu0 0
    %1777 = vmatmul.mubr.bf16.gmra.mrb[0].mxu0 %v1739
    %v1778 = vpop.f32.mrb[0].mxu0
    %v1779 = vadd.f32 0.0, %v1778
    %v1780 = vpop.f32.mrb[0].mxu0
    %v1781 = vpop.f32.mrb[0].mxu0
    %v1782 = vadd.f32 0.0, %v1781
    %v1783 = vpop.f32.mrb[0].mxu0
    %1784 = vmatprep.mubr.bf16.mxu0 0
    %1785 = vmatmul.mubr.bf16.gmra.mrb[0].mxu0 %v1742
    %v1786 = vpop.f32.mrb[0].mxu0
    %v1787 = vadd.f32 0.0, %v1786
    %v1788 = vpop.f32.mrb[0].mxu0
    %v1789 = vpop.f32.mrb[0].mxu0
    %v1790 = vpop.f32.mrb[0].mxu0
    %1791 = vdwg.mxu0
    %v1792 = vpack.c.bf16 %v1728, %v1727
    %v1793 = vpack.c.bf16 %v1729, %v1729
    %v1795 = vsel %vm72, %v1792, 0
    %v1798 = vsel %vm72, %v1793, 0
    %1800 = vmatprep.subr.bf16.mxu0 0
    %1801 = vmatpush1.bf16.msra.mxu0 %v1733
    %1802 = vmatprep.subr.bf16.mxu0 0
    %1803 = vmatpush1.bf16.msra.mxu0 %v1735
    %1804 = vmatprep.subr.bf16.mxu0 0
    %1805 = vmatpush1.bf16.msra.mxu0 0
    %1806 = vmatprep.subr.bf16.mxu0 0
    %1807 = vmatpush1.bf16.msra.mxu0 0
    %1808 = vmatprep.subr.bf16.mxu0 0
    %1809 = vmatpush1.bf16.msra.mxu0 0
    %1810 = vmatprep.subr.bf16.mxu0 0
    %1811 = vmatpush1.bf16.msra.mxu0 0
    %1812 = vmatprep.subr.bf16.mxu0 0
    %1813 = vmatpush1.bf16.msra.mxu0 0
    %1814 = vmatprep.subr.bf16.mxu0 0
    %1815 = vmatpush1.bf16.msra.mxu0 0
    %1816 = vmatprep.subr.bf16.mxu0 0
    %1817 = vmatpush1.bf16.msra.mxu0 0
    %1818 = vmatprep.subr.bf16.mxu0 0
    %1819 = vmatpush1.bf16.msra.mxu0 0
    %1820 = vmatprep.subr.bf16.mxu0 0
    %1821 = vmatpush1.bf16.msra.mxu0 0
    %1822 = vmatprep.subr.bf16.mxu0 0
    %1823 = vmatpush1.bf16.msra.mxu0 0
    %1824 = vmatprep.subr.bf16.mxu0 0
    %1825 = vmatpush1.bf16.msra.mxu0 0
    %1826 = vmatprep.subr.bf16.mxu0 0
    %1827 = vmatpush1.bf16.msra.mxu0 0
    %1828 = vmatprep.subr.bf16.mxu0 0
    %1829 = vmatpush1.bf16.msra.mxu0 0
    %1830 = vmatprep.subr.bf16.mxu0 0
    %1831 = vmatpush1.bf16.msra.mxu0 0
    %1832 = vmatprep.mubr.bf16.mxu0 0
    %1833 = vmatmul.mubr.bf16.gmra.mrb[0].mxu0 %v1795
    %v1834 = vpop.f32.mrb[0].mxu0
    %v1835 = vadd.f32 0.0, %v1834
    %v1836 = vpop.f32.mrb[0].mxu0
    %v1837 = vpop.f32.mrb[0].mxu0
    %v1838 = vadd.f32 0.0, %v1837
    %v1839 = vpop.f32.mrb[0].mxu0
    %1840 = vmatprep.mubr.bf16.mxu0 0
    %1841 = vmatmul.mubr.bf16.gmra.mrb[0].mxu0 %v1798
    %v1842 = vpop.f32.mrb[0].mxu0
    %v1843 = vadd.f32 0.0, %v1842
    %v1844 = vpop.f32.mrb[0].mxu0
    %v1845 = vpop.f32.mrb[0].mxu0
    %v1846 = vpop.f32.mrb[0].mxu0
    %1847 = vdwg.mxu0
    %v1848 = vlaneseq
    %v1849 = vshrl.u32 %v1848, 7
    %v1850 = vsub.s32 0, %v1849
    %v1851 = vrot.slane %v67, %v1850
    %v1852 = vadd.f32 %v1779, %v1851
    %v1853 = vadd.f32 %v1782, %v1851
    %v1854 = vadd.f32 %v1787, %v1851
    %v1855 = vadd.f32 %v1835, %v1851
    %v1856 = vadd.f32 %v1838, %v1851
    %v1857 = vadd.f32 %v1843, %v1851
    %v1858 = vsel %vm72, %v1852, 0.0
    %1859 = vadd.xlane.f32.xlu0 %v1858
    %v1860 = vpop.xlane.xlu0 %1859
    %v1861 = vsel %vm72, %v1853, 0.0
    %1862 = vadd.xlane.f32.xlu0 %v1861
    %v1863 = vpop.xlane.xlu0 %1862
    %v1864 = vsel %vm79, %v1854, 0.0
    %1865 = vadd.xlane.f32.xlu0 %v1864
    %v1866 = vpop.xlane.xlu0 %1865
    %v1867 = vsel %vm72, %v1855, 0.0
    %1868 = vadd.xlane.f32.xlu0 %v1867
    %v1869 = vpop.xlane.xlu0 %1868
    %v1870 = vsel %vm72, %v1856, 0.0
    %1871 = vadd.xlane.f32.xlu0 %v1870
    %v1872 = vpop.xlane.xlu0 %1871
    %v1873 = vsel %vm79, %v1857, 0.0
    %1874 = vadd.xlane.f32.xlu0 %v1873
    %v1875 = vpop.xlane.xlu0 %1874
    %v1876 = vmul.f32 %v1860, %v89
    %v1877 = vmul.f32 %v1863, %v89
    %v1878 = vmul.f32 %v1866, %v89
    %v1879 = vmul.f32 %v1869, %v89
    %v1880 = vmul.f32 %v1872, %v89
    %v1881 = vmul.f32 %v1875, %v89
    %v1882 = vmul.f32 %v1852, %v1852
    %v1883 = vmul.f32 %v1853, %v1853
    %v1884 = vmul.f32 %v1854, %v1854
    %v1885 = vmul.f32 %v1855, %v1855
    %v1886 = vmul.f32 %v1856, %v1856
    %v1887 = vmul.f32 %v1857, %v1857
    %v1888 = vsel %vm72, %v1882, 0.0
    %1889 = vadd.xlane.f32.xlu0 %v1888
    %v1890 = vpop.xlane.xlu0 %1889
    %v1891 = vsel %vm72, %v1883, 0.0
    %1892 = vadd.xlane.f32.xlu0 %v1891
    %v1893 = vpop.xlane.xlu0 %1892
    %v1894 = vsel %vm79, %v1884, 0.0
    %1895 = vadd.xlane.f32.xlu0 %v1894
    %v1896 = vpop.xlane.xlu0 %1895
    %v1897 = vsel %vm72, %v1885, 0.0
    %1898 = vadd.xlane.f32.xlu0 %v1897
    %v1899 = vpop.xlane.xlu0 %1898
    %v1900 = vsel %vm72, %v1886, 0.0
    %1901 = vadd.xlane.f32.xlu0 %v1900
    %v1902 = vpop.xlane.xlu0 %1901
    %v1903 = vsel %vm79, %v1887, 0.0
    %1904 = vadd.xlane.f32.xlu0 %v1903
    %v1905 = vpop.xlane.xlu0 %1904
    %v1906 = vmul.f32 %v1890, %v89
    %v1907 = vmul.f32 %v1893, %v89
    %v1908 = vmul.f32 %v1896, %v89
    %v1909 = vmul.f32 %v1899, %v89
    %v1910 = vmul.f32 %v1902, %v89
    %v1911 = vmul.f32 %v1905, %v89
    %v1912 = vmul.f32 %v1876, %v1876
    %v1913 = vmul.f32 %v1877, %v1877
    %v1914 = vmul.f32 %v1878, %v1878
    %v1915 = vmul.f32 %v1879, %v1879
    %v1916 = vmul.f32 %v1880, %v1880
    %v1917 = vmul.f32 %v1881, %v1881
    %v1918 = vsub.f32 %v1906, %v1912
    %v1919 = vsub.f32 %v1907, %v1913
    %v1920 = vsub.f32 %v1908, %v1914
    %v1921 = vsub.f32 %v1909, %v1915
    %v1922 = vsub.f32 %v1910, %v1916
    %v1923 = vsub.f32 %v1911, %v1917
    %v1924 = vsub.f32 %v1852, %v1876
    %v1925 = vsub.f32 %v1853, %v1877
    %v1926 = vsub.f32 %v1854, %v1878
    %v1927 = vsub.f32 %v1855, %v1879
    %v1928 = vsub.f32 %v1856, %v1880
    %v1929 = vsub.f32 %v1857, %v1881
    %v1930 = vadd.f32 %v1918, 1e-05
    %v1931 = vadd.f32 %v1919, 1e-05
    %v1932 = vadd.f32 %v1920, 1e-05
    %v1933 = vadd.f32 %v1921, 1e-05
    %v1934 = vadd.f32 %v1922, 1e-05
    %v1935 = vadd.f32 %v1923, 1e-05
    %v1936 = vrsqrt.pop %v1930
    %v1937 = vrsqrt.pop %v1931
    %v1938 = vrsqrt.pop %v1932
    %v1939 = vrsqrt.pop %v1933
    %v1940 = vrsqrt.pop %v1934
    %v1941 = vrsqrt.pop %v1935
    %v1942 = vmul.f32 %v1924, %v1936
    %v1943 = vmul.f32 %v1925, %v1937
    %v1944 = vmul.f32 %v1926, %v1938
    %v1945 = vmul.f32 %v1927, %v1939
    %v1946 = vmul.f32 %v1928, %v1940
    %v1947 = vmul.f32 %v1929, %v1941
    %v1948 = vlaneseq
    %v1949 = vshrl.u32 %v1948, 7
    %v1950 = vsub.s32 0, %v1949
    %v1951 = vrot.slane %v68, %v1950
    %v1952 = vmul.f32 %v1942, %v1951
    %v1953 = vmul.f32 %v1943, %v1951
    %v1954 = vmul.f32 %v1944, %v1951
    %v1955 = vmul.f32 %v1945, %v1951
    %v1956 = vmul.f32 %v1946, %v1951
    %v1957 = vmul.f32 %v1947, %v1951
    %v1958 = vlaneseq
    %v1959 = vshrl.u32 %v1958, 7
    %v1960 = vsub.s32 0, %v1959
    %v1961 = vrot.slane %v69, %v1960
    %v1962 = vadd.f32 %v1952, %v1961
    %v1963 = vadd.f32 %v1953, %v1961
    %v1964 = vadd.f32 %v1954, %v1961
    %v1965 = vadd.f32 %v1955, %v1961
    %v1966 = vadd.f32 %v1956, %v1961
    %v1967 = vadd.f32 %v1957, %v1961
    %v1968 = vpack.c.bf16 %v1963, %v1962
    %v1969 = vpack.c.bf16 %v1964, %v1964
    %v1974 = vunpack.c.l.b16 %v45
    %v1975 = vunpack.c.l.b16 %v46
    %v1976 = vunpack.c.l.b16 %v47
    %v1977 = vunpack.c.l.b16 %v48
    %v1978 = vpack.c.b16 %v1975, %v1974
    %v1979 = vpack.c.b16 %v1977, %v1976
    %v1983 = vsel %vm72, %v1968, 0
    %v1986 = vsel %vm72, %v1969, 0
    %1988 = vmatprep.subr.bf16.mxu0 0
    %1989 = vmatpush1.bf16.msra.mxu0 %v1978
    %1990 = vmatprep.subr.bf16.mxu0 0
    %1991 = vmatpush1.bf16.msra.mxu0 %v1979
    %1992 = vmatprep.subr.bf16.mxu0 0
    %1993 = vmatpush1.bf16.msra.mxu0 0
    %1994 = vmatprep.subr.bf16.mxu0 0
    %1995 = vmatpush1.bf16.msra.mxu0 0
    %1996 = vmatprep.subr.bf16.mxu0 0
    %1997 = vmatpush1.bf16.msra.mxu0 0
    %1998 = vmatprep.subr.bf16.mxu0 0
    %1999 = vmatpush1.bf16.msra.mxu0 0
    %2000 = vmatprep.subr.bf16.mxu0 0
    %2001 = vmatpush1.bf16.msra.mxu0 0
    %2002 = vmatprep.subr.bf16.mxu0 0
    %2003 = vmatpush1.bf16.msra.mxu0 0
    %2004 = vmatprep.subr.bf16.mxu0 0
    %2005 = vmatpush1.bf16.msra.mxu0 0
    %2006 = vmatprep.subr.bf16.mxu0 0
    %2007 = vmatpush1.bf16.msra.mxu0 0
    %2008 = vmatprep.subr.bf16.mxu0 0
    %2009 = vmatpush1.bf16.msra.mxu0 0
    %2010 = vmatprep.subr.bf16.mxu0 0
    %2011 = vmatpush1.bf16.msra.mxu0 0
    %2012 = vmatprep.subr.bf16.mxu0 0
    %2013 = vmatpush1.bf16.msra.mxu0 0
    %2014 = vmatprep.subr.bf16.mxu0 0
    %2015 = vmatpush1.bf16.msra.mxu0 0
    %2016 = vmatprep.subr.bf16.mxu0 0
    %2017 = vmatpush1.bf16.msra.mxu0 0
    %2018 = vmatprep.subr.bf16.mxu0 0
    %2019 = vmatpush1.bf16.msra.mxu0 0
    %2020 = vmatprep.mubr.bf16.mxu0 0
    %2021 = vmatmul.mubr.bf16.gmra.mrb[0].mxu0 %v1983
    %v2022 = vpop.f32.mrb[0].mxu0
    %v2023 = vadd.f32 0.0, %v2022
    %v2024 = vpop.f32.mrb[0].mxu0
    %v2025 = vpop.f32.mrb[0].mxu0
    %v2026 = vadd.f32 0.0, %v2025
    %v2027 = vpop.f32.mrb[0].mxu0
    %2028 = vmatprep.mubr.bf16.mxu0 0
    %2029 = vmatmul.mubr.bf16.gmra.mrb[0].mxu0 %v1986
    %v2030 = vpop.f32.mrb[0].mxu0
    %v2031 = vadd.f32 0.0, %v2030
    %v2032 = vpop.f32.mrb[0].mxu0
    %v2033 = vpop.f32.mrb[0].mxu0
    %v2034 = vpop.f32.mrb[0].mxu0
    %2035 = vdwg.mxu0
    %v2036 = vpack.c.bf16 %v1966, %v1965
    %v2037 = vpack.c.bf16 %v1967, %v1967
    %v2039 = vsel %vm72, %v2036, 0
    %v2042 = vsel %vm72, %v2037, 0
    %2044 = vmatprep.subr.bf16.mxu0 0
    %2045 = vmatpush1.bf16.msra.mxu0 %v1978
    %2046 = vmatprep.subr.bf16.mxu0 0
    %2047 = vmatpush1.bf16.msra.mxu0 %v1979
    %2048 = vmatprep.subr.bf16.mxu0 0
    %2049 = vmatpush1.bf16.msra.mxu0 0
    %2050 = vmatprep.subr.bf16.mxu0 0
    %2051 = vmatpush1.bf16.msra.mxu0 0
    %2052 = vmatprep.subr.bf16.mxu0 0
    %2053 = vmatpush1.bf16.msra.mxu0 0
    %2054 = vmatprep.subr.bf16.mxu0 0
    %2055 = vmatpush1.bf16.msra.mxu0 0
    %2056 = vmatprep.subr.bf16.mxu0 0
    %2057 = vmatpush1.bf16.msra.mxu0 0
    %2058 = vmatprep.subr.bf16.mxu0 0
    %2059 = vmatpush1.bf16.msra.mxu0 0
    %2060 = vmatprep.subr.bf16.mxu0 0
    %2061 = vmatpush1.bf16.msra.mxu0 0
    %2062 = vmatprep.subr.bf16.mxu0 0
    %2063 = vmatpush1.bf16.msra.mxu0 0
    %2064 = vmatprep.subr.bf16.mxu0 0
    %2065 = vmatpush1.bf16.msra.mxu0 0
    %2066 = vmatprep.subr.bf16.mxu0 0
    %2067 = vmatpush1.bf16.msra.mxu0 0
    %2068 = vmatprep.subr.bf16.mxu0 0
    %2069 = vmatpush1.bf16.msra.mxu0 0
    %2070 = vmatprep.subr.bf16.mxu0 0
    %2071 = vmatpush1.bf16.msra.mxu0 0
    %2072 = vmatprep.subr.bf16.mxu0 0
    %2073 = vmatpush1.bf16.msra.mxu0 0
    %2074 = vmatprep.subr.bf16.mxu0 0
    %2075 = vmatpush1.bf16.msra.mxu0 0
    %2076 = vmatprep.mubr.bf16.mxu0 0
    %2077 = vmatmul.mubr.bf16.gmra.mrb[0].mxu0 %v2039
    %v2078 = vpop.f32.mrb[0].mxu0
    %v2079 = vadd.f32 0.0, %v2078
    %v2080 = vpop.f32.mrb[0].mxu0
    %v2081 = vpop.f32.mrb[0].mxu0
    %v2082 = vadd.f32 0.0, %v2081
    %v2083 = vpop.f32.mrb[0].mxu0
    %2084 = vmatprep.mubr.bf16.mxu0 0
    %2085 = vmatmul.mubr.bf16.gmra.mrb[0].mxu0 %v2042
    %v2086 = vpop.f32.mrb[0].mxu0
    %v2087 = vadd.f32 0.0, %v2086
    %v2088 = vpop.f32.mrb[0].mxu0
    %v2089 = vpop.f32.mrb[0].mxu0
    %v2090 = vpop.f32.mrb[0].mxu0
    %2091 = vdwg.mxu0
    %v2093 = vlaneseq
    %v2094 = vshrl.u32 %v2093, 7
    %v2095 = vsub.s32 0, %v2094
    %v2096 = vrot.slane %v71, %v2095
    %v2098 = vadd.f32 %v2023, %v2096
    %v2099 = vadd.f32 %v2026, %v2096
    %v2100 = vadd.f32 %v2031, %v2096
    %v2101 = vadd.f32 %v2079, %v2096
    %v2102 = vadd.f32 %v2082, %v2096
    %v2103 = vadd.f32 %v2087, %v2096
    %v2104 = vmul.f32 %v2098, %v2098
    %v2105 = vmul.f32 %v2099, %v2099
    %v2106 = vmul.f32 %v2100, %v2100
    %v2107 = vmul.f32 %v2101, %v2101
    %v2108 = vmul.f32 %v2102, %v2102
    %v2109 = vmul.f32 %v2103, %v2103
    %v2110 = vmul.f32 %v2098, %v2104
    %v2111 = vmul.f32 %v2099, %v2105
    %v2112 = vmul.f32 %v2100, %v2106
    %v2113 = vmul.f32 %v2101, %v2107
    %v2114 = vmul.f32 %v2102, %v2108
    %v2115 = vmul.f32 %v2103, %v2109
    %v2116 = vmul.f32 %v2110, 0.044715
    %v2117 = vmul.f32 %v2111, 0.044715
    %v2118 = vmul.f32 %v2112, 0.044715
    %v2119 = vmul.f32 %v2113, 0.044715
    %v2120 = vmul.f32 %v2114, 0.044715
    %v2121 = vmul.f32 %v2115, 0.044715
    %v2122 = vadd.f32 %v2098, %v2116
    %v2123 = vadd.f32 %v2099, %v2117
    %v2124 = vadd.f32 %v2100, %v2118
    %v2125 = vadd.f32 %v2101, %v2119
    %v2126 = vadd.f32 %v2102, %v2120
    %v2127 = vadd.f32 %v2103, %v2121
    %v2128 = vmul.f32 %v2122, 0.7978846
    %v2129 = vmul.f32 %v2123, 0.7978846
    %v2130 = vmul.f32 %v2124, 0.7978846
    %v2131 = vmul.f32 %v2125, 0.7978846
    %v2132 = vmul.f32 %v2126, 0.7978846
    %v2133 = vmul.f32 %v2127, 0.7978846
    %v2134 = vtanh.pop %v2128
    %v2135 = vtanh.pop %v2129
    %v2136 = vtanh.pop %v2130
    %v2137 = vtanh.pop %v2131
    %v2138 = vtanh.pop %v2132
    %v2139 = vtanh.pop %v2133
    %v2140 = vadd.f32 %v2134, 1.0
    %v2141 = vadd.f32 %v2135, 1.0
    %v2142 = vadd.f32 %v2136, 1.0
    %v2143 = vadd.f32 %v2137, 1.0
    %v2144 = vadd.f32 %v2138, 1.0
    %v2145 = vadd.f32 %v2139, 1.0
    %v2146 = vmul.f32 %v2140, 0.5
    %v2147 = vmul.f32 %v2141, 0.5
    %v2148 = vmul.f32 %v2142, 0.5
    %v2149 = vmul.f32 %v2143, 0.5
    %v2150 = vmul.f32 %v2144, 0.5
    %v2151 = vmul.f32 %v2145, 0.5
    %v2152 = vmul.f32 %v2098, %v2146
    %v2153 = vmul.f32 %v2099, %v2147
    %v2154 = vmul.f32 %v2100, %v2148
    %v2155 = vmul.f32 %v2101, %v2149
    %v2156 = vmul.f32 %v2102, %v2150
    %v2157 = vmul.f32 %v2103, %v2151
    %v2158 = vpack.c.bf16 %v2153, %v2152
    %v2159 = vpack.c.bf16 %v2154, %v2154
    %v2176 = vunpack.c.l.b16 %v49
    %v2177 = vunpack.c.l.b16 %v50
    %v2178 = vunpack.c.l.b16 %v51
    %v2179 = vunpack.c.l.b16 %v52
    %v2180 = vunpack.c.l.b16 %v53
    %v2181 = vunpack.c.l.b16 %v54
    %v2182 = vunpack.c.l.b16 %v55
    %v2183 = vunpack.c.l.b16 %v56
    %v2184 = vunpack.c.l.b16 %v57
    %v2185 = vunpack.c.l.b16 %v58
    %v2186 = vunpack.c.l.b16 %v59
    %v2187 = vunpack.c.l.b16 %v60
    %v2188 = vunpack.c.l.b16 %v61
    %v2189 = vunpack.c.l.b16 %v62
    %v2190 = vunpack.c.l.b16 %v63
    %v2191 = vunpack.c.l.b16 %v64
    %v2192 = vpack.c.b16 %v2177, %v2176
    %v2193 = vpack.c.b16 %v2179, %v2178
    %v2194 = vpack.c.b16 %v2181, %v2180
    %v2195 = vpack.c.b16 %v2183, %v2182
    %v2196 = vpack.c.b16 %v2185, %v2184
    %v2197 = vpack.c.b16 %v2187, %v2186
    %v2198 = vpack.c.b16 %v2189, %v2188
    %v2199 = vpack.c.b16 %v2191, %v2190
    %2208 = vmatprep.subr.bf16.mxu0 0
    %2209 = vmatpush1.bf16.msra.mxu0 %v2192
    %2210 = vmatprep.subr.bf16.mxu0 0
    %2211 = vmatpush1.bf16.msra.mxu0 %v2193
    %2212 = vmatprep.subr.bf16.mxu0 0
    %2213 = vmatpush1.bf16.msra.mxu0 %v2194
    %2214 = vmatprep.subr.bf16.mxu0 0
    %2215 = vmatpush1.bf16.msra.mxu0 %v2195
    %2216 = vmatprep.subr.bf16.mxu0 0
    %2217 = vmatpush1.bf16.msra.mxu0 %v2196
    %2218 = vmatprep.subr.bf16.mxu0 0
    %2219 = vmatpush1.bf16.msra.mxu0 %v2197
    %2220 = vmatprep.subr.bf16.mxu0 0
    %2221 = vmatpush1.bf16.msra.mxu0 %v2198
    %2222 = vmatprep.subr.bf16.mxu0 0
    %2223 = vmatpush1.bf16.msra.mxu0 %v2199
    %2224 = vmatprep.subr.bf16.mxu0 0
    %2225 = vmatpush1.bf16.msra.mxu0 0
    %2226 = vmatprep.subr.bf16.mxu0 0
    %2227 = vmatpush1.bf16.msra.mxu0 0
    %2228 = vmatprep.subr.bf16.mxu0 0
    %2229 = vmatpush1.bf16.msra.mxu0 0
    %2230 = vmatprep.subr.bf16.mxu0 0
    %2231 = vmatpush1.bf16.msra.mxu0 0
    %2232 = vmatprep.subr.bf16.mxu0 0
    %2233 = vmatpush1.bf16.msra.mxu0 0
    %2234 = vmatprep.subr.bf16.mxu0 0
    %2235 = vmatpush1.bf16.msra.mxu0 0
    %2236 = vmatprep.subr.bf16.mxu0 0
    %2237 = vmatpush1.bf16.msra.mxu0 0
    %2238 = vmatprep.subr.bf16.mxu0 0
    %2239 = vmatpush1.bf16.msra.mxu0 0
    %2240 = vmatprep.mubr.bf16.mxu0 0
    %2241 = vmatmul.mubr.bf16.gmra.mrb[0].mxu0 %v2158
    %v2242 = vpop.f32.mrb[0].mxu0
    %v2243 = vadd.f32 0.0, %v2242
    %v2244 = vpop.f32.mrb[0].mxu0
    %v2245 = vpop.f32.mrb[0].mxu0
    %v2246 = vadd.f32 0.0, %v2245
    %v2247 = vpop.f32.mrb[0].mxu0
    %2248 = vmatprep.mubr.bf16.mxu0 0
    %2249 = vmatmul.mubr.bf16.gmra.mrb[0].mxu0 %v2159
    %v2250 = vpop.f32.mrb[0].mxu0
    %v2251 = vadd.f32 0.0, %v2250
    %v2252 = vpop.f32.mrb[0].mxu0
    %v2253 = vpop.f32.mrb[0].mxu0
    %v2254 = vpop.f32.mrb[0].mxu0
    %2255 = vdwg.mxu0
    %v2256 = vpack.c.bf16 %v2156, %v2155
    %v2257 = vpack.c.bf16 %v2157, %v2157
    %2258 = vmatprep.subr.bf16.mxu0 0
    %2259 = vmatpush1.bf16.msra.mxu0 %v2192
    %2260 = vmatprep.subr.bf16.mxu0 0
    %2261 = vmatpush1.bf16.msra.mxu0 %v2193
    %2262 = vmatprep.subr.bf16.mxu0 0
    %2263 = vmatpush1.bf16.msra.mxu0 %v2194
    %2264 = vmatprep.subr.bf16.mxu0 0
    %2265 = vmatpush1.bf16.msra.mxu0 %v2195
    %2266 = vmatprep.subr.bf16.mxu0 0
    %2267 = vmatpush1.bf16.msra.mxu0 %v2196
    %2268 = vmatprep.subr.bf16.mxu0 0
    %2269 = vmatpush1.bf16.msra.mxu0 %v2197
    %2270 = vmatprep.subr.bf16.mxu0 0
    %2271 = vmatpush1.bf16.msra.mxu0 %v2198
    %2272 = vmatprep.subr.bf16.mxu0 0
    %2273 = vmatpush1.bf16.msra.mxu0 %v2199
    %2274 = vmatprep.subr.bf16.mxu0 0
    %2275 = vmatpush1.bf16.msra.mxu0 0
    %2276 = vmatprep.subr.bf16.mxu0 0
    %2277 = vmatpush1.bf16.msra.mxu0 0
    %2278 = vmatprep.subr.bf16.mxu0 0
    %2279 = vmatpush1.bf16.msra.mxu0 0
    %2280 = vmatprep.subr.bf16.mxu0 0
    %2281 = vmatpush1.bf16.msra.mxu0 0
    %2282 = vmatprep.subr.bf16.mxu0 0
    %2283 = vmatpush1.bf16.msra.mxu0 0
    %2284 = vmatprep.subr.bf16.mxu0 0
    %2285 = vmatpush1.bf16.msra.mxu0 0
    %2286 = vmatprep.subr.bf16.mxu0 0
    %2287 = vmatpush1.bf16.msra.mxu0 0
    %2288 = vmatprep.subr.bf16.mxu0 0
    %2289 = vmatpush1.bf16.msra.mxu0 0
    %2290 = vmatprep.mubr.bf16.mxu0 0
    %2291 = vmatmul.mubr.bf16.gmra.mrb[0].mxu0 %v2256
    %v2292 = vpop.f32.mrb[0].mxu0
    %v2293 = vadd.f32 0.0, %v2292
    %v2294 = vpop.f32.mrb[0].mxu0
    %v2295 = vpop.f32.mrb[0].mxu0
    %v2296 = vadd.f32 0.0, %v2295
    %v2297 = vpop.f32.mrb[0].mxu0
    %2298 = vmatprep.mubr.bf16.mxu0 0
    %2299 = vmatmul.mubr.bf16.gmra.mrb[0].mxu0 %v2257
    %v2300 = vpop.f32.mrb[0].mxu0
    %v2301 = vadd.f32 0.0, %v2300
    %v2302 = vpop.f32.mrb[0].mxu0
    %v2303 = vpop.f32.mrb[0].mxu0
    %v2304 = vpop.f32.mrb[0].mxu0
    %2305 = vdwg.mxu0
    %v2306 = vlaneseq
    %v2307 = vshrl.u32 %v2306, 7
    %v2308 = vsub.s32 0, %v2307
    %v2309 = vrot.slane %v70, %v2308
    %v2310 = vadd.f32 %v2243, %v2309
    %v2311 = vadd.f32 %v2246, %v2309
    %v2312 = vadd.f32 %v2251, %v2309
    %v2313 = vadd.f32 %v2293, %v2309
    %v2314 = vadd.f32 %v2296, %v2309
    %v2315 = vadd.f32 %v2301, %v2309
    %s2316 = scalar_lea.vmem %s4, 32
    %v2317 = vld [vmem:[%s2316] sm:$0xf]
    %v2318 = vld [vmem:[%s2316 + $0x8] sm:$0xf]
    %v2319 = vld [vmem:[%s2316 + $0x10] sm:$0xf]
    %v2320 = vld [vmem:[%s2316 + $0x18] sm:$0xf]
    %v2321 = vld [vmem:[%s2316 + $0x4] sm:$0xf]
    %v2322 = vld [vmem:[%s2316 + $0xc] sm:$0xf]
    %v2323 = vld [vmem:[%s2316 + $0x14] sm:$0xf]
    %v2324 = vld [vmem:[%s2316 + $0x1c] sm:$0xf]
    %s2325 = scalar_lea.vmem %s5, 64
    %v2326 = vld [vmem:[%s2325] sm:$0xf]
    %v2327 = vld [vmem:[%s2325 + $0x4] sm:$0xf]
    %v2328 = vld [vmem:[%s2325 + $0x8] sm:$0xf]
    %v2329 = vld [vmem:[%s2325 + $0xc] sm:$0xf]
    %v2330 = vld [vmem:[%s2325 + $0x10] sm:$0xf]
    %v2331 = vld [vmem:[%s2325 + $0x14] sm:$0xf]
    %v2332 = vld [vmem:[%s2325 + $0x18] sm:$0xf]
    %v2333 = vld [vmem:[%s2325 + $0x1c] sm:$0xf]
    %v2334 = vld [vmem:[%s2325 + $0x20] sm:$0xf]
    %v2335 = vld [vmem:[%s2325 + $0x24] sm:$0xf]
    %v2336 = vld [vmem:[%s2325 + $0x28] sm:$0xf]
    %v2337 = vld [vmem:[%s2325 + $0x2c] sm:$0xf]
    %v2338 = vld [vmem:[%s2325 + $0x30] sm:$0xf]
    %v2339 = vld [vmem:[%s2325 + $0x34] sm:$0xf]
    %v2340 = vld [vmem:[%s2325 + $0x38] sm:$0xf]
    %v2341 = vld [vmem:[%s2325 + $0x3c] sm:$0xf]
    %s2342 = scalar_lea.vmem %s2, 8
    %v2343 = vld [vmem:[%s2342] sm:$0x1]
    %v2344 = vld [vmem:[%s2342 + $0x1] sm:$0x1]
    %v2345 = vld [vmem:[%s2342 + $0x2] sm:$0x1]
    %v2346 = vld [vmem:[%s2342 + $0x3] sm:$0x1]
    %v2347 = vld [vmem:[%s2342 + $0x4] sm:$0x1]
    %v2348 = vld [vmem:[%s2342 + $0x5] sm:$0x1]
    %s2349 = scalar_lea.vmem %s3, 1
    %v2350 = vld [vmem:[%s2349] sm:$0x1]
    %v2351 = vsel %vm72, %v2310, 0.0
    %2352 = vadd.xlane.f32.xlu0 %v2351
    %v2353 = vpop.xlane.xlu0 %2352
    %v2354 = vsel %vm72, %v2311, 0.0
    %2355 = vadd.xlane.f32.xlu0 %v2354
    %v2356 = vpop.xlane.xlu0 %2355
    %v2357 = vsel %vm79, %v2312, 0.0
    %2358 = vadd.xlane.f32.xlu0 %v2357
    %v2359 = vpop.xlane.xlu0 %2358
    %v2360 = vsel %vm72, %v2313, 0.0
    %2361 = vadd.xlane.f32.xlu0 %v2360
    %v2362 = vpop.xlane.xlu0 %2361
    %v2363 = vsel %vm72, %v2314, 0.0
    %2364 = vadd.xlane.f32.xlu0 %v2363
    %v2365 = vpop.xlane.xlu0 %2364
    %v2366 = vsel %vm79, %v2315, 0.0
    %2367 = vadd.xlane.f32.xlu0 %v2366
    %v2368 = vpop.xlane.xlu0 %2367
    %v2369 = vmul.f32 %v2353, %v89
    %v2370 = vmul.f32 %v2356, %v89
    %v2371 = vmul.f32 %v2359, %v89
    %v2372 = vmul.f32 %v2362, %v89
    %v2373 = vmul.f32 %v2365, %v89
    %v2374 = vmul.f32 %v2368, %v89
    %v2375 = vmul.f32 %v2310, %v2310
    %v2376 = vmul.f32 %v2311, %v2311
    %v2377 = vmul.f32 %v2312, %v2312
    %v2378 = vmul.f32 %v2313, %v2313
    %v2379 = vmul.f32 %v2314, %v2314
    %v2380 = vmul.f32 %v2315, %v2315
    %v2381 = vsel %vm72, %v2375, 0.0
    %2382 = vadd.xlane.f32.xlu0 %v2381
    %v2383 = vpop.xlane.xlu0 %2382
    %v2384 = vsel %vm72, %v2376, 0.0
    %2385 = vadd.xlane.f32.xlu0 %v2384
    %v2386 = vpop.xlane.xlu0 %2385
    %v2387 = vsel %vm79, %v2377, 0.0
    %2388 = vadd.xlane.f32.xlu0 %v2387
    %v2389 = vpop.xlane.xlu0 %2388
    %v2390 = vsel %vm72, %v2378, 0.0
    %2391 = vadd.xlane.f32.xlu0 %v2390
    %v2392 = vpop.xlane.xlu0 %2391
    %v2393 = vsel %vm72, %v2379, 0.0
    %2394 = vadd.xlane.f32.xlu0 %v2393
    %v2395 = vpop.xlane.xlu0 %2394
    %v2396 = vsel %vm79, %v2380, 0.0
    %2397 = vadd.xlane.f32.xlu0 %v2396
    %v2398 = vpop.xlane.xlu0 %2397
    %v2399 = vmul.f32 %v2383, %v89
    %v2400 = vmul.f32 %v2386, %v89
    %v2401 = vmul.f32 %v2389, %v89
    %v2402 = vmul.f32 %v2392, %v89
    %v2403 = vmul.f32 %v2395, %v89
    %v2404 = vmul.f32 %v2398, %v89
    %v2405 = vmul.f32 %v2369, %v2369
    %v2406 = vmul.f32 %v2370, %v2370
    %v2407 = vmul.f32 %v2371, %v2371
    %v2408 = vmul.f32 %v2372, %v2372
    %v2409 = vmul.f32 %v2373, %v2373
    %v2410 = vmul.f32 %v2374, %v2374
    %v2411 = vsub.f32 %v2399, %v2405
    %v2412 = vsub.f32 %v2400, %v2406
    %v2413 = vsub.f32 %v2401, %v2407
    %v2414 = vsub.f32 %v2402, %v2408
    %v2415 = vsub.f32 %v2403, %v2409
    %v2416 = vsub.f32 %v2404, %v2410
    %v2417 = vsub.f32 %v2310, %v2369
    %v2418 = vsub.f32 %v2311, %v2370
    %v2419 = vsub.f32 %v2312, %v2371
    %v2420 = vsub.f32 %v2313, %v2372
    %v2421 = vsub.f32 %v2314, %v2373
    %v2422 = vsub.f32 %v2315, %v2374
    %v2423 = vadd.f32 %v2411, 1e-05
    %v2424 = vadd.f32 %v2412, 1e-05
    %v2425 = vadd.f32 %v2413, 1e-05
    %v2426 = vadd.f32 %v2414, 1e-05
    %v2427 = vadd.f32 %v2415, 1e-05
    %v2428 = vadd.f32 %v2416, 1e-05
    %v2429 = vrsqrt.pop %v2423
    %v2430 = vrsqrt.pop %v2424
    %v2431 = vrsqrt.pop %v2425
    %v2432 = vrsqrt.pop %v2426
    %v2433 = vrsqrt.pop %v2427
    %v2434 = vrsqrt.pop %v2428
    %v2435 = vmul.f32 %v2417, %v2429
    %v2436 = vmul.f32 %v2418, %v2430
    %v2437 = vmul.f32 %v2419, %v2431
    %v2438 = vmul.f32 %v2420, %v2432
    %v2439 = vmul.f32 %v2421, %v2433
    %v2440 = vmul.f32 %v2422, %v2434
    %v2441 = vlaneseq
    %v2442 = vshrl.u32 %v2441, 7
    %v2443 = vsub.s32 0, %v2442
    %v2444 = vrot.slane %v2343, %v2443
    %v2445 = vmul.f32 %v2435, %v2444
    %v2446 = vmul.f32 %v2436, %v2444
    %v2447 = vmul.f32 %v2437, %v2444
    %v2448 = vmul.f32 %v2438, %v2444
    %v2449 = vmul.f32 %v2439, %v2444
    %v2450 = vmul.f32 %v2440, %v2444
    %v2451 = vlaneseq
    %v2452 = vshrl.u32 %v2451, 7
    %v2453 = vsub.s32 0, %v2452
    %v2454 = vrot.slane %v2344, %v2453
    %v2455 = vadd.f32 %v2445, %v2454
    %v2456 = vadd.f32 %v2446, %v2454
    %v2457 = vadd.f32 %v2447, %v2454
    %v2458 = vadd.f32 %v2448, %v2454
    %v2459 = vadd.f32 %v2449, %v2454
    %v2460 = vadd.f32 %v2450, %v2454
    %v2461 = vpack.c.bf16 %v2456, %v2455
    %v2462 = vpack.c.bf16 %v2457, %v2457
    %v2467 = vunpack.c.l.b16 %v2317
    %v2468 = vunpack.c.l.b16 %v2318
    %v2469 = vunpack.c.l.b16 %v2319
    %v2470 = vunpack.c.l.b16 %v2320
    %v2471 = vpack.c.b16 %v2468, %v2467
    %v2472 = vpack.c.b16 %v2470, %v2469
    %v2476 = vsel %vm72, %v2461, 0
    %v2479 = vsel %vm72, %v2462, 0
    %2481 = vmatprep.subr.bf16.mxu0 0
    %2482 = vmatpush1.bf16.msra.mxu0 %v2471
    %2483 = vmatprep.subr.bf16.mxu0 0
    %2484 = vmatpush1.bf16.msra.mxu0 %v2472
    %2485 = vmatprep.subr.bf16.mxu0 0
    %2486 = vmatpush1.bf16.msra.mxu0 0
    %2487 = vmatprep.subr.bf16.mxu0 0
    %2488 = vmatpush1.bf16.msra.mxu0 0
    %2489 = vmatprep.subr.bf16.mxu0 0
    %2490 = vmatpush1.bf16.msra.mxu0 0
    %2491 = vmatprep.subr.bf16.mxu0 0
    %2492 = vmatpush1.bf16.msra.mxu0 0
    %2493 = vmatprep.subr.bf16.mxu0 0
    %2494 = vmatpush1.bf16.msra.mxu0 0
    %2495 = vmatprep.subr.bf16.mxu0 0
    %2496 = vmatpush1.bf16.msra.mxu0 0
    %2497 = vmatprep.subr.bf16.mxu0 0
    %2498 = vmatpush1.bf16.msra.mxu0 0
    %2499 = vmatprep.subr.bf16.mxu0 0
    %2500 = vmatpush1.bf16.msra.mxu0 0
    %2501 = vmatprep.subr.bf16.mxu0 0
    %2502 = vmatpush1.bf16.msra.mxu0 0
    %2503 = vmatprep.subr.bf16.mxu0 0
    %2504 = vmatpush1.bf16.msra.mxu0 0
    %2505 = vmatprep.subr.bf16.mxu0 0
    %2506 = vmatpush1.bf16.msra.mxu0 0
    %2507 = vmatprep.subr.bf16.mxu0 0
    %2508 = vmatpush1.bf16.msra.mxu0 0
    %2509 = vmatprep.subr.bf16.mxu0 0
    %2510 = vmatpush1.bf16.msra.mxu0 0
    %2511 = vmatprep.subr.bf16.mxu0 0
    %2512 = vmatpush1.bf16.msra.mxu0 0
    %2513 = vmatprep.mubr.bf16.mxu0 0
    %2514 = vmatmul.mubr.bf16.gmra.mrb[0].mxu0 %v2476
    %v2515 = vpop.f32.mrb[0].mxu0
    %v2516 = vadd.f32 0.0, %v2515
    %v2517 = vpop.f32.mrb[0].mxu0
    %v2518 = vpop.f32.mrb[0].mxu0
    %v2519 = vadd.f32 0.0, %v2518
    %v2520 = vpop.f32.mrb[0].mxu0
    %2521 = vmatprep.mubr.bf16.mxu0 0
    %2522 = vmatmul.mubr.bf16.gmra.mrb[0].mxu0 %v2479
    %v2523 = vpop.f32.mrb[0].mxu0
    %v2524 = vadd.f32 0.0, %v2523
    %v2525 = vpop.f32.mrb[0].mxu0
    %v2526 = vpop.f32.mrb[0].mxu0
    %v2527 = vpop.f32.mrb[0].mxu0
    %2528 = vdwg.mxu0
    %v2529 = vpack.c.bf16 %v2459, %v2458
    %v2530 = vpack.c.bf16 %v2460, %v2460
    %v2532 = vsel %vm72, %v2529, 0
    %v2535 = vsel %vm72, %v2530, 0
    %2537 = vmatprep.subr.bf16.mxu0 0
    %2538 = vmatpush1.bf16.msra.mxu0 %v2471
    %2539 = vmatprep.subr.bf16.mxu0 0
    %2540 = vmatpush1.bf16.msra.mxu0 %v2472
    %2541 = vmatprep.subr.bf16.mxu0 0
    %2542 = vmatpush1.bf16.msra.mxu0 0
    %2543 = vmatprep.subr.bf16.mxu0 0
    %2544 = vmatpush1.bf16.msra.mxu0 0
    %2545 = vmatprep.subr.bf16.mxu0 0
    %2546 = vmatpush1.bf16.msra.mxu0 0
    %2547 = vmatprep.subr.bf16.mxu0 0
    %2548 = vmatpush1.bf16.msra.mxu0 0
    %2549 = vmatprep.subr.bf16.mxu0 0
    %2550 = vmatpush1.bf16.msra.mxu0 0
    %2551 = vmatprep.subr.bf16.mxu0 0
    %2552 = vmatpush1.bf16.msra.mxu0 0
    %2553 = vmatprep.subr.bf16.mxu0 0
    %2554 = vmatpush1.bf16.msra.mxu0 0
    %2555 = vmatprep.subr.bf16.mxu0 0
    %2556 = vmatpush1.bf16.msra.mxu0 0
    %2557 = vmatprep.subr.bf16.mxu0 0
    %2558 = vmatpush1.bf16.msra.mxu0 0
    %2559 = vmatprep.subr.bf16.mxu0 0
    %2560 = vmatpush1.bf16.msra.mxu0 0
    %2561 = vmatprep.subr.bf16.mxu0 0
    %2562 = vmatpush1.bf16.msra.mxu0 0
    %2563 = vmatprep.subr.bf16.mxu0 0
    %2564 = vmatpush1.bf16.msra.mxu0 0
    %2565 = vmatprep.subr.bf16.mxu0 0
    %2566 = vmatpush1.bf16.msra.mxu0 0
    %2567 = vmatprep.subr.bf16.mxu0 0
    %2568 = vmatpush1.bf16.msra.mxu0 0
    %2569 = vmatprep.mubr.bf16.mxu0 0
    %2570 = vmatmul.mubr.bf16.gmra.mrb[0].mxu0 %v2532
    %v2571 = vpop.f32.mrb[0].mxu0
    %v2572 = vadd.f32 0.0, %v2571
    %v2573 = vpop.f32.mrb[0].mxu0
    %v2574 = vpop.f32.mrb[0].mxu0
    %v2575 = vadd.f32 0.0, %v2574
    %v2576 = vpop.f32.mrb[0].mxu0
    %2577 = vmatprep.mubr.bf16.mxu0 0
    %2578 = vmatmul.mubr.bf16.gmra.mrb[0].mxu0 %v2535
    %v2579 = vpop.f32.mrb[0].mxu0
    %v2580 = vadd.f32 0.0, %v2579
    %v2581 = vpop.f32.mrb[0].mxu0
    %v2582 = vpop.f32.mrb[0].mxu0
    %v2583 = vpop.f32.mrb[0].mxu0
    %2584 = vdwg.mxu0
    %v2585 = vpack.c.bf16 %v2519, %v2516
    %v2586 = vpack.c.bf16 %v2524, %v2524
    %v2587 = vpack.c.bf16 %v2575, %v2572
    %v2588 = vpack.c.bf16 %v2580, %v2580
    %2591 = vrot.lane.b32.xlu0 %v2585, 96
    %v2592 = vpop.permute.xlu0 %2591
    %2593 = vrot.lane.b32.xlu0 %v2586, 96
    %v2594 = vpop.permute.xlu0 %2593
    %v2596 = vsel %vm298, %v2585, 0
    %v2599 = vsel %vm298, %v2586, 0
    %v2602 = vsel %vm298, %v2592, 0
    %v2605 = vsel %vm298, %v2594, 0
    %2607 = vmatprep.subr.bf16.mxu0 0
    %2608 = vmatpush1.bf16.xpose.msra.mxu0 %v2602
    %2609 = vmatprep.subr.bf16.mxu0 0
    %2610 = vmatpush1.bf16.xpose.msra.mxu0 %v2605
    %2611 = vmatprep.subr.bf16.mxu0 0
    %2612 = vmatpush1.bf16.xpose.msra.mxu0 0
    %2613 = vmatprep.subr.bf16.mxu0 0
    %2614 = vmatpush1.bf16.xpose.msra.mxu0 0
    %2615 = vmatprep.subr.bf16.mxu0 0
    %2616 = vmatpush1.bf16.xpose.msra.mxu0 0
    %2617 = vmatprep.subr.bf16.mxu0 0
    %2618 = vmatpush1.bf16.xpose.msra.mxu0 0
    %2619 = vmatprep.subr.bf16.mxu0 0
    %2620 = vmatpush1.bf16.xpose.msra.mxu0 0
    %2621 = vmatprep.subr.bf16.mxu0 0
    %2622 = vmatpush1.bf16.xpose.msra.mxu0 0
    %2623 = vmatprep.subr.bf16.mxu0 0
    %2624 = vmatpush1.bf16.xpose.msra.mxu0 0
    %2625 = vmatprep.subr.bf16.mxu0 0
    %2626 = vmatpush1.bf16.xpose.msra.mxu0 0
    %2627 = vmatprep.subr.bf16.mxu0 0
    %2628 = vmatpush1.bf16.xpose.msra.mxu0 0
    %2629 = vmatprep.subr.bf16.mxu0 0
    %2630 = vmatpush1.bf16.xpose.msra.mxu0 0
    %2631 = vmatprep.subr.bf16.mxu0 0
    %2632 = vmatpush1.bf16.xpose.msra.mxu0 0
    %2633 = vmatprep.subr.bf16.mxu0 0
    %2634 = vmatpush1.bf16.xpose.msra.mxu0 0
    %2635 = vmatprep.subr.bf16.mxu0 0
    %2636 = vmatpush1.bf16.xpose.msra.mxu0 0
    %2637 = vmatprep.subr.bf16.mxu0 0
    %2638 = vmatpush1.bf16.xpose.msra.mxu0 0
    %2639 = vmatprep.mubr.bf16.mxu0 0
    %2640 = vmatmul.mubr.bf16.gmra.mrb[0].mxu0 %v2596
    %v2641 = vpop.f32.mrb[0].mxu0
    %v2642 = vadd.f32 0.0, %v2641
    %v2643 = vpop.f32.mrb[0].mxu0
    %v2644 = vpop.f32.mrb[0].mxu0
    %v2645 = vadd.f32 0.0, %v2644
    %v2646 = vpop.f32.mrb[0].mxu0
    %2647 = vmatprep.mubr.bf16.mxu0 0
    %2648 = vmatmul.mubr.bf16.gmra.mrb[0].mxu0 %v2599
    %v2649 = vpop.f32.mrb[0].mxu0
    %v2650 = vadd.f32 0.0, %v2649
    %v2651 = vpop.f32.mrb[0].mxu0
    %v2652 = vpop.f32.mrb[0].mxu0
    %v2653 = vpop.f32.mrb[0].mxu0
    %2654 = vdwg.mxu0
    %2657 = vrot.lane.b32.xlu0 %v2587, 96
    %v2658 = vpop.permute.xlu0 %2657
    %2659 = vrot.lane.b32.xlu0 %v2588, 96
    %v2660 = vpop.permute.xlu0 %2659
    %v2662 = vsel %vm298, %v2587, 0
    %v2665 = vsel %vm298, %v2588, 0
    %v2668 = vsel %vm298, %v2658, 0
    %v2671 = vsel %vm298, %v2660, 0
    %2673 = vmatprep.subr.bf16.mxu0 0
    %2674 = vmatpush1.bf16.xpose.msra.mxu0 %v2668
    %2675 = vmatprep.subr.bf16.mxu0 0
    %2676 = vmatpush1.bf16.xpose.msra.mxu0 %v2671
    %2677 = vmatprep.subr.bf16.mxu0 0
    %2678 = vmatpush1.bf16.xpose.msra.mxu0 0
    %2679 = vmatprep.subr.bf16.mxu0 0
    %2680 = vmatpush1.bf16.xpose.msra.mxu0 0
    %2681 = vmatprep.subr.bf16.mxu0 0
    %2682 = vmatpush1.bf16.xpose.msra.mxu0 0
    %2683 = vmatprep.subr.bf16.mxu0 0
    %2684 = vmatpush1.bf16.xpose.msra.mxu0 0
    %2685 = vmatprep.subr.bf16.mxu0 0
    %2686 = vmatpush1.bf16.xpose.msra.mxu0 0
    %2687 = vmatprep.subr.bf16.mxu0 0
    %2688 = vmatpush1.bf16.xpose.msra.mxu0 0
    %2689 = vmatprep.subr.bf16.mxu0 0
    %2690 = vmatpush1.bf16.xpose.msra.mxu0 0
    %2691 = vmatprep.subr.bf16.mxu0 0
    %2692 = vmatpush1.bf16.xpose.msra.mxu0 0
    %2693 = vmatprep.subr.bf16.mxu0 0
    %2694 = vmatpush1.bf16.xpose.msra.mxu0 0
    %2695 = vmatprep.subr.bf16.mxu0 0
    %2696 = vmatpush1.bf16.xpose.msra.mxu0 0
    %2697 = vmatprep.subr.bf16.mxu0 0
    %2698 = vmatpush1.bf16.xpose.msra.mxu0 0
    %2699 = vmatprep.subr.bf16.mxu0 0
    %2700 = vmatpush1.bf16.xpose.msra.mxu0 0
    %2701 = vmatprep.subr.bf16.mxu0 0
    %2702 = vmatpush1.bf16.xpose.msra.mxu0 0
    %2703 = vmatprep.subr.bf16.mxu0 0
    %2704 = vmatpush1.bf16.xpose.msra.mxu0 0
    %2705 = vmatprep.mubr.bf16.mxu0 0
    %2706 = vmatmul.mubr.bf16.gmra.mrb[0].mxu0 %v2662
    %v2707 = vpop.f32.mrb[0].mxu0
    %v2708 = vadd.f32 0.0, %v2707
    %v2709 = vpop.f32.mrb[0].mxu0
    %v2710 = vpop.f32.mrb[0].mxu0
    %v2711 = vadd.f32 0.0, %v2710
    %v2712 = vpop.f32.mrb[0].mxu0
    %2713 = vmatprep.mubr.bf16.mxu0 0
    %2714 = vmatmul.mubr.bf16.gmra.mrb[0].mxu0 %v2665
    %v2715 = vpop.f32.mrb[0].mxu0
    %v2716 = vadd.f32 0.0, %v2715
    %v2717 = vpop.f32.mrb[0].mxu0
    %v2718 = vpop.f32.mrb[0].mxu0
    %v2719 = vpop.f32.mrb[0].mxu0
    %2720 = vdwg.mxu0
    %v2721 = vmul.f32 %v2642, 0.35355338
    %v2722 = vmul.f32 %v2645, 0.35355338
    %v2723 = vmul.f32 %v2650, 0.35355338
    %v2724 = vmul.f32 %v2708, 0.35355338
    %v2725 = vmul.f32 %v2711, 0.35355338
    %v2726 = vmul.f32 %v2716, 0.35355338
    %v2727 = vsel %vm431, %v2721, -inf
    %2728 = vmax.xlane.f32.xlu0 %v2727
    %v2729 = vpop.xlane.xlu0 %2728
    %v2730 = vsel %vm431, %v2722, -inf
    %2731 = vmax.xlane.f32.xlu0 %v2730
    %v2732 = vpop.xlane.xlu0 %2731
    %v2733 = vsel %vm438, %v2723, -inf
    %2734 = vmax.xlane.f32.xlu0 %v2733
    %v2735 = vpop.xlane.xlu0 %2734
    %v2736 = vsel %vm431, %v2724, -inf
    %2737 = vmax.xlane.f32.xlu0 %v2736
    %v2738 = vpop.xlane.xlu0 %2737
    %v2739 = vsel %vm431, %v2725, -inf
    %2740 = vmax.xlane.f32.xlu0 %v2739
    %v2741 = vpop.xlane.xlu0 %2740
    %v2742 = vsel %vm438, %v2726, -inf
    %2743 = vmax.xlane.f32.xlu0 %v2742
    %v2744 = vpop.xlane.xlu0 %2743
    %v2745 = vsub.f32 %v2721, %v2729
    %v2746 = vsub.f32 %v2722, %v2732
    %v2747 = vsub.f32 %v2723, %v2735
    %v2748 = vsub.f32 %v2724, %v2738
    %v2749 = vsub.f32 %v2725, %v2741
    %v2750 = vsub.f32 %v2726, %v2744
    %v2751 = vmul.f32 %v2745, 1.442695
    %v2752 = vpow.pop %v2751
    %v2753 = vmul.f32 %v2746, 1.442695
    %v2754 = vpow.pop %v2753
    %v2755 = vmul.f32 %v2747, 1.442695
    %v2756 = vpow.pop %v2755
    %v2757 = vmul.f32 %v2748, 1.442695
    %v2758 = vpow.pop %v2757
    %v2759 = vmul.f32 %v2749, 1.442695
    %v2760 = vpow.pop %v2759
    %v2761 = vmul.f32 %v2750, 1.442695
    %v2762 = vpow.pop %v2761
    %v2763 = vsel %vm431, %v2752, 0.0
    %2764 = vadd.xlane.f32.xlu0 %v2763
    %v2765 = vpop.xlane.xlu0 %2764
    %v2766 = vsel %vm431, %v2754, 0.0
    %2767 = vadd.xlane.f32.xlu0 %v2766
    %v2768 = vpop.xlane.xlu0 %2767
    %v2769 = vsel %vm438, %v2756, 0.0
    %2770 = vadd.xlane.f32.xlu0 %v2769
    %v2771 = vpop.xlane.xlu0 %2770
    %v2772 = vsel %vm431, %v2758, 0.0
    %2773 = vadd.xlane.f32.xlu0 %v2772
    %v2774 = vpop.xlane.xlu0 %2773
    %v2775 = vsel %vm431, %v2760, 0.0
    %2776 = vadd.xlane.f32.xlu0 %v2775
    %v2777 = vpop.xlane.xlu0 %2776
    %v2778 = vsel %vm438, %v2762, 0.0
    %2779 = vadd.xlane.f32.xlu0 %v2778
    %v2780 = vpop.xlane.xlu0 %2779
    %v2781 = vrcp.pop %v2765
    %v2782 = vrcp.pop %v2768
    %v2783 = vrcp.pop %v2771
    %v2784 = vrcp.pop %v2774
    %v2785 = vrcp.pop %v2777
    %v2786 = vrcp.pop %v2780
    %v2787 = vmul.f32 %v2752, %v2781
    %v2788 = vmul.f32 %v2754, %v2782
    %v2789 = vmul.f32 %v2756, %v2783
    %v2790 = vmul.f32 %v2758, %v2784
    %v2791 = vmul.f32 %v2760, %v2785
    %v2792 = vmul.f32 %v2762, %v2786
    %v2793 = vpack.c.bf16 %v2788, %v2787
    %v2794 = vpack.c.bf16 %v2789, %v2789
    %v2795 = vpack.c.bf16 %v2791, %v2790
    %v2796 = vpack.c.bf16 %v2792, %v2792
    %2797 = vrot.lane.b32.xlu0 %v2585, 64
    %v2798 = vpop.permute.xlu0 %2797
    %2799 = vrot.lane.b32.xlu0 %v2586, 64
    %v2800 = vpop.permute.xlu0 %2799
    %v2803 = vsel %vm431, %v2793, 0
    %v2806 = vsel %vm431, %v2794, 0
    %v2809 = vand.u32 %v2800, %v516
    %2811 = vmatprep.subr.bf16.mxu0 0
    %2812 = vmatpush1.bf16.msra.mxu0 %v2798
    %2813 = vmatprep.subr.bf16.mxu0 0
    %2814 = vmatpush1.bf16.msra.mxu0 %v2809
    %2815 = vmatprep.subr.bf16.mxu0 0
    %2816 = vmatpush1.bf16.msra.mxu0 0
    %2817 = vmatprep.subr.bf16.mxu0 0
    %2818 = vmatpush1.bf16.msra.mxu0 0
    %2819 = vmatprep.subr.bf16.mxu0 0
    %2820 = vmatpush1.bf16.msra.mxu0 0
    %2821 = vmatprep.subr.bf16.mxu0 0
    %2822 = vmatpush1.bf16.msra.mxu0 0
    %2823 = vmatprep.subr.bf16.mxu0 0
    %2824 = vmatpush1.bf16.msra.mxu0 0
    %2825 = vmatprep.subr.bf16.mxu0 0
    %2826 = vmatpush1.bf16.msra.mxu0 0
    %2827 = vmatprep.subr.bf16.mxu0 0
    %2828 = vmatpush1.bf16.msra.mxu0 0
    %2829 = vmatprep.subr.bf16.mxu0 0
    %2830 = vmatpush1.bf16.msra.mxu0 0
    %2831 = vmatprep.subr.bf16.mxu0 0
    %2832 = vmatpush1.bf16.msra.mxu0 0
    %2833 = vmatprep.subr.bf16.mxu0 0
    %2834 = vmatpush1.bf16.msra.mxu0 0
    %2835 = vmatprep.subr.bf16.mxu0 0
    %2836 = vmatpush1.bf16.msra.mxu0 0
    %2837 = vmatprep.subr.bf16.mxu0 0
    %2838 = vmatpush1.bf16.msra.mxu0 0
    %2839 = vmatprep.subr.bf16.mxu0 0
    %2840 = vmatpush1.bf16.msra.mxu0 0
    %2841 = vmatprep.subr.bf16.mxu0 0
    %2842 = vmatpush1.bf16.msra.mxu0 0
    %2843 = vmatprep.mubr.bf16.mxu0 0
    %2844 = vmatmul.mubr.bf16.gmra.mrb[0].mxu0 %v2803
    %v2845 = vpop.f32.mrb[0].mxu0
    %v2846 = vadd.f32 0.0, %v2845
    %v2847 = vpop.f32.mrb[0].mxu0
    %v2848 = vpop.f32.mrb[0].mxu0
    %v2849 = vadd.f32 0.0, %v2848
    %v2850 = vpop.f32.mrb[0].mxu0
    %2851 = vmatprep.mubr.bf16.mxu0 0
    %2852 = vmatmul.mubr.bf16.gmra.mrb[0].mxu0 %v2806
    %v2853 = vpop.f32.mrb[0].mxu0
    %v2854 = vadd.f32 0.0, %v2853
    %v2855 = vpop.f32.mrb[0].mxu0
    %v2856 = vpop.f32.mrb[0].mxu0
    %v2857 = vpop.f32.mrb[0].mxu0
    %2858 = vdwg.mxu0
    %2859 = vrot.lane.b32.xlu0 %v2587, 64
    %v2860 = vpop.permute.xlu0 %2859
    %2861 = vrot.lane.b32.xlu0 %v2588, 64
    %v2862 = vpop.permute.xlu0 %2861
    %v2865 = vsel %vm431, %v2795, 0
    %v2868 = vsel %vm431, %v2796, 0
    %v2871 = vand.u32 %v2862, %v516
    %2873 = vmatprep.subr.bf16.mxu0 0
    %2874 = vmatpush1.bf16.msra.mxu0 %v2860
    %2875 = vmatprep.subr.bf16.mxu0 0
    %2876 = vmatpush1.bf16.msra.mxu0 %v2871
    %2877 = vmatprep.subr.bf16.mxu0 0
    %2878 = vmatpush1.bf16.msra.mxu0 0
    %2879 = vmatprep.subr.bf16.mxu0 0
    %2880 = vmatpush1.bf16.msra.mxu0 0
    %2881 = vmatprep.subr.bf16.mxu0 0
    %2882 = vmatpush1.bf16.msra.mxu0 0
    %2883 = vmatprep.subr.bf16.mxu0 0
    %2884 = vmatpush1.bf16.msra.mxu0 0
    %2885 = vmatprep.subr.bf16.mxu0 0
    %2886 = vmatpush1.bf16.msra.mxu0 0
    %2887 = vmatprep.subr.bf16.mxu0 0
    %2888 = vmatpush1.bf16.msra.mxu0 0
    %2889 = vmatprep.subr.bf16.mxu0 0
    %2890 = vmatpush1.bf16.msra.mxu0 0
    %2891 = vmatprep.subr.bf16.mxu0 0
    %2892 = vmatpush1.bf16.msra.mxu0 0
    %2893 = vmatprep.subr.bf16.mxu0 0
    %2894 = vmatpush1.bf16.msra.mxu0 0
    %2895 = vmatprep.subr.bf16.mxu0 0
    %2896 = vmatpush1.bf16.msra.mxu0 0
    %2897 = vmatprep.subr.bf16.mxu0 0
    %2898 = vmatpush1.bf16.msra.mxu0 0
    %2899 = vmatprep.subr.bf16.mxu0 0
    %2900 = vmatpush1.bf16.msra.mxu0 0
    %2901 = vmatprep.subr.bf16.mxu0 0
    %2902 = vmatpush1.bf16.msra.mxu0 0
    %2903 = vmatprep.subr.bf16.mxu0 0
    %2904 = vmatpush1.bf16.msra.mxu0 0
    %2905 = vmatprep.mubr.bf16.mxu0 0
    %2906 = vmatmul.mubr.bf16.gmra.mrb[0].mxu0 %v2865
    %v2907 = vpop.f32.mrb[0].mxu0
    %v2908 = vadd.f32 0.0, %v2907
    %v2909 = vpop.f32.mrb[0].mxu0
    %v2910 = vpop.f32.mrb[0].mxu0
    %v2911 = vadd.f32 0.0, %v2910
    %v2912 = vpop.f32.mrb[0].mxu0
    %2913 = vmatprep.mubr.bf16.mxu0 0
    %2914 = vmatmul.mubr.bf16.gmra.mrb[0].mxu0 %v2868
    %v2915 = vpop.f32.mrb[0].mxu0
    %v2916 = vadd.f32 0.0, %v2915
    %v2917 = vpop.f32.mrb[0].mxu0
    %v2918 = vpop.f32.mrb[0].mxu0
    %v2919 = vpop.f32.mrb[0].mxu0
    %2920 = vdwg.mxu0
    %2921 = vrot.lane.b32.xlu0 %v2585, 120
    %v2922 = vpop.permute.xlu0 %2921
    %2923 = vrot.lane.b32.xlu0 %v2586, 120
    %v2924 = vpop.permute.xlu0 %2923
    %2925 = vrot.lane.b32.xlu0 %v2585, 88
    %v2926 = vpop.permute.xlu0 %2925
    %2927 = vrot.lane.b32.xlu0 %v2586, 88
    %v2928 = vpop.permute.xlu0 %2927
    %v2930 = vsel %vm298, %v2922, 0
    %v2933 = vsel %vm298, %v2924, 0
    %v2936 = vsel %vm298, %v2926, 0
    %v2939 = vsel %vm298, %v2928, 0
    %2941 = vmatprep.subr.bf16.mxu0 0
    %2942 = vmatpush1.bf16.xpose.msra.mxu0 %v2936
    %2943 = vmatprep.subr.bf16.mxu0 0
    %2944 = vmatpush1.bf16.xpose.msra.mxu0 %v2939
    %2945 = vmatprep.subr.bf16.mxu0 0
    %2946 = vmatpush1.bf16.xpose.msra.mxu0 0
    %2947 = vmatprep.subr.bf16.mxu0 0
    %2948 = vmatpush1.bf16.xpose.msra.mxu0 0
    %2949 = vmatprep.subr.bf16.mxu0 0
    %2950 = vmatpush1.bf16.xpose.msra.mxu0 0
    %2951 = vmatprep.subr.bf16.mxu0 0
    %2952 = vmatpush1.bf16.xpose.msra.mxu0 0
    %2953 = vmatprep.subr.bf16.mxu0 0
    %2954 = vmatpush1.bf16.xpose.msra.mxu0 0
    %2955 = vmatprep.subr.bf16.mxu0 0
    %2956 = vmatpush1.bf16.xpose.msra.mxu0 0
    %2957 = vmatprep.subr.bf16.mxu0 0
    %2958 = vmatpush1.bf16.xpose.msra.mxu0 0
    %2959 = vmatprep.subr.bf16.mxu0 0
    %2960 = vmatpush1.bf16.xpose.msra.mxu0 0
    %2961 = vmatprep.subr.bf16.mxu0 0
    %2962 = vmatpush1.bf16.xpose.msra.mxu0 0
    %2963 = vmatprep.subr.bf16.mxu0 0
    %2964 = vmatpush1.bf16.xpose.msra.mxu0 0
    %2965 = vmatprep.subr.bf16.mxu0 0
    %2966 = vmatpush1.bf16.xpose.msra.mxu0 0
    %2967 = vmatprep.subr.bf16.mxu0 0
    %2968 = vmatpush1.bf16.xpose.msra.mxu0 0
    %2969 = vmatprep.subr.bf16.mxu0 0
    %2970 = vmatpush1.bf16.xpose.msra.mxu0 0
    %2971 = vmatprep.subr.bf16.mxu0 0
    %2972 = vmatpush1.bf16.xpose.msra.mxu0 0
    %2973 = vmatprep.mubr.bf16.mxu0 0
    %2974 = vmatmul.mubr.bf16.gmra.mrb[0].mxu0 %v2930
    %v2975 = vpop.f32.mrb[0].mxu0
    %v2976 = vadd.f32 0.0, %v2975
    %v2977 = vpop.f32.mrb[0].mxu0
    %v2978 = vpop.f32.mrb[0].mxu0
    %v2979 = vadd.f32 0.0, %v2978
    %v2980 = vpop.f32.mrb[0].mxu0
    %2981 = vmatprep.mubr.bf16.mxu0 0
    %2982 = vmatmul.mubr.bf16.gmra.mrb[0].mxu0 %v2933
    %v2983 = vpop.f32.mrb[0].mxu0
    %v2984 = vadd.f32 0.0, %v2983
    %v2985 = vpop.f32.mrb[0].mxu0
    %v2986 = vpop.f32.mrb[0].mxu0
    %v2987 = vpop.f32.mrb[0].mxu0
    %2988 = vdwg.mxu0
    %2989 = vrot.lane.b32.xlu0 %v2587, 120
    %v2990 = vpop.permute.xlu0 %2989
    %2991 = vrot.lane.b32.xlu0 %v2588, 120
    %v2992 = vpop.permute.xlu0 %2991
    %2993 = vrot.lane.b32.xlu0 %v2587, 88
    %v2994 = vpop.permute.xlu0 %2993
    %2995 = vrot.lane.b32.xlu0 %v2588, 88
    %v2996 = vpop.permute.xlu0 %2995
    %v2998 = vsel %vm298, %v2990, 0
    %v3001 = vsel %vm298, %v2992, 0
    %v3004 = vsel %vm298, %v2994, 0
    %v3007 = vsel %vm298, %v2996, 0
    %3009 = vmatprep.subr.bf16.mxu0 0
    %3010 = vmatpush1.bf16.xpose.msra.mxu0 %v3004
    %3011 = vmatprep.subr.bf16.mxu0 0
    %3012 = vmatpush1.bf16.xpose.msra.mxu0 %v3007
    %3013 = vmatprep.subr.bf16.mxu0 0
    %3014 = vmatpush1.bf16.xpose.msra.mxu0 0
    %3015 = vmatprep.subr.bf16.mxu0 0
    %3016 = vmatpush1.bf16.xpose.msra.mxu0 0
    %3017 = vmatprep.subr.bf16.mxu0 0
    %3018 = vmatpush1.bf16.xpose.msra.mxu0 0
    %3019 = vmatprep.subr.bf16.mxu0 0
    %3020 = vmatpush1.bf16.xpose.msra.mxu0 0
    %3021 = vmatprep.subr.bf16.mxu0 0
    %3022 = vmatpush1.bf16.xpose.msra.mxu0 0
    %3023 = vmatprep.subr.bf16.mxu0 0
    %3024 = vmatpush1.bf16.xpose.msra.mxu0 0
    %3025 = vmatprep.subr.bf16.mxu0 0
    %3026 = vmatpush1.bf16.xpose.msra.mxu0 0
    %3027 = vmatprep.subr.bf16.mxu0 0
    %3028 = vmatpush1.bf16.xpose.msra.mxu0 0
    %3029 = vmatprep.subr.bf16.mxu0 0
    %3030 = vmatpush1.bf16.xpose.msra.mxu0 0
    %3031 = vmatprep.subr.bf16.mxu0 0
    %3032 = vmatpush1.bf16.xpose.msra.mxu0 0
    %3033 = vmatprep.subr.bf16.mxu0 0
    %3034 = vmatpush1.bf16.xpose.msra.mxu0 0
    %3035 = vmatprep.subr.bf16.mxu0 0
    %3036 = vmatpush1.bf16.xpose.msra.mxu0 0
    %3037 = vmatprep.subr.bf16.mxu0 0
    %3038 = vmatpush1.bf16.xpose.msra.mxu0 0
    %3039 = vmatprep.subr.bf16.mxu0 0
    %3040 = vmatpush1.bf16.xpose.msra.mxu0 0
    %3041 = vmatprep.mubr.bf16.mxu0 0
    %3042 = vmatmul.mubr.bf16.gmra.mrb[0].mxu0 %v2998
    %v3043 = vpop.f32.mrb[0].mxu0
    %v3044 = vadd.f32 0.0, %v3043
    %v3045 = vpop.f32.mrb[0].mxu0
    %v3046 = vpop.f32.mrb[0].mxu0
    %v3047 = vadd.f32 0.0, %v3046
    %v3048 = vpop.f32.mrb[0].mxu0
    %3049 = vmatprep.mubr.bf16.mxu0 0
    %3050 = vmatmul.mubr.bf16.gmra.mrb[0].mxu0 %v3001
    %v3051 = vpop.f32.mrb[0].mxu0
    %v3052 = vadd.f32 0.0, %v3051
    %v3053 = vpop.f32.mrb[0].mxu0
    %v3054 = vpop.f32.mrb[0].mxu0
    %v3055 = vpop.f32.mrb[0].mxu0
    %3056 = vdwg.mxu0
    %v3057 = vmul.f32 %v2976, 0.35355338
    %v3058 = vmul.f32 %v2979, 0.35355338
    %v3059 = vmul.f32 %v2984, 0.35355338
    %v3060 = vmul.f32 %v3044, 0.35355338
    %v3061 = vmul.f32 %v3047, 0.35355338
    %v3062 = vmul.f32 %v3052, 0.35355338
    %v3063 = vsel %vm431, %v3057, -inf
    %3064 = vmax.xlane.f32.xlu0 %v3063
    %v3065 = vpop.xlane.xlu0 %3064
    %v3066 = vsel %vm431, %v3058, -inf
    %3067 = vmax.xlane.f32.xlu0 %v3066
    %v3068 = vpop.xlane.xlu0 %3067
    %v3069 = vsel %vm438, %v3059, -inf
    %3070 = vmax.xlane.f32.xlu0 %v3069
    %v3071 = vpop.xlane.xlu0 %3070
    %v3072 = vsel %vm431, %v3060, -inf
    %3073 = vmax.xlane.f32.xlu0 %v3072
    %v3074 = vpop.xlane.xlu0 %3073
    %v3075 = vsel %vm431, %v3061, -inf
    %3076 = vmax.xlane.f32.xlu0 %v3075
    %v3077 = vpop.xlane.xlu0 %3076
    %v3078 = vsel %vm438, %v3062, -inf
    %3079 = vmax.xlane.f32.xlu0 %v3078
    %v3080 = vpop.xlane.xlu0 %3079
    %v3081 = vsub.f32 %v3057, %v3065
    %v3082 = vsub.f32 %v3058, %v3068
    %v3083 = vsub.f32 %v3059, %v3071
    %v3084 = vsub.f32 %v3060, %v3074
    %v3085 = vsub.f32 %v3061, %v3077
    %v3086 = vsub.f32 %v3062, %v3080
    %v3087 = vmul.f32 %v3081, 1.442695
    %v3088 = vpow.pop %v3087
    %v3089 = vmul.f32 %v3082, 1.442695
    %v3090 = vpow.pop %v3089
    %v3091 = vmul.f32 %v3083, 1.442695
    %v3092 = vpow.pop %v3091
    %v3093 = vmul.f32 %v3084, 1.442695
    %v3094 = vpow.pop %v3093
    %v3095 = vmul.f32 %v3085, 1.442695
    %v3096 = vpow.pop %v3095
    %v3097 = vmul.f32 %v3086, 1.442695
    %v3098 = vpow.pop %v3097
    %v3099 = vsel %vm431, %v3088, 0.0
    %3100 = vadd.xlane.f32.xlu0 %v3099
    %v3101 = vpop.xlane.xlu0 %3100
    %v3102 = vsel %vm431, %v3090, 0.0
    %3103 = vadd.xlane.f32.xlu0 %v3102
    %v3104 = vpop.xlane.xlu0 %3103
    %v3105 = vsel %vm438, %v3092, 0.0
    %3106 = vadd.xlane.f32.xlu0 %v3105
    %v3107 = vpop.xlane.xlu0 %3106
    %v3108 = vsel %vm431, %v3094, 0.0
    %3109 = vadd.xlane.f32.xlu0 %v3108
    %v3110 = vpop.xlane.xlu0 %3109
    %v3111 = vsel %vm431, %v3096, 0.0
    %3112 = vadd.xlane.f32.xlu0 %v3111
    %v3113 = vpop.xlane.xlu0 %3112
    %v3114 = vsel %vm438, %v3098, 0.0
    %3115 = vadd.xlane.f32.xlu0 %v3114
    %v3116 = vpop.xlane.xlu0 %3115
    %v3117 = vrcp.pop %v3101
    %v3118 = vrcp.pop %v3104
    %v3119 = vrcp.pop %v3107
    %v3120 = vrcp.pop %v3110
    %v3121 = vrcp.pop %v3113
    %v3122 = vrcp.pop %v3116
    %v3123 = vmul.f32 %v3088, %v3117
    %v3124 = vmul.f32 %v3090, %v3118
    %v3125 = vmul.f32 %v3092, %v3119
    %v3126 = vmul.f32 %v3094, %v3120
    %v3127 = vmul.f32 %v3096, %v3121
    %v3128 = vmul.f32 %v3098, %v3122
    %v3129 = vpack.c.bf16 %v3124, %v3123
    %v3130 = vpack.c.bf16 %v3125, %v3125
    %v3131 = vpack.c.bf16 %v3127, %v3126
    %v3132 = vpack.c.bf16 %v3128, %v3128
    %3133 = vrot.lane.b32.xlu0 %v2585, 56
    %v3134 = vpop.permute.xlu0 %3133
    %3135 = vrot.lane.b32.xlu0 %v2586, 56
    %v3136 = vpop.permute.xlu0 %3135
    %v3139 = vsel %vm431, %v3129, 0
    %v3142 = vsel %vm431, %v3130, 0
    %v3145 = vand.u32 %v3136, %v516
    %3147 = vmatprep.subr.bf16.mxu0 0
    %3148 = vmatpush1.bf16.msra.mxu0 %v3134
    %3149 = vmatprep.subr.bf16.mxu0 0
    %3150 = vmatpush1.bf16.msra.mxu0 %v3145
    %3151 = vmatprep.subr.bf16.mxu0 0
    %3152 = vmatpush1.bf16.msra.mxu0 0
    %3153 = vmatprep.subr.bf16.mxu0 0
    %3154 = vmatpush1.bf16.msra.mxu0 0
    %3155 = vmatprep.subr.bf16.mxu0 0
    %3156 = vmatpush1.bf16.msra.mxu0 0
    %3157 = vmatprep.subr.bf16.mxu0 0
    %3158 = vmatpush1.bf16.msra.mxu0 0
    %3159 = vmatprep.subr.bf16.mxu0 0
    %3160 = vmatpush1.bf16.msra.mxu0 0
    %3161 = vmatprep.subr.bf16.mxu0 0
    %3162 = vmatpush1.bf16.msra.mxu0 0
    %3163 = vmatprep.subr.bf16.mxu0 0
    %3164 = vmatpush1.bf16.msra.mxu0 0
    %3165 = vmatprep.subr.bf16.mxu0 0
    %3166 = vmatpush1.bf16.msra.mxu0 0
    %3167 = vmatprep.subr.bf16.mxu0 0
    %3168 = vmatpush1.bf16.msra.mxu0 0
    %3169 = vmatprep.subr.bf16.mxu0 0
    %3170 = vmatpush1.bf16.msra.mxu0 0
    %3171 = vmatprep.subr.bf16.mxu0 0
    %3172 = vmatpush1.bf16.msra.mxu0 0
    %3173 = vmatprep.subr.bf16.mxu0 0
    %3174 = vmatpush1.bf16.msra.mxu0 0
    %3175 = vmatprep.subr.bf16.mxu0 0
    %3176 = vmatpush1.bf16.msra.mxu0 0
    %3177 = vmatprep.subr.bf16.mxu0 0
    %3178 = vmatpush1.bf16.msra.mxu0 0
    %3179 = vmatprep.mubr.bf16.mxu0 0
    %3180 = vmatmul.mubr.bf16.gmra.mrb[0].mxu0 %v3139
    %v3181 = vpop.f32.mrb[0].mxu0
    %v3182 = vadd.f32 0.0, %v3181
    %v3183 = vpop.f32.mrb[0].mxu0
    %v3184 = vpop.f32.mrb[0].mxu0
    %v3185 = vadd.f32 0.0, %v3184
    %v3186 = vpop.f32.mrb[0].mxu0
    %3187 = vmatprep.mubr.bf16.mxu0 0
    %3188 = vmatmul.mubr.bf16.gmra.mrb[0].mxu0 %v3142
    %v3189 = vpop.f32.mrb[0].mxu0
    %v3190 = vadd.f32 0.0, %v3189
    %v3191 = vpop.f32.mrb[0].mxu0
    %v3192 = vpop.f32.mrb[0].mxu0
    %v3193 = vpop.f32.mrb[0].mxu0
    %3194 = vdwg.mxu0
    %3195 = vrot.lane.b32.xlu0 %v2587, 56
    %v3196 = vpop.permute.xlu0 %3195
    %3197 = vrot.lane.b32.xlu0 %v2588, 56
    %v3198 = vpop.permute.xlu0 %3197
    %v3201 = vsel %vm431, %v3131, 0
    %v3204 = vsel %vm431, %v3132, 0
    %v3207 = vand.u32 %v3198, %v516
    %3209 = vmatprep.subr.bf16.mxu0 0
    %3210 = vmatpush1.bf16.msra.mxu0 %v3196
    %3211 = vmatprep.subr.bf16.mxu0 0
    %3212 = vmatpush1.bf16.msra.mxu0 %v3207
    %3213 = vmatprep.subr.bf16.mxu0 0
    %3214 = vmatpush1.bf16.msra.mxu0 0
    %3215 = vmatprep.subr.bf16.mxu0 0
    %3216 = vmatpush1.bf16.msra.mxu0 0
    %3217 = vmatprep.subr.bf16.mxu0 0
    %3218 = vmatpush1.bf16.msra.mxu0 0
    %3219 = vmatprep.subr.bf16.mxu0 0
    %3220 = vmatpush1.bf16.msra.mxu0 0
    %3221 = vmatprep.subr.bf16.mxu0 0
    %3222 = vmatpush1.bf16.msra.mxu0 0
    %3223 = vmatprep.subr.bf16.mxu0 0
    %3224 = vmatpush1.bf16.msra.mxu0 0
    %3225 = vmatprep.subr.bf16.mxu0 0
    %3226 = vmatpush1.bf16.msra.mxu0 0
    %3227 = vmatprep.subr.bf16.mxu0 0
    %3228 = vmatpush1.bf16.msra.mxu0 0
    %3229 = vmatprep.subr.bf16.mxu0 0
    %3230 = vmatpush1.bf16.msra.mxu0 0
    %3231 = vmatprep.subr.bf16.mxu0 0
    %3232 = vmatpush1.bf16.msra.mxu0 0
    %3233 = vmatprep.subr.bf16.mxu0 0
    %3234 = vmatpush1.bf16.msra.mxu0 0
    %3235 = vmatprep.subr.bf16.mxu0 0
    %3236 = vmatpush1.bf16.msra.mxu0 0
    %3237 = vmatprep.subr.bf16.mxu0 0
    %3238 = vmatpush1.bf16.msra.mxu0 0
    %3239 = vmatprep.subr.bf16.mxu0 0
    %3240 = vmatpush1.bf16.msra.mxu0 0
    %3241 = vmatprep.mubr.bf16.mxu0 0
    %3242 = vmatmul.mubr.bf16.gmra.mrb[0].mxu0 %v3201
    %v3243 = vpop.f32.mrb[0].mxu0
    %v3244 = vadd.f32 0.0, %v3243
    %v3245 = vpop.f32.mrb[0].mxu0
    %v3246 = vpop.f32.mrb[0].mxu0
    %v3247 = vadd.f32 0.0, %v3246
    %v3248 = vpop.f32.mrb[0].mxu0
    %3249 = vmatprep.mubr.bf16.mxu0 0
    %3250 = vmatmul.mubr.bf16.gmra.mrb[0].mxu0 %v3204
    %v3251 = vpop.f32.mrb[0].mxu0
    %v3252 = vadd.f32 0.0, %v3251
    %v3253 = vpop.f32.mrb[0].mxu0
    %v3254 = vpop.f32.mrb[0].mxu0
    %v3255 = vpop.f32.mrb[0].mxu0
    %3256 = vdwg.mxu0
    %3257 = vrot.lane.b32.xlu0 %v2585, 112
    %v3258 = vpop.permute.xlu0 %3257
    %3259 = vrot.lane.b32.xlu0 %v2586, 112
    %v3260 = vpop.permute.xlu0 %3259
    %3261 = vrot.lane.b32.xlu0 %v2585, 80
    %v3262 = vpop.permute.xlu0 %3261
    %3263 = vrot.lane.b32.xlu0 %v2586, 80
    %v3264 = vpop.permute.xlu0 %3263
    %v3266 = vsel %vm298, %v3258, 0
    %v3269 = vsel %vm298, %v3260, 0
    %v3272 = vsel %vm298, %v3262, 0
    %v3275 = vsel %vm298, %v3264, 0
    %3277 = vmatprep.subr.bf16.mxu0 0
    %3278 = vmatpush1.bf16.xpose.msra.mxu0 %v3272
    %3279 = vmatprep.subr.bf16.mxu0 0
    %3280 = vmatpush1.bf16.xpose.msra.mxu0 %v3275
    %3281 = vmatprep.subr.bf16.mxu0 0
    %3282 = vmatpush1.bf16.xpose.msra.mxu0 0
    %3283 = vmatprep.subr.bf16.mxu0 0
    %3284 = vmatpush1.bf16.xpose.msra.mxu0 0
    %3285 = vmatprep.subr.bf16.mxu0 0
    %3286 = vmatpush1.bf16.xpose.msra.mxu0 0
    %3287 = vmatprep.subr.bf16.mxu0 0
    %3288 = vmatpush1.bf16.xpose.msra.mxu0 0
    %3289 = vmatprep.subr.bf16.mxu0 0
    %3290 = vmatpush1.bf16.xpose.msra.mxu0 0
    %3291 = vmatprep.subr.bf16.mxu0 0
    %3292 = vmatpush1.bf16.xpose.msra.mxu0 0
    %3293 = vmatprep.subr.bf16.mxu0 0
    %3294 = vmatpush1.bf16.xpose.msra.mxu0 0
    %3295 = vmatprep.subr.bf16.mxu0 0
    %3296 = vmatpush1.bf16.xpose.msra.mxu0 0
    %3297 = vmatprep.subr.bf16.mxu0 0
    %3298 = vmatpush1.bf16.xpose.msra.mxu0 0
    %3299 = vmatprep.subr.bf16.mxu0 0
    %3300 = vmatpush1.bf16.xpose.msra.mxu0 0
    %3301 = vmatprep.subr.bf16.mxu0 0
    %3302 = vmatpush1.bf16.xpose.msra.mxu0 0
    %3303 = vmatprep.subr.bf16.mxu0 0
    %3304 = vmatpush1.bf16.xpose.msra.mxu0 0
    %3305 = vmatprep.subr.bf16.mxu0 0
    %3306 = vmatpush1.bf16.xpose.msra.mxu0 0
    %3307 = vmatprep.subr.bf16.mxu0 0
    %3308 = vmatpush1.bf16.xpose.msra.mxu0 0
    %3309 = vmatprep.mubr.bf16.mxu0 0
    %3310 = vmatmul.mubr.bf16.gmra.mrb[0].mxu0 %v3266
    %v3311 = vpop.f32.mrb[0].mxu0
    %v3312 = vadd.f32 0.0, %v3311
    %v3313 = vpop.f32.mrb[0].mxu0
    %v3314 = vpop.f32.mrb[0].mxu0
    %v3315 = vadd.f32 0.0, %v3314
    %v3316 = vpop.f32.mrb[0].mxu0
    %3317 = vmatprep.mubr.bf16.mxu0 0
    %3318 = vmatmul.mubr.bf16.gmra.mrb[0].mxu0 %v3269
    %v3319 = vpop.f32.mrb[0].mxu0
    %v3320 = vadd.f32 0.0, %v3319
    %v3321 = vpop.f32.mrb[0].mxu0
    %v3322 = vpop.f32.mrb[0].mxu0
    %v3323 = vpop.f32.mrb[0].mxu0
    %3324 = vdwg.mxu0
    %3325 = vrot.lane.b32.xlu0 %v2587, 112
    %v3326 = vpop.permute.xlu0 %3325
    %3327 = vrot.lane.b32.xlu0 %v2588, 112
    %v3328 = vpop.permute.xlu0 %3327
    %3329 = vrot.lane.b32.xlu0 %v2587, 80
    %v3330 = vpop.permute.xlu0 %3329
    %3331 = vrot.lane.b32.xlu0 %v2588, 80
    %v3332 = vpop.permute.xlu0 %3331
    %v3334 = vsel %vm298, %v3326, 0
    %v3337 = vsel %vm298, %v3328, 0
    %v3340 = vsel %vm298, %v3330, 0
    %v3343 = vsel %vm298, %v3332, 0
    %3345 = vmatprep.subr.bf16.mxu0 0
    %3346 = vmatpush1.bf16.xpose.msra.mxu0 %v3340
    %3347 = vmatprep.subr.bf16.mxu0 0
    %3348 = vmatpush1.bf16.xpose.msra.mxu0 %v3343
    %3349 = vmatprep.subr.bf16.mxu0 0
    %3350 = vmatpush1.bf16.xpose.msra.mxu0 0
    %3351 = vmatprep.subr.bf16.mxu0 0
    %3352 = vmatpush1.bf16.xpose.msra.mxu0 0
    %3353 = vmatprep.subr.bf16.mxu0 0
    %3354 = vmatpush1.bf16.xpose.msra.mxu0 0
    %3355 = vmatprep.subr.bf16.mxu0 0
    %3356 = vmatpush1.bf16.xpose.msra.mxu0 0
    %3357 = vmatprep.subr.bf16.mxu0 0
    %3358 = vmatpush1.bf16.xpose.msra.mxu0 0
    %3359 = vmatprep.subr.bf16.mxu0 0
    %3360 = vmatpush1.bf16.xpose.msra.mxu0 0
    %3361 = vmatprep.subr.bf16.mxu0 0
    %3362 = vmatpush1.bf16.xpose.msra.mxu0 0
    %3363 = vmatprep.subr.bf16.mxu0 0
    %3364 = vmatpush1.bf16.xpose.msra.mxu0 0
    %3365 = vmatprep.subr.bf16.mxu0 0
    %3366 = vmatpush1.bf16.xpose.msra.mxu0 0
    %3367 = vmatprep.subr.bf16.mxu0 0
    %3368 = vmatpush1.bf16.xpose.msra.mxu0 0
    %3369 = vmatprep.subr.bf16.mxu0 0
    %3370 = vmatpush1.bf16.xpose.msra.mxu0 0
    %3371 = vmatprep.subr.bf16.mxu0 0
    %3372 = vmatpush1.bf16.xpose.msra.mxu0 0
    %3373 = vmatprep.subr.bf16.mxu0 0
    %3374 = vmatpush1.bf16.xpose.msra.mxu0 0
    %3375 = vmatprep.subr.bf16.mxu0 0
    %3376 = vmatpush1.bf16.xpose.msra.mxu0 0
    %3377 = vmatprep.mubr.bf16.mxu0 0
    %3378 = vmatmul.mubr.bf16.gmra.mrb[0].mxu0 %v3334
    %v3379 = vpop.f32.mrb[0].mxu0
    %v3380 = vadd.f32 0.0, %v3379
    %v3381 = vpop.f32.mrb[0].mxu0
    %v3382 = vpop.f32.mrb[0].mxu0
    %v3383 = vadd.f32 0.0, %v3382
    %v3384 = vpop.f32.mrb[0].mxu0
    %3385 = vmatprep.mubr.bf16.mxu0 0
    %3386 = vmatmul.mubr.bf16.gmra.mrb[0].mxu0 %v3337
    %v3387 = vpop.f32.mrb[0].mxu0
    %v3388 = vadd.f32 0.0, %v3387
    %v3389 = vpop.f32.mrb[0].mxu0
    %v3390 = vpop.f32.mrb[0].mxu0
    %v3391 = vpop.f32.mrb[0].mxu0
    %3392 = vdwg.mxu0
    %v3393 = vmul.f32 %v3312, 0.35355338
    %v3394 = vmul.f32 %v3315, 0.35355338
    %v3395 = vmul.f32 %v3320, 0.35355338
    %v3396 = vmul.f32 %v3380, 0.35355338
    %v3397 = vmul.f32 %v3383, 0.35355338
    %v3398 = vmul.f32 %v3388, 0.35355338
    %v3399 = vsel %vm431, %v3393, -inf
    %3400 = vmax.xlane.f32.xlu0 %v3399
    %v3401 = vpop.xlane.xlu0 %3400
    %v3402 = vsel %vm431, %v3394, -inf
    %3403 = vmax.xlane.f32.xlu0 %v3402
    %v3404 = vpop.xlane.xlu0 %3403
    %v3405 = vsel %vm438, %v3395, -inf
    %3406 = vmax.xlane.f32.xlu0 %v3405
    %v3407 = vpop.xlane.xlu0 %3406
    %v3408 = vsel %vm431, %v3396, -inf
    %3409 = vmax.xlane.f32.xlu0 %v3408
    %v3410 = vpop.xlane.xlu0 %3409
    %v3411 = vsel %vm431, %v3397, -inf
    %3412 = vmax.xlane.f32.xlu0 %v3411
    %v3413 = vpop.xlane.xlu0 %3412
    %v3414 = vsel %vm438, %v3398, -inf
    %3415 = vmax.xlane.f32.xlu0 %v3414
    %v3416 = vpop.xlane.xlu0 %3415
    %v3417 = vsub.f32 %v3393, %v3401
    %v3418 = vsub.f32 %v3394, %v3404
    %v3419 = vsub.f32 %v3395, %v3407
    %v3420 = vsub.f32 %v3396, %v3410
    %v3421 = vsub.f32 %v3397, %v3413
    %v3422 = vsub.f32 %v3398, %v3416
    %v3423 = vmul.f32 %v3417, 1.442695
    %v3424 = vpow.pop %v3423
    %v3425 = vmul.f32 %v3418, 1.442695
    %v3426 = vpow.pop %v3425
    %v3427 = vmul.f32 %v3419, 1.442695
    %v3428 = vpow.pop %v3427
    %v3429 = vmul.f32 %v3420, 1.442695
    %v3430 = vpow.pop %v3429
    %v3431 = vmul.f32 %v3421, 1.442695
    %v3432 = vpow.pop %v3431
    %v3433 = vmul.f32 %v3422, 1.442695
    %v3434 = vpow.pop %v3433
    %v3435 = vsel %vm431, %v3424, 0.0
    %3436 = vadd.xlane.f32.xlu0 %v3435
    %v3437 = vpop.xlane.xlu0 %3436
    %v3438 = vsel %vm431, %v3426, 0.0
    %3439 = vadd.xlane.f32.xlu0 %v3438
    %v3440 = vpop.xlane.xlu0 %3439
    %v3441 = vsel %vm438, %v3428, 0.0
    %3442 = vadd.xlane.f32.xlu0 %v3441
    %v3443 = vpop.xlane.xlu0 %3442
    %v3444 = vsel %vm431, %v3430, 0.0
    %3445 = vadd.xlane.f32.xlu0 %v3444
    %v3446 = vpop.xlane.xlu0 %3445
    %v3447 = vsel %vm431, %v3432, 0.0
    %3448 = vadd.xlane.f32.xlu0 %v3447
    %v3449 = vpop.xlane.xlu0 %3448
    %v3450 = vsel %vm438, %v3434, 0.0
    %3451 = vadd.xlane.f32.xlu0 %v3450
    %v3452 = vpop.xlane.xlu0 %3451
    %v3453 = vrcp.pop %v3437
    %v3454 = vrcp.pop %v3440
    %v3455 = vrcp.pop %v3443
    %v3456 = vrcp.pop %v3446
    %v3457 = vrcp.pop %v3449
    %v3458 = vrcp.pop %v3452
    %v3459 = vmul.f32 %v3424, %v3453
    %v3460 = vmul.f32 %v3426, %v3454
    %v3461 = vmul.f32 %v3428, %v3455
    %v3462 = vmul.f32 %v3430, %v3456
    %v3463 = vmul.f32 %v3432, %v3457
    %v3464 = vmul.f32 %v3434, %v3458
    %v3465 = vpack.c.bf16 %v3460, %v3459
    %v3466 = vpack.c.bf16 %v3461, %v3461
    %v3467 = vpack.c.bf16 %v3463, %v3462
    %v3468 = vpack.c.bf16 %v3464, %v3464
    %3469 = vrot.lane.b32.xlu0 %v2585, 48
    %v3470 = vpop.permute.xlu0 %3469
    %3471 = vrot.lane.b32.xlu0 %v2586, 48
    %v3472 = vpop.permute.xlu0 %3471
    %v3475 = vsel %vm431, %v3465, 0
    %v3478 = vsel %vm431, %v3466, 0
    %v3481 = vand.u32 %v3472, %v516
    %3483 = vmatprep.subr.bf16.mxu0 0
    %3484 = vmatpush1.bf16.msra.mxu0 %v3470
    %3485 = vmatprep.subr.bf16.mxu0 0
    %3486 = vmatpush1.bf16.msra.mxu0 %v3481
    %3487 = vmatprep.subr.bf16.mxu0 0
    %3488 = vmatpush1.bf16.msra.mxu0 0
    %3489 = vmatprep.subr.bf16.mxu0 0
    %3490 = vmatpush1.bf16.msra.mxu0 0
    %3491 = vmatprep.subr.bf16.mxu0 0
    %3492 = vmatpush1.bf16.msra.mxu0 0
    %3493 = vmatprep.subr.bf16.mxu0 0
    %3494 = vmatpush1.bf16.msra.mxu0 0
    %3495 = vmatprep.subr.bf16.mxu0 0
    %3496 = vmatpush1.bf16.msra.mxu0 0
    %3497 = vmatprep.subr.bf16.mxu0 0
    %3498 = vmatpush1.bf16.msra.mxu0 0
    %3499 = vmatprep.subr.bf16.mxu0 0
    %3500 = vmatpush1.bf16.msra.mxu0 0
    %3501 = vmatprep.subr.bf16.mxu0 0
    %3502 = vmatpush1.bf16.msra.mxu0 0
    %3503 = vmatprep.subr.bf16.mxu0 0
    %3504 = vmatpush1.bf16.msra.mxu0 0
    %3505 = vmatprep.subr.bf16.mxu0 0
    %3506 = vmatpush1.bf16.msra.mxu0 0
    %3507 = vmatprep.subr.bf16.mxu0 0
    %3508 = vmatpush1.bf16.msra.mxu0 0
    %3509 = vmatprep.subr.bf16.mxu0 0
    %3510 = vmatpush1.bf16.msra.mxu0 0
    %3511 = vmatprep.subr.bf16.mxu0 0
    %3512 = vmatpush1.bf16.msra.mxu0 0
    %3513 = vmatprep.subr.bf16.mxu0 0
    %3514 = vmatpush1.bf16.msra.mxu0 0
    %3515 = vmatprep.mubr.bf16.mxu0 0
    %3516 = vmatmul.mubr.bf16.gmra.mrb[0].mxu0 %v3475
    %v3517 = vpop.f32.mrb[0].mxu0
    %v3518 = vadd.f32 0.0, %v3517
    %v3519 = vpop.f32.mrb[0].mxu0
    %v3520 = vpop.f32.mrb[0].mxu0
    %v3521 = vadd.f32 0.0, %v3520
    %v3522 = vpop.f32.mrb[0].mxu0
    %3523 = vmatprep.mubr.bf16.mxu0 0
    %3524 = vmatmul.mubr.bf16.gmra.mrb[0].mxu0 %v3478
    %v3525 = vpop.f32.mrb[0].mxu0
    %v3526 = vadd.f32 0.0, %v3525
    %v3527 = vpop.f32.mrb[0].mxu0
    %v3528 = vpop.f32.mrb[0].mxu0
    %v3529 = vpop.f32.mrb[0].mxu0
    %3530 = vdwg.mxu0
    %3531 = vrot.lane.b32.xlu0 %v2587, 48
    %v3532 = vpop.permute.xlu0 %3531
    %3533 = vrot.lane.b32.xlu0 %v2588, 48
    %v3534 = vpop.permute.xlu0 %3533
    %v3537 = vsel %vm431, %v3467, 0
    %v3540 = vsel %vm431, %v3468, 0
    %v3543 = vand.u32 %v3534, %v516
    %3545 = vmatprep.subr.bf16.mxu0 0
    %3546 = vmatpush1.bf16.msra.mxu0 %v3532
    %3547 = vmatprep.subr.bf16.mxu0 0
    %3548 = vmatpush1.bf16.msra.mxu0 %v3543
    %3549 = vmatprep.subr.bf16.mxu0 0
    %3550 = vmatpush1.bf16.msra.mxu0 0
    %3551 = vmatprep.subr.bf16.mxu0 0
    %3552 = vmatpush1.bf16.msra.mxu0 0
    %3553 = vmatprep.subr.bf16.mxu0 0
    %3554 = vmatpush1.bf16.msra.mxu0 0
    %3555 = vmatprep.subr.bf16.mxu0 0
    %3556 = vmatpush1.bf16.msra.mxu0 0
    %3557 = vmatprep.subr.bf16.mxu0 0
    %3558 = vmatpush1.bf16.msra.mxu0 0
    %3559 = vmatprep.subr.bf16.mxu0 0
    %3560 = vmatpush1.bf16.msra.mxu0 0
    %3561 = vmatprep.subr.bf16.mxu0 0
    %3562 = vmatpush1.bf16.msra.mxu0 0
    %3563 = vmatprep.subr.bf16.mxu0 0
    %3564 = vmatpush1.bf16.msra.mxu0 0
    %3565 = vmatprep.subr.bf16.mxu0 0
    %3566 = vmatpush1.bf16.msra.mxu0 0
    %3567 = vmatprep.subr.bf16.mxu0 0
    %3568 = vmatpush1.bf16.msra.mxu0 0
    %3569 = vmatprep.subr.bf16.mxu0 0
    %3570 = vmatpush1.bf16.msra.mxu0 0
    %3571 = vmatprep.subr.bf16.mxu0 0
    %3572 = vmatpush1.bf16.msra.mxu0 0
    %3573 = vmatprep.subr.bf16.mxu0 0
    %3574 = vmatpush1.bf16.msra.mxu0 0
    %3575 = vmatprep.subr.bf16.mxu0 0
    %3576 = vmatpush1.bf16.msra.mxu0 0
    %3577 = vmatprep.mubr.bf16.mxu0 0
    %3578 = vmatmul.mubr.bf16.gmra.mrb[0].mxu0 %v3537
    %v3579 = vpop.f32.mrb[0].mxu0
    %v3580 = vadd.f32 0.0, %v3579
    %v3581 = vpop.f32.mrb[0].mxu0
    %v3582 = vpop.f32.mrb[0].mxu0
    %v3583 = vadd.f32 0.0, %v3582
    %v3584 = vpop.f32.mrb[0].mxu0
    %3585 = vmatprep.mubr.bf16.mxu0 0
    %3586 = vmatmul.mubr.bf16.gmra.mrb[0].mxu0 %v3540
    %v3587 = vpop.f32.mrb[0].mxu0
    %v3588 = vadd.f32 0.0, %v3587
    %v3589 = vpop.f32.mrb[0].mxu0
    %v3590 = vpop.f32.mrb[0].mxu0
    %v3591 = vpop.f32.mrb[0].mxu0
    %3592 = vdwg.mxu0
    %3593 = vrot.lane.b32.xlu0 %v2585, 104
    %v3594 = vpop.permute.xlu0 %3593
    %3595 = vrot.lane.b32.xlu0 %v2586, 104
    %v3596 = vpop.permute.xlu0 %3595
    %3597 = vrot.lane.b32.xlu0 %v2585, 72
    %v3598 = vpop.permute.xlu0 %3597
    %3599 = vrot.lane.b32.xlu0 %v2586, 72
    %v3600 = vpop.permute.xlu0 %3599
    %v3602 = vsel %vm298, %v3594, 0
    %v3605 = vsel %vm298, %v3596, 0
    %v3608 = vsel %vm298, %v3598, 0
    %v3611 = vsel %vm298, %v3600, 0
    %3613 = vmatprep.subr.bf16.mxu0 0
    %3614 = vmatpush1.bf16.xpose.msra.mxu0 %v3608
    %3615 = vmatprep.subr.bf16.mxu0 0
    %3616 = vmatpush1.bf16.xpose.msra.mxu0 %v3611
    %3617 = vmatprep.subr.bf16.mxu0 0
    %3618 = vmatpush1.bf16.xpose.msra.mxu0 0
    %3619 = vmatprep.subr.bf16.mxu0 0
    %3620 = vmatpush1.bf16.xpose.msra.mxu0 0
    %3621 = vmatprep.subr.bf16.mxu0 0
    %3622 = vmatpush1.bf16.xpose.msra.mxu0 0
    %3623 = vmatprep.subr.bf16.mxu0 0
    %3624 = vmatpush1.bf16.xpose.msra.mxu0 0
    %3625 = vmatprep.subr.bf16.mxu0 0
    %3626 = vmatpush1.bf16.xpose.msra.mxu0 0
    %3627 = vmatprep.subr.bf16.mxu0 0
    %3628 = vmatpush1.bf16.xpose.msra.mxu0 0
    %3629 = vmatprep.subr.bf16.mxu0 0
    %3630 = vmatpush1.bf16.xpose.msra.mxu0 0
    %3631 = vmatprep.subr.bf16.mxu0 0
    %3632 = vmatpush1.bf16.xpose.msra.mxu0 0
    %3633 = vmatprep.subr.bf16.mxu0 0
    %3634 = vmatpush1.bf16.xpose.msra.mxu0 0
    %3635 = vmatprep.subr.bf16.mxu0 0
    %3636 = vmatpush1.bf16.xpose.msra.mxu0 0
    %3637 = vmatprep.subr.bf16.mxu0 0
    %3638 = vmatpush1.bf16.xpose.msra.mxu0 0
    %3639 = vmatprep.subr.bf16.mxu0 0
    %3640 = vmatpush1.bf16.xpose.msra.mxu0 0
    %3641 = vmatprep.subr.bf16.mxu0 0
    %3642 = vmatpush1.bf16.xpose.msra.mxu0 0
    %3643 = vmatprep.subr.bf16.mxu0 0
    %3644 = vmatpush1.bf16.xpose.msra.mxu0 0
    %3645 = vmatprep.mubr.bf16.mxu0 0
    %3646 = vmatmul.mubr.bf16.gmra.mrb[0].mxu0 %v3602
    %v3647 = vpop.f32.mrb[0].mxu0
    %v3648 = vadd.f32 0.0, %v3647
    %v3649 = vpop.f32.mrb[0].mxu0
    %v3650 = vpop.f32.mrb[0].mxu0
    %v3651 = vadd.f32 0.0, %v3650
    %v3652 = vpop.f32.mrb[0].mxu0
    %3653 = vmatprep.mubr.bf16.mxu0 0
    %3654 = vmatmul.mubr.bf16.gmra.mrb[0].mxu0 %v3605
    %v3655 = vpop.f32.mrb[0].mxu0
    %v3656 = vadd.f32 0.0, %v3655
    %v3657 = vpop.f32.mrb[0].mxu0
    %v3658 = vpop.f32.mrb[0].mxu0
    %v3659 = vpop.f32.mrb[0].mxu0
    %3660 = vdwg.mxu0
    %3661 = vrot.lane.b32.xlu0 %v2587, 104
    %v3662 = vpop.permute.xlu0 %3661
    %3663 = vrot.lane.b32.xlu0 %v2588, 104
    %v3664 = vpop.permute.xlu0 %3663
    %3665 = vrot.lane.b32.xlu0 %v2587, 72
    %v3666 = vpop.permute.xlu0 %3665
    %3667 = vrot.lane.b32.xlu0 %v2588, 72
    %v3668 = vpop.permute.xlu0 %3667
    %v3670 = vsel %vm298, %v3662, 0
    %v3673 = vsel %vm298, %v3664, 0
    %v3676 = vsel %vm298, %v3666, 0
    %v3679 = vsel %vm298, %v3668, 0
    %3681 = vmatprep.subr.bf16.mxu0 0
    %3682 = vmatpush1.bf16.xpose.msra.mxu0 %v3676
    %3683 = vmatprep.subr.bf16.mxu0 0
    %3684 = vmatpush1.bf16.xpose.msra.mxu0 %v3679
    %3685 = vmatprep.subr.bf16.mxu0 0
    %3686 = vmatpush1.bf16.xpose.msra.mxu0 0
    %3687 = vmatprep.subr.bf16.mxu0 0
    %3688 = vmatpush1.bf16.xpose.msra.mxu0 0
    %3689 = vmatprep.subr.bf16.mxu0 0
    %3690 = vmatpush1.bf16.xpose.msra.mxu0 0
    %3691 = vmatprep.subr.bf16.mxu0 0
    %3692 = vmatpush1.bf16.xpose.msra.mxu0 0
    %3693 = vmatprep.subr.bf16.mxu0 0
    %3694 = vmatpush1.bf16.xpose.msra.mxu0 0
    %3695 = vmatprep.subr.bf16.mxu0 0
    %3696 = vmatpush1.bf16.xpose.msra.mxu0 0
    %3697 = vmatprep.subr.bf16.mxu0 0
    %3698 = vmatpush1.bf16.xpose.msra.mxu0 0
    %3699 = vmatprep.subr.bf16.mxu0 0
    %3700 = vmatpush1.bf16.xpose.msra.mxu0 0
    %3701 = vmatprep.subr.bf16.mxu0 0
    %3702 = vmatpush1.bf16.xpose.msra.mxu0 0
    %3703 = vmatprep.subr.bf16.mxu0 0
    %3704 = vmatpush1.bf16.xpose.msra.mxu0 0
    %3705 = vmatprep.subr.bf16.mxu0 0
    %3706 = vmatpush1.bf16.xpose.msra.mxu0 0
    %3707 = vmatprep.subr.bf16.mxu0 0
    %3708 = vmatpush1.bf16.xpose.msra.mxu0 0
    %3709 = vmatprep.subr.bf16.mxu0 0
    %3710 = vmatpush1.bf16.xpose.msra.mxu0 0
    %3711 = vmatprep.subr.bf16.mxu0 0
    %3712 = vmatpush1.bf16.xpose.msra.mxu0 0
    %3713 = vmatprep.mubr.bf16.mxu0 0
    %3714 = vmatmul.mubr.bf16.gmra.mrb[0].mxu0 %v3670
    %v3715 = vpop.f32.mrb[0].mxu0
    %v3716 = vadd.f32 0.0, %v3715
    %v3717 = vpop.f32.mrb[0].mxu0
    %v3718 = vpop.f32.mrb[0].mxu0
    %v3719 = vadd.f32 0.0, %v3718
    %v3720 = vpop.f32.mrb[0].mxu0
    %3721 = vmatprep.mubr.bf16.mxu0 0
    %3722 = vmatmul.mubr.bf16.gmra.mrb[0].mxu0 %v3673
    %v3723 = vpop.f32.mrb[0].mxu0
    %v3724 = vadd.f32 0.0, %v3723
    %v3725 = vpop.f32.mrb[0].mxu0
    %v3726 = vpop.f32.mrb[0].mxu0
    %v3727 = vpop.f32.mrb[0].mxu0
    %3728 = vdwg.mxu0
    %v3729 = vmul.f32 %v3648, 0.35355338
    %v3730 = vmul.f32 %v3651, 0.35355338
    %v3731 = vmul.f32 %v3656, 0.35355338
    %v3732 = vmul.f32 %v3716, 0.35355338
    %v3733 = vmul.f32 %v3719, 0.35355338
    %v3734 = vmul.f32 %v3724, 0.35355338
    %v3735 = vsel %vm431, %v3729, -inf
    %3736 = vmax.xlane.f32.xlu0 %v3735
    %v3737 = vpop.xlane.xlu0 %3736
    %v3738 = vsel %vm431, %v3730, -inf
    %3739 = vmax.xlane.f32.xlu0 %v3738
    %v3740 = vpop.xlane.xlu0 %3739
    %v3741 = vsel %vm438, %v3731, -inf
    %3742 = vmax.xlane.f32.xlu0 %v3741
    %v3743 = vpop.xlane.xlu0 %3742
    %v3744 = vsel %vm431, %v3732, -inf
    %3745 = vmax.xlane.f32.xlu0 %v3744
    %v3746 = vpop.xlane.xlu0 %3745
    %v3747 = vsel %vm431, %v3733, -inf
    %3748 = vmax.xlane.f32.xlu0 %v3747
    %v3749 = vpop.xlane.xlu0 %3748
    %v3750 = vsel %vm438, %v3734, -inf
    %3751 = vmax.xlane.f32.xlu0 %v3750
    %v3752 = vpop.xlane.xlu0 %3751
    %v3753 = vsub.f32 %v3729, %v3737
    %v3754 = vsub.f32 %v3730, %v3740
    %v3755 = vsub.f32 %v3731, %v3743
    %v3756 = vsub.f32 %v3732, %v3746
    %v3757 = vsub.f32 %v3733, %v3749
    %v3758 = vsub.f32 %v3734, %v3752
    %v3759 = vmul.f32 %v3753, 1.442695
    %v3760 = vpow.pop %v3759
    %v3761 = vmul.f32 %v3754, 1.442695
    %v3762 = vpow.pop %v3761
    %v3763 = vmul.f32 %v3755, 1.442695
    %v3764 = vpow.pop %v3763
    %v3765 = vmul.f32 %v3756, 1.442695
    %v3766 = vpow.pop %v3765
    %v3767 = vmul.f32 %v3757, 1.442695
    %v3768 = vpow.pop %v3767
    %v3769 = vmul.f32 %v3758, 1.442695
    %v3770 = vpow.pop %v3769
    %v3771 = vsel %vm431, %v3760, 0.0
    %3772 = vadd.xlane.f32.xlu0 %v3771
    %v3773 = vpop.xlane.xlu0 %3772
    %v3774 = vsel %vm431, %v3762, 0.0
    %3775 = vadd.xlane.f32.xlu0 %v3774
    %v3776 = vpop.xlane.xlu0 %3775
    %v3777 = vsel %vm438, %v3764, 0.0
    %3778 = vadd.xlane.f32.xlu0 %v3777
    %v3779 = vpop.xlane.xlu0 %3778
    %v3780 = vsel %vm431, %v3766, 0.0
    %3781 = vadd.xlane.f32.xlu0 %v3780
    %v3782 = vpop.xlane.xlu0 %3781
    %v3783 = vsel %vm431, %v3768, 0.0
    %3784 = vadd.xlane.f32.xlu0 %v3783
    %v3785 = vpop.xlane.xlu0 %3784
    %v3786 = vsel %vm438, %v3770, 0.0
    %3787 = vadd.xlane.f32.xlu0 %v3786
    %v3788 = vpop.xlane.xlu0 %3787
    %v3789 = vrcp.pop %v3773
    %v3790 = vrcp.pop %v3776
    %v3791 = vrcp.pop %v3779
    %v3792 = vrcp.pop %v3782
    %v3793 = vrcp.pop %v3785
    %v3794 = vrcp.pop %v3788
    %v3795 = vmul.f32 %v3760, %v3789
    %v3796 = vmul.f32 %v3762, %v3790
    %v3797 = vmul.f32 %v3764, %v3791
    %v3798 = vmul.f32 %v3766, %v3792
    %v3799 = vmul.f32 %v3768, %v3793
    %v3800 = vmul.f32 %v3770, %v3794
    %v3801 = vpack.c.bf16 %v3796, %v3795
    %v3802 = vpack.c.bf16 %v3797, %v3797
    %v3803 = vpack.c.bf16 %v3799, %v3798
    %v3804 = vpack.c.bf16 %v3800, %v3800
    %3805 = vrot.lane.b32.xlu0 %v2585, 40
    %v3806 = vpop.permute.xlu0 %3805
    %3807 = vrot.lane.b32.xlu0 %v2586, 40
    %v3808 = vpop.permute.xlu0 %3807
    %v3811 = vsel %vm431, %v3801, 0
    %v3814 = vsel %vm431, %v3802, 0
    %v3817 = vand.u32 %v3808, %v516
    %3819 = vmatprep.subr.bf16.mxu0 0
    %3820 = vmatpush1.bf16.msra.mxu0 %v3806
    %3821 = vmatprep.subr.bf16.mxu0 0
    %3822 = vmatpush1.bf16.msra.mxu0 %v3817
    %3823 = vmatprep.subr.bf16.mxu0 0
    %3824 = vmatpush1.bf16.msra.mxu0 0
    %3825 = vmatprep.subr.bf16.mxu0 0
    %3826 = vmatpush1.bf16.msra.mxu0 0
    %3827 = vmatprep.subr.bf16.mxu0 0
    %3828 = vmatpush1.bf16.msra.mxu0 0
    %3829 = vmatprep.subr.bf16.mxu0 0
    %3830 = vmatpush1.bf16.msra.mxu0 0
    %3831 = vmatprep.subr.bf16.mxu0 0
    %3832 = vmatpush1.bf16.msra.mxu0 0
    %3833 = vmatprep.subr.bf16.mxu0 0
    %3834 = vmatpush1.bf16.msra.mxu0 0
    %3835 = vmatprep.subr.bf16.mxu0 0
    %3836 = vmatpush1.bf16.msra.mxu0 0
    %3837 = vmatprep.subr.bf16.mxu0 0
    %3838 = vmatpush1.bf16.msra.mxu0 0
    %3839 = vmatprep.subr.bf16.mxu0 0
    %3840 = vmatpush1.bf16.msra.mxu0 0
    %3841 = vmatprep.subr.bf16.mxu0 0
    %3842 = vmatpush1.bf16.msra.mxu0 0
    %3843 = vmatprep.subr.bf16.mxu0 0
    %3844 = vmatpush1.bf16.msra.mxu0 0
    %3845 = vmatprep.subr.bf16.mxu0 0
    %3846 = vmatpush1.bf16.msra.mxu0 0
    %3847 = vmatprep.subr.bf16.mxu0 0
    %3848 = vmatpush1.bf16.msra.mxu0 0
    %3849 = vmatprep.subr.bf16.mxu0 0
    %3850 = vmatpush1.bf16.msra.mxu0 0
    %3851 = vmatprep.mubr.bf16.mxu0 0
    %3852 = vmatmul.mubr.bf16.gmra.mrb[0].mxu0 %v3811
    %v3853 = vpop.f32.mrb[0].mxu0
    %v3854 = vadd.f32 0.0, %v3853
    %v3855 = vpop.f32.mrb[0].mxu0
    %v3856 = vpop.f32.mrb[0].mxu0
    %v3857 = vadd.f32 0.0, %v3856
    %v3858 = vpop.f32.mrb[0].mxu0
    %3859 = vmatprep.mubr.bf16.mxu0 0
    %3860 = vmatmul.mubr.bf16.gmra.mrb[0].mxu0 %v3814
    %v3861 = vpop.f32.mrb[0].mxu0
    %v3862 = vadd.f32 0.0, %v3861
    %v3863 = vpop.f32.mrb[0].mxu0
    %v3864 = vpop.f32.mrb[0].mxu0
    %v3865 = vpop.f32.mrb[0].mxu0
    %3866 = vdwg.mxu0
    %3867 = vrot.lane.b32.xlu0 %v2587, 40
    %v3868 = vpop.permute.xlu0 %3867
    %3869 = vrot.lane.b32.xlu0 %v2588, 40
    %v3870 = vpop.permute.xlu0 %3869
    %v3873 = vsel %vm431, %v3803, 0
    %v3876 = vsel %vm431, %v3804, 0
    %v3879 = vand.u32 %v3870, %v516
    %3881 = vmatprep.subr.bf16.mxu0 0
    %3882 = vmatpush1.bf16.msra.mxu0 %v3868
    %3883 = vmatprep.subr.bf16.mxu0 0
    %3884 = vmatpush1.bf16.msra.mxu0 %v3879
    %3885 = vmatprep.subr.bf16.mxu0 0
    %3886 = vmatpush1.bf16.msra.mxu0 0
    %3887 = vmatprep.subr.bf16.mxu0 0
    %3888 = vmatpush1.bf16.msra.mxu0 0
    %3889 = vmatprep.subr.bf16.mxu0 0
    %3890 = vmatpush1.bf16.msra.mxu0 0
    %3891 = vmatprep.subr.bf16.mxu0 0
    %3892 = vmatpush1.bf16.msra.mxu0 0
    %3893 = vmatprep.subr.bf16.mxu0 0
    %3894 = vmatpush1.bf16.msra.mxu0 0
    %3895 = vmatprep.subr.bf16.mxu0 0
    %3896 = vmatpush1.bf16.msra.mxu0 0
    %3897 = vmatprep.subr.bf16.mxu0 0
    %3898 = vmatpush1.bf16.msra.mxu0 0
    %3899 = vmatprep.subr.bf16.mxu0 0
    %3900 = vmatpush1.bf16.msra.mxu0 0
    %3901 = vmatprep.subr.bf16.mxu0 0
    %3902 = vmatpush1.bf16.msra.mxu0 0
    %3903 = vmatprep.subr.bf16.mxu0 0
    %3904 = vmatpush1.bf16.msra.mxu0 0
    %3905 = vmatprep.subr.bf16.mxu0 0
    %3906 = vmatpush1.bf16.msra.mxu0 0
    %3907 = vmatprep.subr.bf16.mxu0 0
    %3908 = vmatpush1.bf16.msra.mxu0 0
    %3909 = vmatprep.subr.bf16.mxu0 0
    %3910 = vmatpush1.bf16.msra.mxu0 0
    %3911 = vmatprep.subr.bf16.mxu0 0
    %3912 = vmatpush1.bf16.msra.mxu0 0
    %3913 = vmatprep.mubr.bf16.mxu0 0
    %3914 = vmatmul.mubr.bf16.gmra.mrb[0].mxu0 %v3873
    %v3915 = vpop.f32.mrb[0].mxu0
    %v3916 = vadd.f32 0.0, %v3915
    %v3917 = vpop.f32.mrb[0].mxu0
    %v3918 = vpop.f32.mrb[0].mxu0
    %v3919 = vadd.f32 0.0, %v3918
    %v3920 = vpop.f32.mrb[0].mxu0
    %3921 = vmatprep.mubr.bf16.mxu0 0
    %3922 = vmatmul.mubr.bf16.gmra.mrb[0].mxu0 %v3876
    %v3923 = vpop.f32.mrb[0].mxu0
    %v3924 = vadd.f32 0.0, %v3923
    %v3925 = vpop.f32.mrb[0].mxu0
    %v3926 = vpop.f32.mrb[0].mxu0
    %v3927 = vpop.f32.mrb[0].mxu0
    %3928 = vdwg.mxu0
    %3935 = vrot.lane.b32.xlu0 %v3182, 8
    %v3936 = vpop.permute.xlu0 %3935
    %3937 = vrot.lane.b32.xlu0 %v3185, 8
    %v3938 = vpop.permute.xlu0 %3937
    %3939 = vrot.lane.b32.xlu0 %v3190, 8
    %v3940 = vpop.permute.xlu0 %3939
    %3941 = vrot.lane.b32.xlu0 %v3244, 8
    %v3942 = vpop.permute.xlu0 %3941
    %3943 = vrot.lane.b32.xlu0 %v3247, 8
    %v3944 = vpop.permute.xlu0 %3943
    %3945 = vrot.lane.b32.xlu0 %v3252, 8
    %v3946 = vpop.permute.xlu0 %3945
    %3959 = vrot.lane.b32.xlu0 %v3518, 16
    %v3960 = vpop.permute.xlu0 %3959
    %3961 = vrot.lane.b32.xlu0 %v3521, 16
    %v3962 = vpop.permute.xlu0 %3961
    %3963 = vrot.lane.b32.xlu0 %v3526, 16
    %v3964 = vpop.permute.xlu0 %3963
    %3965 = vrot.lane.b32.xlu0 %v3580, 16
    %v3966 = vpop.permute.xlu0 %3965
    %3967 = vrot.lane.b32.xlu0 %v3583, 16
    %v3968 = vpop.permute.xlu0 %3967
    %3969 = vrot.lane.b32.xlu0 %v3588, 16
    %v3970 = vpop.permute.xlu0 %3969
    %3983 = vrot.lane.b32.xlu0 %v3854, 24
    %v3984 = vpop.permute.xlu0 %3983
    %3985 = vrot.lane.b32.xlu0 %v3857, 24
    %v3986 = vpop.permute.xlu0 %3985
    %3987 = vrot.lane.b32.xlu0 %v3862, 24
    %v3988 = vpop.permute.xlu0 %3987
    %3989 = vrot.lane.b32.xlu0 %v3916, 24
    %v3990 = vpop.permute.xlu0 %3989
    %3991 = vrot.lane.b32.xlu0 %v3919, 24
    %v3992 = vpop.permute.xlu0 %3991
    %3993 = vrot.lane.b32.xlu0 %v3924, 24
    %v3994 = vpop.permute.xlu0 %3993
    %v4001 = vsel %vm298, %v2846, %v3936
    %v4002 = vsel %vm298, %v2849, %v3938
    %v4003 = vsel %vm298, %v2854, %v3940
    %v4004 = vsel %vm298, %v2908, %v3942
    %v4005 = vsel %vm298, %v2911, %v3944
    %v4006 = vsel %vm298, %v2916, %v3946
    %v4007 = vsel %vm1716, %v4001, %v3960
    %v4008 = vsel %vm1716, %v4002, %v3962
    %v4009 = vsel %vm1716, %v4003, %v3964
    %v4010 = vsel %vm1716, %v4004, %v3966
    %v4011 = vsel %vm1716, %v4005, %v3968
    %v4012 = vsel %vm1716, %v4006, %v3970
    %v4013 = vsel %vm1723, %v4007, %v3984
    %v4014 = vsel %vm1723, %v4008, %v3986
    %v4015 = vsel %vm1723, %v4009, %v3988
    %v4016 = vsel %vm1723, %v4010, %v3990
    %v4017 = vsel %vm1723, %v4011, %v3992
    %v4018 = vsel %vm1723, %v4012, %v3994
    %v4019 = vpack.c.bf16 %v4014, %v4013
    %v4020 = vpack.c.bf16 %v4015, %v4015
    %4021 = vrot.lane.b32.xlu0 %v2471, 32
    %v4022 = vpop.permute.xlu0 %4021
    %4023 = vrot.lane.b32.xlu0 %v2472, 32
    %v4024 = vpop.permute.xlu0 %4023
    %v4028 = vsel %vm72, %v4019, 0
    %v4031 = vsel %vm72, %v4020, 0
    %4033 = vmatprep.subr.bf16.mxu0 0
    %4034 = vmatpush1.bf16.msra.mxu0 %v4022
    %4035 = vmatprep.subr.bf16.mxu0 0
    %4036 = vmatpush1.bf16.msra.mxu0 %v4024
    %4037 = vmatprep.subr.bf16.mxu0 0
    %4038 = vmatpush1.bf16.msra.mxu0 0
    %4039 = vmatprep.subr.bf16.mxu0 0
    %4040 = vmatpush1.bf16.msra.mxu0 0
    %4041 = vmatprep.subr.bf16.mxu0 0
    %4042 = vmatpush1.bf16.msra.mxu0 0
    %4043 = vmatprep.subr.bf16.mxu0 0
    %4044 = vmatpush1.bf16.msra.mxu0 0
    %4045 = vmatprep.subr.bf16.mxu0 0
    %4046 = vmatpush1.bf16.msra.mxu0 0
    %4047 = vmatprep.subr.bf16.mxu0 0
    %4048 = vmatpush1.bf16.msra.mxu0 0
    %4049 = vmatprep.subr.bf16.mxu0 0
    %4050 = vmatpush1.bf16.msra.mxu0 0
    %4051 = vmatprep.subr.bf16.mxu0 0
    %4052 = vmatpush1.bf16.msra.mxu0 0
    %4053 = vmatprep.subr.bf16.mxu0 0
    %4054 = vmatpush1.bf16.msra.mxu0 0
    %4055 = vmatprep.subr.bf16.mxu0 0
    %4056 = vmatpush1.bf16.msra.mxu0 0
    %4057 = vmatprep.subr.bf16.mxu0 0
    %4058 = vmatpush1.bf16.msra.mxu0 0
    %4059 = vmatprep.subr.bf16.mxu0 0
    %4060 = vmatpush1.bf16.msra.mxu0 0
    %4061 = vmatprep.subr.bf16.mxu0 0
    %4062 = vmatpush1.bf16.msra.mxu0 0
    %4063 = vmatprep.subr.bf16.mxu0 0
    %4064 = vmatpush1.bf16.msra.mxu0 0
    %4065 = vmatprep.mubr.bf16.mxu0 0
    %4066 = vmatmul.mubr.bf16.gmra.mrb[0].mxu0 %v4028
    %v4067 = vpop.f32.mrb[0].mxu0
    %v4068 = vadd.f32 0.0, %v4067
    %v4069 = vpop.f32.mrb[0].mxu0
    %v4070 = vpop.f32.mrb[0].mxu0
    %v4071 = vadd.f32 0.0, %v4070
    %v4072 = vpop.f32.mrb[0].mxu0
    %4073 = vmatprep.mubr.bf16.mxu0 0
    %4074 = vmatmul.mubr.bf16.gmra.mrb[0].mxu0 %v4031
    %v4075 = vpop.f32.mrb[0].mxu0
    %v4076 = vadd.f32 0.0, %v4075
    %v4077 = vpop.f32.mrb[0].mxu0
    %v4078 = vpop.f32.mrb[0].mxu0
    %v4079 = vpop.f32.mrb[0].mxu0
    %4080 = vdwg.mxu0
    %v4081 = vpack.c.bf16 %v4017, %v4016
    %v4082 = vpack.c.bf16 %v4018, %v4018
    %v4084 = vsel %vm72, %v4081, 0
    %v4087 = vsel %vm72, %v4082, 0
    %4089 = vmatprep.subr.bf16.mxu0 0
    %4090 = vmatpush1.bf16.msra.mxu0 %v4022
    %4091 = vmatprep.subr.bf16.mxu0 0
    %4092 = vmatpush1.bf16.msra.mxu0 %v4024
    %4093 = vmatprep.subr.bf16.mxu0 0
    %4094 = vmatpush1.bf16.msra.mxu0 0
    %4095 = vmatprep.subr.bf16.mxu0 0
    %4096 = vmatpush1.bf16.msra.mxu0 0
    %4097 = vmatprep.subr.bf16.mxu0 0
    %4098 = vmatpush1.bf16.msra.mxu0 0
    %4099 = vmatprep.subr.bf16.mxu0 0
    %4100 = vmatpush1.bf16.msra.mxu0 0
    %4101 = vmatprep.subr.bf16.mxu0 0
    %4102 = vmatpush1.bf16.msra.mxu0 0
    %4103 = vmatprep.subr.bf16.mxu0 0
    %4104 = vmatpush1.bf16.msra.mxu0 0
    %4105 = vmatprep.subr.bf16.mxu0 0
    %4106 = vmatpush1.bf16.msra.mxu0 0
    %4107 = vmatprep.subr.bf16.mxu0 0
    %4108 = vmatpush1.bf16.msra.mxu0 0
    %4109 = vmatprep.subr.bf16.mxu0 0
    %4110 = vmatpush1.bf16.msra.mxu0 0
    %4111 = vmatprep.subr.bf16.mxu0 0
    %4112 = vmatpush1.bf16.msra.mxu0 0
    %4113 = vmatprep.subr.bf16.mxu0 0
    %4114 = vmatpush1.bf16.msra.mxu0 0
    %4115 = vmatprep.subr.bf16.mxu0 0
    %4116 = vmatpush1.bf16.msra.mxu0 0
    %4117 = vmatprep.subr.bf16.mxu0 0
    %4118 = vmatpush1.bf16.msra.mxu0 0
    %4119 = vmatprep.subr.bf16.mxu0 0
    %4120 = vmatpush1.bf16.msra.mxu0 0
    %4121 = vmatprep.mubr.bf16.mxu0 0
    %4122 = vmatmul.mubr.bf16.gmra.mrb[0].mxu0 %v4084
    %v4123 = vpop.f32.mrb[0].mxu0
    %v4124 = vadd.f32 0.0, %v4123
    %v4125 = vpop.f32.mrb[0].mxu0
    %v4126 = vpop.f32.mrb[0].mxu0
    %v4127 = vadd.f32 0.0, %v4126
    %v4128 = vpop.f32.mrb[0].mxu0
    %4129 = vmatprep.mubr.bf16.mxu0 0
    %4130 = vmatmul.mubr.bf16.gmra.mrb[0].mxu0 %v4087
    %v4131 = vpop.f32.mrb[0].mxu0
    %v4132 = vadd.f32 0.0, %v4131
    %v4133 = vpop.f32.mrb[0].mxu0
    %v4134 = vpop.f32.mrb[0].mxu0
    %v4135 = vpop.f32.mrb[0].mxu0
    %4136 = vdwg.mxu0
    %v4137 = vlaneseq
    %v4138 = vshrl.u32 %v4137, 7
    %v4139 = vsub.s32 0, %v4138
    %v4140 = vrot.slane %v2345, %v4139
    %v4141 = vadd.f32 %v4068, %v4140
    %v4142 = vadd.f32 %v4071, %v4140
    %v4143 = vadd.f32 %v4076, %v4140
    %v4144 = vadd.f32 %v4124, %v4140
    %v4145 = vadd.f32 %v4127, %v4140
    %v4146 = vadd.f32 %v4132, %v4140
    %v4147 = vsel %vm72, %v4141, 0.0
    %4148 = vadd.xlane.f32.xlu0 %v4147
    %v4149 = vpop.xlane.xlu0 %4148
    %v4150 = vsel %vm72, %v4142, 0.0
    %4151 = vadd.xlane.f32.xlu0 %v4150
    %v4152 = vpop.xlane.xlu0 %4151
    %v4153 = vsel %vm79, %v4143, 0.0
    %4154 = vadd.xlane.f32.xlu0 %v4153
    %v4155 = vpop.xlane.xlu0 %4154
    %v4156 = vsel %vm72, %v4144, 0.0
    %4157 = vadd.xlane.f32.xlu0 %v4156
    %v4158 = vpop.xlane.xlu0 %4157
    %v4159 = vsel %vm72, %v4145, 0.0
    %4160 = vadd.xlane.f32.xlu0 %v4159
    %v4161 = vpop.xlane.xlu0 %4160
    %v4162 = vsel %vm79, %v4146, 0.0
    %4163 = vadd.xlane.f32.xlu0 %v4162
    %v4164 = vpop.xlane.xlu0 %4163
    %v4165 = vmul.f32 %v4149, %v89
    %v4166 = vmul.f32 %v4152, %v89
    %v4167 = vmul.f32 %v4155, %v89
    %v4168 = vmul.f32 %v4158, %v89
    %v4169 = vmul.f32 %v4161, %v89
    %v4170 = vmul.f32 %v4164, %v89
    %v4171 = vmul.f32 %v4141, %v4141
    %v4172 = vmul.f32 %v4142, %v4142
    %v4173 = vmul.f32 %v4143, %v4143
    %v4174 = vmul.f32 %v4144, %v4144
    %v4175 = vmul.f32 %v4145, %v4145
    %v4176 = vmul.f32 %v4146, %v4146
    %v4177 = vsel %vm72, %v4171, 0.0
    %4178 = vadd.xlane.f32.xlu0 %v4177
    %v4179 = vpop.xlane.xlu0 %4178
    %v4180 = vsel %vm72, %v4172, 0.0
    %4181 = vadd.xlane.f32.xlu0 %v4180
    %v4182 = vpop.xlane.xlu0 %4181
    %v4183 = vsel %vm79, %v4173, 0.0
    %4184 = vadd.xlane.f32.xlu0 %v4183
    %v4185 = vpop.xlane.xlu0 %4184
    %v4186 = vsel %vm72, %v4174, 0.0
    %4187 = vadd.xlane.f32.xlu0 %v4186
    %v4188 = vpop.xlane.xlu0 %4187
    %v4189 = vsel %vm72, %v4175, 0.0
    %4190 = vadd.xlane.f32.xlu0 %v4189
    %v4191 = vpop.xlane.xlu0 %4190
    %v4192 = vsel %vm79, %v4176, 0.0
    %4193 = vadd.xlane.f32.xlu0 %v4192
    %v4194 = vpop.xlane.xlu0 %4193
    %v4195 = vmul.f32 %v4179, %v89
    %v4196 = vmul.f32 %v4182, %v89
    %v4197 = vmul.f32 %v4185, %v89
    %v4198 = vmul.f32 %v4188, %v89
    %v4199 = vmul.f32 %v4191, %v89
    %v4200 = vmul.f32 %v4194, %v89
    %v4201 = vmul.f32 %v4165, %v4165
    %v4202 = vmul.f32 %v4166, %v4166
    %v4203 = vmul.f32 %v4167, %v4167
    %v4204 = vmul.f32 %v4168, %v4168
    %v4205 = vmul.f32 %v4169, %v4169
    %v4206 = vmul.f32 %v4170, %v4170
    %v4207 = vsub.f32 %v4195, %v4201
    %v4208 = vsub.f32 %v4196, %v4202
    %v4209 = vsub.f32 %v4197, %v4203
    %v4210 = vsub.f32 %v4198, %v4204
    %v4211 = vsub.f32 %v4199, %v4205
    %v4212 = vsub.f32 %v4200, %v4206
    %v4213 = vsub.f32 %v4141, %v4165
    %v4214 = vsub.f32 %v4142, %v4166
    %v4215 = vsub.f32 %v4143, %v4167
    %v4216 = vsub.f32 %v4144, %v4168
    %v4217 = vsub.f32 %v4145, %v4169
    %v4218 = vsub.f32 %v4146, %v4170
    %v4219 = vadd.f32 %v4207, 1e-05
    %v4220 = vadd.f32 %v4208, 1e-05
    %v4221 = vadd.f32 %v4209, 1e-05
    %v4222 = vadd.f32 %v4210, 1e-05
    %v4223 = vadd.f32 %v4211, 1e-05
    %v4224 = vadd.f32 %v4212, 1e-05
    %v4225 = vrsqrt.pop %v4219
    %v4226 = vrsqrt.pop %v4220
    %v4227 = vrsqrt.pop %v4221
    %v4228 = vrsqrt.pop %v4222
    %v4229 = vrsqrt.pop %v4223
    %v4230 = vrsqrt.pop %v4224
    %v4231 = vmul.f32 %v4213, %v4225
    %v4232 = vmul.f32 %v4214, %v4226
    %v4233 = vmul.f32 %v4215, %v4227
    %v4234 = vmul.f32 %v4216, %v4228
    %v4235 = vmul.f32 %v4217, %v4229
    %v4236 = vmul.f32 %v4218, %v4230
    %v4237 = vlaneseq
    %v4238 = vshrl.u32 %v4237, 7
    %v4239 = vsub.s32 0, %v4238
    %v4240 = vrot.slane %v2346, %v4239
    %v4241 = vmul.f32 %v4231, %v4240
    %v4242 = vmul.f32 %v4232, %v4240
    %v4243 = vmul.f32 %v4233, %v4240
    %v4244 = vmul.f32 %v4234, %v4240
    %v4245 = vmul.f32 %v4235, %v4240
    %v4246 = vmul.f32 %v4236, %v4240
    %v4247 = vlaneseq
    %v4248 = vshrl.u32 %v4247, 7
    %v4249 = vsub.s32 0, %v4248
    %v4250 = vrot.slane %v2347, %v4249
    %v4251 = vadd.f32 %v4241, %v4250
    %v4252 = vadd.f32 %v4242, %v4250
    %v4253 = vadd.f32 %v4243, %v4250
    %v4254 = vadd.f32 %v4244, %v4250
    %v4255 = vadd.f32 %v4245, %v4250
    %v4256 = vadd.f32 %v4246, %v4250
    %v4257 = vpack.c.bf16 %v4252, %v4251
    %v4258 = vpack.c.bf16 %v4253, %v4253
    %v4263 = vunpack.c.l.b16 %v2321
    %v4264 = vunpack.c.l.b16 %v2322
    %v4265 = vunpack.c.l.b16 %v2323
    %v4266 = vunpack.c.l.b16 %v2324
    %v4267 = vpack.c.b16 %v4264, %v4263
    %v4268 = vpack.c.b16 %v4266, %v4265
    %v4272 = vsel %vm72, %v4257, 0
    %v4275 = vsel %vm72, %v4258, 0
    %4277 = vmatprep.subr.bf16.mxu0 0
    %4278 = vmatpush1.bf16.msra.mxu0 %v4267
    %4279 = vmatprep.subr.bf16.mxu0 0
    %4280 = vmatpush1.bf16.msra.mxu0 %v4268
    %4281 = vmatprep.subr.bf16.mxu0 0
    %4282 = vmatpush1.bf16.msra.mxu0 0
    %4283 = vmatprep.subr.bf16.mxu0 0
    %4284 = vmatpush1.bf16.msra.mxu0 0
    %4285 = vmatprep.subr.bf16.mxu0 0
    %4286 = vmatpush1.bf16.msra.mxu0 0
    %4287 = vmatprep.subr.bf16.mxu0 0
    %4288 = vmatpush1.bf16.msra.mxu0 0
    %4289 = vmatprep.subr.bf16.mxu0 0
    %4290 = vmatpush1.bf16.msra.mxu0 0
    %4291 = vmatprep.subr.bf16.mxu0 0
    %4292 = vmatpush1.bf16.msra.mxu0 0
    %4293 = vmatprep.subr.bf16.mxu0 0
    %4294 = vmatpush1.bf16.msra.mxu0 0
    %4295 = vmatprep.subr.bf16.mxu0 0
    %4296 = vmatpush1.bf16.msra.mxu0 0
    %4297 = vmatprep.subr.bf16.mxu0 0
    %4298 = vmatpush1.bf16.msra.mxu0 0
    %4299 = vmatprep.subr.bf16.mxu0 0
    %4300 = vmatpush1.bf16.msra.mxu0 0
    %4301 = vmatprep.subr.bf16.mxu0 0
    %4302 = vmatpush1.bf16.msra.mxu0 0
    %4303 = vmatprep.subr.bf16.mxu0 0
    %4304 = vmatpush1.bf16.msra.mxu0 0
    %4305 = vmatprep.subr.bf16.mxu0 0
    %4306 = vmatpush1.bf16.msra.mxu0 0
    %4307 = vmatprep.subr.bf16.mxu0 0
    %4308 = vmatpush1.bf16.msra.mxu0 0
    %4309 = vmatprep.mubr.bf16.mxu0 0
    %4310 = vmatmul.mubr.bf16.gmra.mrb[0].mxu0 %v4272
    %v4311 = vpop.f32.mrb[0].mxu0
    %v4312 = vadd.f32 0.0, %v4311
    %v4313 = vpop.f32.mrb[0].mxu0
    %v4314 = vpop.f32.mrb[0].mxu0
    %v4315 = vadd.f32 0.0, %v4314
    %v4316 = vpop.f32.mrb[0].mxu0
    %4317 = vmatprep.mubr.bf16.mxu0 0
    %4318 = vmatmul.mubr.bf16.gmra.mrb[0].mxu0 %v4275
    %v4319 = vpop.f32.mrb[0].mxu0
    %v4320 = vadd.f32 0.0, %v4319
    %v4321 = vpop.f32.mrb[0].mxu0
    %v4322 = vpop.f32.mrb[0].mxu0
    %v4323 = vpop.f32.mrb[0].mxu0
    %4324 = vdwg.mxu0
    %v4325 = vpack.c.bf16 %v4255, %v4254
    %v4326 = vpack.c.bf16 %v4256, %v4256
    %v4328 = vsel %vm72, %v4325, 0
    %v4331 = vsel %vm72, %v4326, 0
    %4333 = vmatprep.subr.bf16.mxu0 0
    %4334 = vmatpush1.bf16.msra.mxu0 %v4267
    %4335 = vmatprep.subr.bf16.mxu0 0
    %4336 = vmatpush1.bf16.msra.mxu0 %v4268
    %4337 = vmatprep.subr.bf16.mxu0 0
    %4338 = vmatpush1.bf16.msra.mxu0 0
    %4339 = vmatprep.subr.bf16.mxu0 0
    %4340 = vmatpush1.bf16.msra.mxu0 0
    %4341 = vmatprep.subr.bf16.mxu0 0
    %4342 = vmatpush1.bf16.msra.mxu0 0
    %4343 = vmatprep.subr.bf16.mxu0 0
    %4344 = vmatpush1.bf16.msra.mxu0 0
    %4345 = vmatprep.subr.bf16.mxu0 0
    %4346 = vmatpush1.bf16.msra.mxu0 0
    %4347 = vmatprep.subr.bf16.mxu0 0
    %4348 = vmatpush1.bf16.msra.mxu0 0
    %4349 = vmatprep.subr.bf16.mxu0 0
    %4350 = vmatpush1.bf16.msra.mxu0 0
    %4351 = vmatprep.subr.bf16.mxu0 0
    %4352 = vmatpush1.bf16.msra.mxu0 0
    %4353 = vmatprep.subr.bf16.mxu0 0
    %4354 = vmatpush1.bf16.msra.mxu0 0
    %4355 = vmatprep.subr.bf16.mxu0 0
    %4356 = vmatpush1.bf16.msra.mxu0 0
    %4357 = vmatprep.subr.bf16.mxu0 0
    %4358 = vmatpush1.bf16.msra.mxu0 0
    %4359 = vmatprep.subr.bf16.mxu0 0
    %4360 = vmatpush1.bf16.msra.mxu0 0
    %4361 = vmatprep.subr.bf16.mxu0 0
    %4362 = vmatpush1.bf16.msra.mxu0 0
    %4363 = vmatprep.subr.bf16.mxu0 0
    %4364 = vmatpush1.bf16.msra.mxu0 0
    %4365 = vmatprep.mubr.bf16.mxu0 0
    %4366 = vmatmul.mubr.bf16.gmra.mrb[0].mxu0 %v4328
    %v4367 = vpop.f32.mrb[0].mxu0
    %v4368 = vadd.f32 0.0, %v4367
    %v4369 = vpop.f32.mrb[0].mxu0
    %v4370 = vpop.f32.mrb[0].mxu0
    %v4371 = vadd.f32 0.0, %v4370
    %v4372 = vpop.f32.mrb[0].mxu0
    %4373 = vmatprep.mubr.bf16.mxu0 0
    %4374 = vmatmul.mubr.bf16.gmra.mrb[0].mxu0 %v4331
    %v4375 = vpop.f32.mrb[0].mxu0
    %v4376 = vadd.f32 0.0, %v4375
    %v4377 = vpop.f32.mrb[0].mxu0
    %v4378 = vpop.f32.mrb[0].mxu0
    %v4379 = vpop.f32.mrb[0].mxu0
    %4380 = vdwg.mxu0
    %v4382 = vlaneseq
    %v4383 = vshrl.u32 %v4382, 7
    %v4384 = vsub.s32 0, %v4383
    %v4385 = vrot.slane %v2350, %v4384
    %v4387 = vadd.f32 %v4312, %v4385
    %v4388 = vadd.f32 %v4315, %v4385
    %v4389 = vadd.f32 %v4320, %v4385
    %v4390 = vadd.f32 %v4368, %v4385
    %v4391 = vadd.f32 %v4371, %v4385
    %v4392 = vadd.f32 %v4376, %v4385
    %v4393 = vmul.f32 %v4387, %v4387
    %v4394 = vmul.f32 %v4388, %v4388
    %v4395 = vmul.f32 %v4389, %v4389
    %v4396 = vmul.f32 %v4390, %v4390
    %v4397 = vmul.f32 %v4391, %v4391
    %v4398 = vmul.f32 %v4392, %v4392
    %v4399 = vmul.f32 %v4387, %v4393
    %v4400 = vmul.f32 %v4388, %v4394
    %v4401 = vmul.f32 %v4389, %v4395
    %v4402 = vmul.f32 %v4390, %v4396
    %v4403 = vmul.f32 %v4391, %v4397
    %v4404 = vmul.f32 %v4392, %v4398
    %v4405 = vmul.f32 %v4399, 0.044715
    %v4406 = vmul.f32 %v4400, 0.044715
    %v4407 = vmul.f32 %v4401, 0.044715
    %v4408 = vmul.f32 %v4402, 0.044715
    %v4409 = vmul.f32 %v4403, 0.044715
    %v4410 = vmul.f32 %v4404, 0.044715
    %v4411 = vadd.f32 %v4387, %v4405
    %v4412 = vadd.f32 %v4388, %v4406
    %v4413 = vadd.f32 %v4389, %v4407
    %v4414 = vadd.f32 %v4390, %v4408
    %v4415 = vadd.f32 %v4391, %v4409
    %v4416 = vadd.f32 %v4392, %v4410
    %v4417 = vmul.f32 %v4411, 0.7978846
    %v4418 = vmul.f32 %v4412, 0.7978846
    %v4419 = vmul.f32 %v4413, 0.7978846
    %v4420 = vmul.f32 %v4414, 0.7978846
    %v4421 = vmul.f32 %v4415, 0.7978846
    %v4422 = vmul.f32 %v4416, 0.7978846
    %v4423 = vtanh.pop %v4417
    %v4424 = vtanh.pop %v4418
    %v4425 = vtanh.pop %v4419
    %v4426 = vtanh.pop %v4420
    %v4427 = vtanh.pop %v4421
    %v4428 = vtanh.pop %v4422
    %v4429 = vadd.f32 %v4423, 1.0
    %v4430 = vadd.f32 %v4424, 1.0
    %v4431 = vadd.f32 %v4425, 1.0
    %v4432 = vadd.f32 %v4426, 1.0
    %v4433 = vadd.f32 %v4427, 1.0
    %v4434 = vadd.f32 %v4428, 1.0
    %v4435 = vmul.f32 %v4429, 0.5
    %v4436 = vmul.f32 %v4430, 0.5
    %v4437 = vmul.f32 %v4431, 0.5
    %v4438 = vmul.f32 %v4432, 0.5
    %v4439 = vmul.f32 %v4433, 0.5
    %v4440 = vmul.f32 %v4434, 0.5
    %v4441 = vmul.f32 %v4387, %v4435
    %v4442 = vmul.f32 %v4388, %v4436
    %v4443 = vmul.f32 %v4389, %v4437
    %v4444 = vmul.f32 %v4390, %v4438
    %v4445 = vmul.f32 %v4391, %v4439
    %v4446 = vmul.f32 %v4392, %v4440
    %v4447 = vpack.c.bf16 %v4442, %v4441
    %v4448 = vpack.c.bf16 %v4443, %v4443
    %v4465 = vunpack.c.l.b16 %v2326
    %v4466 = vunpack.c.l.b16 %v2327
    %v4467 = vunpack.c.l.b16 %v2328
    %v4468 = vunpack.c.l.b16 %v2329
    %v4469 = vunpack.c.l.b16 %v2330
    %v4470 = vunpack.c.l.b16 %v2331
    %v4471 = vunpack.c.l.b16 %v2332
    %v4472 = vunpack.c.l.b16 %v2333
    %v4473 = vunpack.c.l.b16 %v2334
    %v4474 = vunpack.c.l.b16 %v2335
    %v4475 = vunpack.c.l.b16 %v2336
    %v4476 = vunpack.c.l.b16 %v2337
    %v4477 = vunpack.c.l.b16 %v2338
    %v4478 = vunpack.c.l.b16 %v2339
    %v4479 = vunpack.c.l.b16 %v2340
    %v4480 = vunpack.c.l.b16 %v2341
    %v4481 = vpack.c.b16 %v4466, %v4465
    %v4482 = vpack.c.b16 %v4468, %v4467
    %v4483 = vpack.c.b16 %v4470, %v4469
    %v4484 = vpack.c.b16 %v4472, %v4471
    %v4485 = vpack.c.b16 %v4474, %v4473
    %v4486 = vpack.c.b16 %v4476, %v4475
    %v4487 = vpack.c.b16 %v4478, %v4477
    %v4488 = vpack.c.b16 %v4480, %v4479
    %4497 = vmatprep.subr.bf16.mxu0 0
    %4498 = vmatpush1.bf16.msra.mxu0 %v4481
    %4499 = vmatprep.subr.bf16.mxu0 0
    %4500 = vmatpush1.bf16.msra.mxu0 %v4482
    %4501 = vmatprep.subr.bf16.mxu0 0
    %4502 = vmatpush1.bf16.msra.mxu0 %v4483
    %4503 = vmatprep.subr.bf16.mxu0 0
    %4504 = vmatpush1.bf16.msra.mxu0 %v4484
    %4505 = vmatprep.subr.bf16.mxu0 0
    %4506 = vmatpush1.bf16.msra.mxu0 %v4485
    %4507 = vmatprep.subr.bf16.mxu0 0
    %4508 = vmatpush1.bf16.msra.mxu0 %v4486
    %4509 = vmatprep.subr.bf16.mxu0 0
    %4510 = vmatpush1.bf16.msra.mxu0 %v4487
    %4511 = vmatprep.subr.bf16.mxu0 0
    %4512 = vmatpush1.bf16.msra.mxu0 %v4488
    %4513 = vmatprep.subr.bf16.mxu0 0
    %4514 = vmatpush1.bf16.msra.mxu0 0
    %4515 = vmatprep.subr.bf16.mxu0 0
    %4516 = vmatpush1.bf16.msra.mxu0 0
    %4517 = vmatprep.subr.bf16.mxu0 0
    %4518 = vmatpush1.bf16.msra.mxu0 0
    %4519 = vmatprep.subr.bf16.mxu0 0
    %4520 = vmatpush1.bf16.msra.mxu0 0
    %4521 = vmatprep.subr.bf16.mxu0 0
    %4522 = vmatpush1.bf16.msra.mxu0 0
    %4523 = vmatprep.subr.bf16.mxu0 0
    %4524 = vmatpush1.bf16.msra.mxu0 0
    %4525 = vmatprep.subr.bf16.mxu0 0
    %4526 = vmatpush1.bf16.msra.mxu0 0
    %4527 = vmatprep.subr.bf16.mxu0 0
    %4528 = vmatpush1.bf16.msra.mxu0 0
    %4529 = vmatprep.mubr.bf16.mxu0 0
    %4530 = vmatmul.mubr.bf16.gmra.mrb[0].mxu0 %v4447
    %v4531 = vpop.f32.mrb[0].mxu0
    %v4532 = vpop.f32.mrb[0].mxu0
    %v4533 = vpop.f32.mrb[0].mxu0
    %v4534 = vpop.f32.mrb[0].mxu0
    %4535 = vmatprep.mubr.bf16.mxu0 0
    %4536 = vmatmul.mubr.bf16.gmra.mrb[0].mxu0 %v4448
    %v4537 = vpop.f32.mrb[0].mxu0
    %v4538 = vadd.f32 0.0, %v4537
    %v4539 = vpop.f32.mrb[0].mxu0
    %v4540 = vpop.f32.mrb[0].mxu0
    %v4541 = vpop.f32.mrb[0].mxu0
    %4542 = vdwg.mxu0
    %v4543 = vpack.c.bf16 %v4445, %v4444
    %v4544 = vpack.c.bf16 %v4446, %v4446
    %4545 = vmatprep.subr.bf16.mxu0 0
    %4546 = vmatpush1.bf16.msra.mxu0 %v4481
    %4547 = vmatprep.subr.bf16.mxu0 0
    %4548 = vmatpush1.bf16.msra.mxu0 %v4482
    %4549 = vmatprep.subr.bf16.mxu0 0
    %4550 = vmatpush1.bf16.msra.mxu0 %v4483
    %4551 = vmatprep.subr.bf16.mxu0 0
    %4552 = vmatpush1.bf16.msra.mxu0 %v4484
    %4553 = vmatprep.subr.bf16.mxu0 0
    %4554 = vmatpush1.bf16.msra.mxu0 %v4485
    %4555 = vmatprep.subr.bf16.mxu0 0
    %4556 = vmatpush1.bf16.msra.mxu0 %v4486
    %4557 = vmatprep.subr.bf16.mxu0 0
    %4558 = vmatpush1.bf16.msra.mxu0 %v4487
    %4559 = vmatprep.subr.bf16.mxu0 0
    %4560 = vmatpush1.bf16.msra.mxu0 %v4488
    %4561 = vmatprep.subr.bf16.mxu0 0
    %4562 = vmatpush1.bf16.msra.mxu0 0
    %4563 = vmatprep.subr.bf16.mxu0 0
    %4564 = vmatpush1.bf16.msra.mxu0 0
    %4565 = vmatprep.subr.bf16.mxu0 0
    %4566 = vmatpush1.bf16.msra.mxu0 0
    %4567 = vmatprep.subr.bf16.mxu0 0
    %4568 = vmatpush1.bf16.msra.mxu0 0
    %4569 = vmatprep.subr.bf16.mxu0 0
    %4570 = vmatpush1.bf16.msra.mxu0 0
    %4571 = vmatprep.subr.bf16.mxu0 0
    %4572 = vmatpush1.bf16.msra.mxu0 0
    %4573 = vmatprep.subr.bf16.mxu0 0
    %4574 = vmatpush1.bf16.msra.mxu0 0
    %4575 = vmatprep.subr.bf16.mxu0 0
    %4576 = vmatpush1.bf16.msra.mxu0 0
    %4577 = vmatprep.mubr.bf16.mxu0 0
    %4578 = vmatmul.mubr.bf16.gmra.mrb[0].mxu0 %v4543
    %v4579 = vpop.f32.mrb[0].mxu0
    %v4580 = vpop.f32.mrb[0].mxu0
    %v4581 = vpop.f32.mrb[0].mxu0
    %v4582 = vpop.f32.mrb[0].mxu0
    %4583 = vmatprep.mubr.bf16.mxu0 0
    %4584 = vmatmul.mubr.bf16.gmra.mrb[0].mxu0 %v4544
    %v4585 = vpop.f32.mrb[0].mxu0
    %v4586 = vadd.f32 0.0, %v4585
    %v4587 = vpop.f32.mrb[0].mxu0
    %v4588 = vpop.f32.mrb[0].mxu0
    %v4589 = vpop.f32.mrb[0].mxu0
    %4590 = vdwg.mxu0
    %v4591 = vlaneseq
    %v4592 = vshrl.u32 %v4591, 7
    %v4593 = vsub.s32 0, %v4592
    %v4594 = vrot.slane %v2348, %v4593
    %v4595 = vadd.f32 %v4538, %v4594
    %v4596 = vadd.f32 %v4586, %v4594
    %v4597 = vld [vmem:[%s6] sm:$0xff]
    %v4598 = vld [vmem:[%s6 + $0x8] sm:$0xff]
    %v4599 = vld [vmem:[%s6 + $0x10] sm:$0xff]
    %v4600 = vld [vmem:[%s6 + $0x18] sm:$0xff]
    %v4601 = vld [vmem:[%s6 + $0x20] sm:$0x1]
    %v4602 = vpack.c.bf16 %v4598, %v4597
    %v4603 = vpack.c.bf16 %v4600, %v4599
    %v4604 = vpack.c.bf16 %v4595, %v4595
    %v4606 = vsel %vm72, %v4604, 0
    %4608 = vmatprep.subr.bf16.mxu0 0
    %4609 = vmatpush1.bf16.msra.mxu0 %v4602
    %4610 = vmatprep.subr.bf16.mxu0 0
    %4611 = vmatpush1.bf16.msra.mxu0 %v4603
    %4612 = vmatprep.subr.bf16.mxu0 0
    %4613 = vmatpush1.bf16.msra.mxu0 0
    %4614 = vmatprep.subr.bf16.mxu0 0
    %4615 = vmatpush1.bf16.msra.mxu0 0
    %4616 = vmatprep.subr.bf16.mxu0 0
    %4617 = vmatpush1.bf16.msra.mxu0 0
    %4618 = vmatprep.subr.bf16.mxu0 0
    %4619 = vmatpush1.bf16.msra.mxu0 0
    %4620 = vmatprep.subr.bf16.mxu0 0
    %4621 = vmatpush1.bf16.msra.mxu0 0
    %4622 = vmatprep.subr.bf16.mxu0 0
    %4623 = vmatpush1.bf16.msra.mxu0 0
    %4624 = vmatprep.subr.bf16.mxu0 0
    %4625 = vmatpush1.bf16.msra.mxu0 0
    %4626 = vmatprep.subr.bf16.mxu0 0
    %4627 = vmatpush1.bf16.msra.mxu0 0
    %4628 = vmatprep.subr.bf16.mxu0 0
    %4629 = vmatpush1.bf16.msra.mxu0 0
    %4630 = vmatprep.subr.bf16.mxu0 0
    %4631 = vmatpush1.bf16.msra.mxu0 0
    %4632 = vmatprep.subr.bf16.mxu0 0
    %4633 = vmatpush1.bf16.msra.mxu0 0
    %4634 = vmatprep.subr.bf16.mxu0 0
    %4635 = vmatpush1.bf16.msra.mxu0 0
    %4636 = vmatprep.subr.bf16.mxu0 0
    %4637 = vmatpush1.bf16.msra.mxu0 0
    %4638 = vmatprep.subr.bf16.mxu0 0
    %4639 = vmatpush1.bf16.msra.mxu0 0
    %4640 = vmatprep.mubr.bf16.mxu0 0
    %4641 = vmatmul.mubr.bf16.gmra.mrb[0].mxu0 %v4606
    %v4642 = vpop.f32.mrb[0].mxu0
    %v4643 = vadd.f32 0.0, %v4642
    %v4644 = vpop.f32.mrb[0].mxu0
    %v4645 = vpop.f32.mrb[0].mxu0
    %v4646 = vpop.f32.mrb[0].mxu0
    %4647 = vdwg.mxu0
    %v4648 = vpack.c.bf16 %v4596, %v4596
    %v4650 = vsel %vm72, %v4648, 0
    %4652 = vmatprep.subr.bf16.mxu0 0
    %4653 = vmatpush1.bf16.msra.mxu0 %v4602
    %4654 = vmatprep.subr.bf16.mxu0 0
    %4655 = vmatpush1.bf16.msra.mxu0 %v4603
    %4656 = vmatprep.subr.bf16.mxu0 0
    %4657 = vmatpush1.bf16.msra.mxu0 0
    %4658 = vmatprep.subr.bf16.mxu0 0
    %4659 = vmatpush1.bf16.msra.mxu0 0
    %4660 = vmatprep.subr.bf16.mxu0 0
    %4661 = vmatpush1.bf16.msra.mxu0 0
    %4662 = vmatprep.subr.bf16.mxu0 0
    %4663 = vmatpush1.bf16.msra.mxu0 0
    %4664 = vmatprep.subr.bf16.mxu0 0
    %4665 = vmatpush1.bf16.msra.mxu0 0
    %4666 = vmatprep.subr.bf16.mxu0 0
    %4667 = vmatpush1.bf16.msra.mxu0 0
    %4668 = vmatprep.subr.bf16.mxu0 0
    %4669 = vmatpush1.bf16.msra.mxu0 0
    %4670 = vmatprep.subr.bf16.mxu0 0
    %4671 = vmatpush1.bf16.msra.mxu0 0
    %4672 = vmatprep.subr.bf16.mxu0 0
    %4673 = vmatpush1.bf16.msra.mxu0 0
    %4674 = vmatprep.subr.bf16.mxu0 0
    %4675 = vmatpush1.bf16.msra.mxu0 0
    %4676 = vmatprep.subr.bf16.mxu0 0
    %4677 = vmatpush1.bf16.msra.mxu0 0
    %4678 = vmatprep.subr.bf16.mxu0 0
    %4679 = vmatpush1.bf16.msra.mxu0 0
    %4680 = vmatprep.subr.bf16.mxu0 0
    %4681 = vmatpush1.bf16.msra.mxu0 0
    %4682 = vmatprep.subr.bf16.mxu0 0
    %4683 = vmatpush1.bf16.msra.mxu0 0
    %4684 = vmatprep.mubr.bf16.mxu0 0
    %4685 = vmatmul.mubr.bf16.gmra.mrb[0].mxu0 %v4650
    %v4686 = vpop.f32.mrb[0].mxu0
    %v4687 = vadd.f32 0.0, %v4686
    %v4688 = vpop.f32.mrb[0].mxu0
    %v4689 = vpop.f32.mrb[0].mxu0
    %v4690 = vpop.f32.mrb[0].mxu0
    %4691 = vdwg.mxu0
    %v4692 = vadd.f32 %v4643, %v4601
    %v4693 = vadd.f32 %v4687, %v4601
    %vm4694 = vcmask 73728
    %4695 = vst.msk [vmem:[#allocation2] sm:$0x1] %vm4694, %v4692
    %4696 = vst.msk [vmem:[#allocation2 + $0x1] sm:$0x1] %vm4694, %v4693
    // Predicated region
    $region30: #{vit_forward.1} parent=1 // pred_check
      _
    $region31: #{vit_forward.1} parent=1 // pred_check_branch
      %4698 = sbr.rel (0) target = $region33
    $region32: #{vit_forward.1} parent=1 // pred_region
      %s4700 = ssub.s32 32, 32
      %4701 = vsyncadd [#allocation3], %s4700
      %s4702 = sshll.u32 [#allocation2], 4
      %s4703 = int_to_ptr.vmem [resolvable:$true] %s4702
      %4708 = dma.vmem_to_hbm [thread:$0]  %s4703, 32, %s7, [#allocation3], 16, 16, 1
    $region33: #{vit_forward.1} parent=1 // pred_fallthru
      _
    // Predicated region
    $region34: #{vit_forward.1} parent=1 // pred_check
      _
    $region35: #{vit_forward.1} parent=1 // pred_check_branch
      %4710 = sbr.rel (0) target = $region37
    $region36: #{vit_forward.1} parent=1 // pred_region
      %4711 = dma.done [#allocation3], 32
    $region37: #{vit_forward.1} parent=1 // pred_fallthru
      _
    %4712 = vsyncpa [#allocation3], 1

</llo_original>
